<compile_context>
chip_gen: v7x
topology: tpu7x:2x2x1
jax: 0.10.0
libtpu: 0.0.40
codegen_flags: <defaults>
</compile_context>

<pallas_src>
import jax
import jax.numpy as jnp
from jax import lax
from jax.experimental import pallas as pl
from jax.experimental.pallas import tpu as pltpu


LANE = 128                      # channel padding granularity (lane width)
EXPANSION = 4                   # Bottleneck1d expansion
TM_MAX = 512                    # max row tile (v7x VMEM budget caps this)
VMEM_LIMIT = 48 * 1024 * 1024   # > v5e/v6e scoped default, < v7x physical


def _round_up(x, m):
    return ((x + m - 1) // m) * m


def _ceil_div(a, b):
    return -(-a // b)


# ----------------------------------------------------------------------------
# Stem: single im2col + one deep-contraction matmul + folded BN + ReLU
# ----------------------------------------------------------------------------
def _stem_kernel(x_ref, w_ref, b_ref, o_ref):
    acc = jnp.dot(x_ref[...], w_ref[...], preferred_element_type=jnp.float32)
    acc = acc + b_ref[...]
    o_ref[...] = jnp.maximum(acc, 0.0).astype(o_ref.dtype)


def stem_conv(x, stem, *, tm_max=TM_MAX):
    """x: (N, L, cin_pad) bf16 -> (N, L_out, cout_pad) bf16."""
    N, L, Cp = x.shape
    K, s, pad_c = stem["ksize"], stem["stride"], stem["pad"]
    Co = stem["cout_pad"]
    L_out = (L + 2 * pad_c - K) // s + 1
    M = N * L_out
    KC = K * Cp

    xp = jnp.pad(x, ((0, 0), (pad_c, pad_c), (0, 0)))
    span = s * (L_out - 1) + 1
    xcol = jnp.concatenate([xp[:, k:k + span:s, :] for k in range(K)],
                           axis=-1).reshape(M, KC)

    tm = max(8, min(tm_max, _round_up(M, 8)))
    if _ceil_div(M, tm) < 2 and M > 8:            # keep both v7x cores busy
        tm = _round_up(_ceil_div(M, 2), 8)
    grid = (_ceil_div(M, tm),)

    out = pl.pallas_call(
        _stem_kernel,
        out_shape=jax.ShapeDtypeStruct((M, Co), jnp.bfloat16),
        grid=grid,
        in_specs=[pl.BlockSpec((tm, KC), lambda i: (i, 0)),
                  pl.BlockSpec((KC, Co), lambda i: (0, 0)),
                  pl.BlockSpec((1, Co), lambda i: (0, 0))],
        out_specs=pl.BlockSpec((tm, Co), lambda i: (i, 0)),
        compiler_params=pltpu.CompilerParams(
            dimension_semantics=("parallel",),
            vmem_limit_bytes=VMEM_LIMIT),
        cost_estimate=pl.CostEstimate(
            flops=int(2 * M * KC * Co), transcendentals=0,
            bytes_accessed=int(2 * (M * KC + KC * Co + M * Co) + 4 * Co)),
    )(xcol, stem["w"], stem["b"])
    return out.reshape(N, L_out, Co)


# ----------------------------------------------------------------------------
# Fully fused Bottleneck1d block kernel
#   conv1(1x1)+bn+relu -> conv2(Kx, stride)+bn+relu -> conv3(1x1)+bn
#   (+identity or fused 1x1 downsample residual) -> relu
# The block input arrives in HBM (memory_space=pl.ANY) as (N, s, L1, Cin)
# (stride phases de-interleaved); each grid step DMAs one halo window.
# ----------------------------------------------------------------------------
def _make_bottleneck_kernel(K, s, pad_c, tm_l, win1, L_in, has_ds):
    n_in = 9 if has_ds else 7

    def kernel(*refs):
        x_hbm = refs[0]
        w1, b1, w2, b2, w3, b3 = refs[1:7]
        if has_ds:
            wd, bd = refs[7], refs[8]
        o_ref = refs[n_in]
        xbuf, h1buf, sem = refs[n_in + 1], refs[n_in + 2], refs[n_in + 3]

        n = pl.program_id(0)
        i = pl.program_id(1)
        start = pl.multiple_of(i * tm_l, 8)

        # Manual halo DMA of the activation window (s, win1, Cin) -> VMEM.
        cp = pltpu.make_async_copy(
            x_hbm.at[n, :, pl.ds(start, win1), :], xbuf, sem)
        cp.start()
        cp.wait()

        # conv1 (1x1) + bn1 + relu over the whole halo window.  PyTorch applies
        # conv2's zero padding to conv1's *output*, so zero the h1 rows that
        # correspond to padded input positions.
        row = lax.broadcasted_iota(jnp.int32, (win1, 1), 0) + i * tm_l
        for q in range(s):
            flat_pos = row * s + q                       # padded flat position
            valid = (flat_pos >= pad_c) & (flat_pos < pad_c + L_in)
            h1 = jnp.dot(xbuf[q], w1[...],
                         preferred_element_type=jnp.float32) + b1[...]
            h1 = jnp.where(valid, jnp.maximum(h1, 0.0), 0.0)
            h1buf[q] = h1.astype(jnp.bfloat16)

        # conv2 (K taps, stride s) + bn2 + relu.  Taps are contiguous slices
        # of the de-interleaved h1 buffer -- no strided loads needed.
        acc = jnp.dot(h1buf[0, pl.ds(0, tm_l), :], w2[0],
                      preferred_element_type=jnp.float32)
        for k in range(1, K):
            acc = acc + jnp.dot(h1buf[k % s, pl.ds(k // s, tm_l), :], w2[k],
                                preferred_element_type=jnp.float32)
        h2 = jnp.maximum(acc + b2[...], 0.0).astype(jnp.bfloat16)

        # conv3 (1x1) + bn3
        out = jnp.dot(h2, w3[...], preferred_element_type=jnp.float32) + b3[...]

        # residual: identity, or fused 1x1 stride-s downsample conv + bn
        xr = xbuf[pad_c % s, pl.ds(pad_c // s, tm_l), :]
        if has_ds:
            res = jnp.dot(xr, wd[...],
                          preferred_element_type=jnp.float32) + bd[...]
        else:
            res = xr.astype(jnp.float32)

        o_ref[...] = jnp.maximum(out + res, 0.0).astype(o_ref.dtype)

    return kernel


def fused_bottleneck(x, blk, *, tm_max=TM_MAX):
    """x: (N, L_in, cin_pad) bf16 -> (N, L_out, cout_pad) bf16."""
    N, L_in, Cin = x.shape
    assert Cin == blk["cin_pad"], (Cin, blk["cin_pad"])
    K, s, pad_c = blk["ksize"], blk["stride"], blk["pad"]
    P, Co = blk["planes_pad"], blk["cout_pad"]
    has_ds = "wd" in blk
    if not has_ds:
        assert s == 1 and Cin == Co          # identity residual
    L_out = (L_in + 2 * pad_c - K) // s + 1

    # Row tile over the output length; keep >= 2 grid steps for v7x megacore.
    tm_l = max(8, min(tm_max, _round_up(L_out, 8)))
    if N * _ceil_div(L_out, tm_l) < 2 and L_out > 8:
        tm_l = _round_up(_ceil_div(L_out, 2), 8)
    tiles = _ceil_div(L_out, tm_l)
    win1 = _round_up(tm_l + (K - 1) // s, 8)      # halo window rows per phase
    L1 = (tiles - 1) * tm_l + win1
    flat = L1 * s

    # Zero-pad the length dim once (conv padding + tile alignment), then
    # de-interleave the s stride phases -> (N, s, L1, Cin) for contiguous taps.
    xp = jnp.pad(x, ((0, 0), (pad_c, flat - L_in - pad_c), (0, 0)))
    xh = jnp.transpose(xp.reshape(N, L1, s, Cin), (0, 2, 1, 3))

    kernel = _make_bottleneck_kernel(K, s, pad_c, tm_l, win1, L_in, has_ds)

    in_specs = [
        pl.BlockSpec(memory_space=pl.ANY),                  # x (manual DMA)
        pl.BlockSpec((Cin, P), lambda n, i: (0, 0)),        # w1
        pl.BlockSpec((1, P), lambda n, i: (0, 0)),          # b1
        pl.BlockSpec((K, P, P), lambda n, i: (0, 0, 0)),    # w2
        pl.BlockSpec((1, P), lambda n, i: (0, 0)),          # b2
        pl.BlockSpec((P, Co), lambda n, i: (0, 0)),         # w3
        pl.BlockSpec((1, Co), lambda n, i: (0, 0)),         # b3
    ]
    args = [xh, blk["w1"], blk["b1"], blk["w2"], blk["b2"],
            blk["w3"], blk["b3"]]
    if has_ds:
        in_specs += [pl.BlockSpec((Cin, Co), lambda n, i: (0, 0)),
                     pl.BlockSpec((1, Co), lambda n, i: (0, 0))]
        args += [blk["wd"], blk["bd"]]

    M_out = N * L_out
    flops = 2 * N * flat * Cin * P + 2 * M_out * (K * P * P + P * Co)
    w_bytes = 2 * (Cin * P + K * P * P + P * Co) + 4 * (2 * P + Co)
    if has_ds:
        flops += 2 * M_out * Cin * Co
        w_bytes += 2 * Cin * Co + 4 * Co
    bytes_accessed = 2 * (N * flat * Cin + M_out * Co) + w_bytes

    return pl.pallas_call(
        kernel,
        out_shape=jax.ShapeDtypeStruct((N, L_out, Co), jnp.bfloat16),
        grid=(N, tiles),
        in_specs=in_specs,
        out_specs=pl.BlockSpec((None, tm_l, Co), lambda n, i: (n, i, 0)),
        scratch_shapes=[pltpu.VMEM((s, win1, Cin), jnp.bfloat16),
                        pltpu.VMEM((s, win1, P), jnp.bfloat16),
                        pltpu.SemaphoreType.DMA],
        compiler_params=pltpu.CompilerParams(
            dimension_semantics=("parallel", "parallel"),
            vmem_limit_bytes=VMEM_LIMIT),
        cost_estimate=pl.CostEstimate(flops=int(flops), transcendentals=0,
                                      bytes_accessed=int(bytes_accessed)),
    )(*args)


# ----------------------------------------------------------------------------
# Parameter init (deterministic, synthetic) -- mirrors the PyTorch module
# ----------------------------------------------------------------------------
def _bn_params(key, C, eps=1e-5):
    k1, k2, k3, k4 = jax.random.split(key, 4)
    gamma = 1.0 + 0.1 * jax.random.normal(k1, (C,), jnp.float32)
    beta = 0.1 * jax.random.normal(k2, (C,), jnp.float32)
    mean = 0.1 * jax.random.normal(k3, (C,), jnp.float32)
    var = 1.0 + jnp.abs(jax.random.normal(k4, (C,), jnp.float32))
    scale = gamma / jnp.sqrt(var + eps)
    bias = beta - mean * scale
    return (scale, bias)


def _conv_w(key, cout, cin, k):
    fan_in = cin * k
    return (jax.random.normal(key, (cout, cin, k), jnp.float32)
            * (1.0 / jnp.sqrt(fan_in)))


def _bottleneck_params(key, inplanes, planes, stride, ksize, with_downsample):
    ks = jax.random.split(key, 8)
    p = {
        "conv1_w": _conv_w(ks[0], planes, inplanes, 1),
        "bn1": _bn_params(ks[1], planes),
        "conv2_w": _conv_w(ks[2], planes, planes, ksize),
        "bn2": _bn_params(ks[3], planes),
        "conv3_w": _conv_w(ks[4], planes * EXPANSION, planes, 1),
        "bn3": _bn_params(ks[5], planes * EXPANSION),
        "stride": stride,
        "ksize": ksize,
    }
    if with_downsample:
        p["ds_w"] = _conv_w(ks[6], planes * EXPANSION, inplanes, 1)
        p["ds_bn"] = _bn_params(ks[7], planes * EXPANSION)
    return p


def init_resnet1d_params(key, *, layers, input_channels, inplanes,
                         kernel_size, kernel_size_stem, stride_stem):
    """ResNet1d.__init__ with block=Bottleneck1d, fix_feature_dim=False,
    pooling_stem=False."""
    keys = jax.random.split(key, 2 + sum(layers) + 2)
    ki = 0
    params = {
        "stem_w": _conv_w(keys[ki], inplanes, input_channels, kernel_size_stem),
        "stem_bn": _bn_params(keys[ki + 1], inplanes),
        "stem_stride": stride_stem,
        "stem_pad": (kernel_size_stem - 1) // 2,
        "stages": [],
    }
    ki += 2
    cur_inplanes = inplanes
    for i, nblocks in enumerate(layers):
        planes = inplanes if i == 0 else (2 ** i) * inplanes
        stride = 1 if i == 0 else 2
        blocks = []
        for b in range(nblocks):
            if b == 0:
                with_ds = (stride != 1) or (cur_inplanes != planes * EXPANSION)
                blk = _bottleneck_params(keys[ki], cur_inplanes, planes,
                                         stride, kernel_size, with_ds)
                cur_inplanes = planes * EXPANSION
            else:
                blk = _bottleneck_params(keys[ki], cur_inplanes, planes,
                                         1, kernel_size, False)
            ki += 1
            blocks.append(blk)
        params["stages"].append(blocks)
    params["out_channels"] = cur_inplanes
    return params


# ----------------------------------------------------------------------------
# One-time parameter preparation: fold BN scale into weights, transpose,
# pad channels to 128, cast to bf16.
# ----------------------------------------------------------------------------
def _fold_1x1(w_oik, bn, cin_pad):
    scale, bias = bn
    Cout, Cin, _ = w_oik.shape
    cout_pad = _round_up(Cout, LANE)
    w = (w_oik[:, :, 0] * scale[:, None]).T                 # (Cin, Cout)
    w = jnp.pad(w, ((0, cin_pad - Cin), (0, cout_pad - Cout)))
    b = jnp.pad(bias, (0, cout_pad - Cout)).reshape(1, cout_pad)
    return w.astype(jnp.bfloat16), b.astype(jnp.float32), cout_pad


def _fold_kx(w_oik, bn, cin_pad):
    scale, bias = bn
    Cout, Cin, K = w_oik.shape
    cout_pad = _round_up(Cout, LANE)
    w = jnp.transpose(w_oik, (2, 1, 0)) * scale.reshape(1, 1, Cout)
    w = jnp.pad(w, ((0, 0), (0, cin_pad - Cin), (0, cout_pad - Cout)))
    b = jnp.pad(bias, (0, cout_pad - Cout)).reshape(1, cout_pad)
    return w.astype(jnp.bfloat16), b.astype(jnp.float32), cout_pad


def prepare_params(raw, input_channels):
    cin_pad = _round_up(input_channels, 8)     # tiny stem input: pad only to 8
    prep = {"cin_pad": cin_pad, "out_channels": raw["out_channels"]}

    # stem: fold BN and reshape to one (K*cin_pad, cout_pad) im2col weight
    wk, b, cout_pad = _fold_kx(raw["stem_w"], raw["stem_bn"], cin_pad)
    K = raw["stem_w"].shape[2]
    prep["stem"] = {"w": wk.reshape(K * cin_pad, cout_pad), "b": b,
                    "ksize": K, "stride": int(raw["stem_stride"]),
                    "pad": int(raw["stem_pad"]), "cout_pad": cout_pad}

    cur = cout_pad
    stages = []
    for stage in raw["stages"]:
        blocks = []
        for p in stage:
            K2 = int(p["ksize"])
            w1, b1, P = _fold_1x1(p["conv1_w"], p["bn1"], cur)
            w2, b2, _ = _fold_kx(p["conv2_w"], p["bn2"], P)
            w3, b3, Co = _fold_1x1(p["conv3_w"], p["bn3"], P)
            blk = {"w1": w1, "b1": b1, "w2": w2, "b2": b2, "w3": w3, "b3": b3,
                   "ksize": K2, "stride": int(p["stride"]),
                   "pad": (K2 - 1) // 2,
                   "cin_pad": cur, "planes_pad": P, "cout_pad": Co}
            if "ds_w" in p:
                wd, bd, _ = _fold_1x1(p["ds_w"], p["ds_bn"], cur)
                blk["wd"] = wd
                blk["bd"] = bd
            blocks.append(blk)
            cur = Co
        stages.append(blocks)
    prep["stages"] = stages
    return prep


# ----------------------------------------------------------------------------
# Forward pass (Bottleneck1d semantics)
# ----------------------------------------------------------------------------
def resnet1d_forward(x_ncl, prep):
    # NCL (PyTorch) -> NLC (kernel layout), bf16, pad channels once.
    x = jnp.transpose(x_ncl, (0, 2, 1)).astype(jnp.bfloat16)
    cin = x.shape[-1]
    if prep["cin_pad"] > cin:
        x = jnp.pad(x, ((0, 0), (0, 0), (0, prep["cin_pad"] - cin)))

    x = stem_conv(x, prep["stem"])
    for stage in prep["stages"]:
        for blk in stage:
            x = fused_bottleneck(x, blk)

    # un-pad channels, back to NCL / f32 to match the PyTorch convention
    x = x[:, :, :prep["out_channels"]].astype(jnp.float32)
    return jnp.transpose(x, (0, 2, 1))


# ----------------------------------------------------------------------------
# main
# ----------------------------------------------------------------------------
if __name__ == "__main__":
    key = jax.random.PRNGKey(0)
    k_x, k_p = jax.random.split(key)

    # small config: ResNet1d(Bottleneck1d, layers=[2, 1], kernel_size=3,
    #                        input_channels=2, inplanes=8,
    #                        kernel_size_stem=7, stride_stem=2,
    #                        pooling_stem=False, fix_feature_dim=False)
    raw_params = init_resnet1d_params(
        k_p, layers=[2, 1], input_channels=2, inplanes=8,
        kernel_size=3, kernel_size_stem=7, stride_stem=2)
    prep = prepare_params(raw_params, input_channels=2)

    # input like PyTorch NCL: (batch=2, channels=2, length=32)
    x = jax.random.normal(k_x, (2, 2, 32), dtype=jnp.float32)

    fwd = jax.jit(lambda inp: resnet1d_forward(inp, prep))
    out = jax.block_until_ready(fwd(x))

    # expected: stem stride 2 -> L=16; stage0 (stride 1, C=32, 2 blocks);
    #           stage1 (stride 2, C=64, L=8)
    assert out.shape == (2, 64, 8), out.shape
    assert bool(jnp.all(jnp.isfinite(out)))
    print("KERNEL_OK")
</pallas_src>

<mosaic_0001>
module attributes {stable_mosaic.version = 11 : i64} {
  func.func @kernel(%arg0: i32, %arg1: i32, %arg2: memref<2x1x24x128xbf16, #tpu.memory_space<any>>, %arg3: memref<128x128xbf16, #tpu.memory_space<vmem>>, %arg4: memref<1x128xf32, #tpu.memory_space<vmem>>, %arg5: memref<3x128x128xbf16, #tpu.memory_space<vmem>>, %arg6: memref<1x128xf32, #tpu.memory_space<vmem>>, %arg7: memref<128x128xbf16, #tpu.memory_space<vmem>>, %arg8: memref<1x128xf32, #tpu.memory_space<vmem>>, %arg9: memref<128x128xbf16, #tpu.memory_space<vmem>>, %arg10: memref<1x128xf32, #tpu.memory_space<vmem>>, %arg11: memref<1x16x128xbf16, #tpu.memory_space<vmem>>, %arg12: memref<1x24x128xbf16, #tpu.memory_space<vmem>>, %arg13: memref<1x24x128xbf16, #tpu.memory_space<vmem>>, %arg14: memref<!tpu.dma_semaphore, #tpu.memory_space<semaphore_mem>>) attributes {dimension_semantics = [#tpu.dimension_semantics<parallel>, #tpu.dimension_semantics<parallel>], iteration_bounds = array<i64: 2, 1>, scalar_prefetch = 0 : i64, scratch_operands = 3 : i64, tpu.core_type = #tpu.core_type<tc>, window_params = [{}, {pipeline_mode = #tpu.pipeline_mode<synchronous>, transform_indices = @transform_1, window_bounds = array<i64: 128, 128>}, {pipeline_mode = #tpu.pipeline_mode<synchronous>, transform_indices = @transform_2, window_bounds = array<i64: 1, 128>}, {pipeline_mode = #tpu.pipeline_mode<synchronous>, transform_indices = @transform_3, window_bounds = array<i64: 3, 128, 128>}, {pipeline_mode = #tpu.pipeline_mode<synchronous>, transform_indices = @transform_4, window_bounds = array<i64: 1, 128>}, {pipeline_mode = #tpu.pipeline_mode<synchronous>, transform_indices = @transform_5, window_bounds = array<i64: 128, 128>}, {pipeline_mode = #tpu.pipeline_mode<synchronous>, transform_indices = @transform_6, window_bounds = array<i64: 1, 128>}, {pipeline_mode = #tpu.pipeline_mode<synchronous>, transform_indices = @transform_7, window_bounds = array<i64: 128, 128>}, {pipeline_mode = #tpu.pipeline_mode<synchronous>, transform_indices = @transform_8, window_bounds = array<i64: 1, 128>}, {transform_indices = @transform_9, window_bounds = array<i64: 1, 16, 128>}]} {
    %c16_i32 = arith.constant 16 : i32
    %0 = arith.muli %arg1, %c16_i32 : i32
    %1 = tpu.assume_multiple %0, 8 : i32
    %c0_i32 = arith.constant 0 : i32
    %c0_i32_0 = arith.constant 0 : i32
    %2 = tpu.memref_slice %arg2[%arg0, %c0_i32, %1, %c0_i32_0] : memref<2x1x24x128xbf16, #tpu.memory_space<any>> -> memref<1x1x24x128xbf16, #tpu.memory_space<any>>
    %3 = tpu.memref_squeeze %2 : memref<1x1x24x128xbf16, #tpu.memory_space<any>> -> memref<1x24x128xbf16, #tpu.memory_space<any>>
    tpu.enqueue_dma source(%3 : memref<1x24x128xbf16, #tpu.memory_space<any>>) target(%arg12 : memref<1x24x128xbf16, #tpu.memory_space<vmem>>) target_semaphore(%arg14 : memref<!tpu.dma_semaphore, #tpu.memory_space<semaphore_mem>>)
    %c0_i32_1 = arith.constant 0 : i32
    %c0_i32_2 = arith.constant 0 : i32
    %4 = tpu.memref_slice %arg2[%arg0, %c0_i32_1, %1, %c0_i32_2] : memref<2x1x24x128xbf16, #tpu.memory_space<any>> -> memref<1x1x24x128xbf16, #tpu.memory_space<any>>
    %5 = tpu.memref_squeeze %4 : memref<1x1x24x128xbf16, #tpu.memory_space<any>> -> memref<1x24x128xbf16, #tpu.memory_space<any>>
    tpu.wait_dma2 semaphore(%arg14 : memref<!tpu.dma_semaphore, #tpu.memory_space<semaphore_mem>>) src(%5 : memref<1x24x128xbf16, #tpu.memory_space<any>>) dst(%arg12 : memref<1x24x128xbf16, #tpu.memory_space<vmem>>)
    %6 = tpu.iota {dimensions = array<i32: 0>} : vector<24x1xi32>
    %c16_i32_3 = arith.constant 16 : i32
    %7 = arith.muli %arg1, %c16_i32_3 : i32
    %8 = vector.broadcast %7 : i32 to vector<24x1xi32>
    %9 = arith.addi %6, %8 : vector<24x1xi32>
    %c1_i32 = arith.constant 1 : i32
    %10 = vector.broadcast %c1_i32 : i32 to vector<24x1xi32>
    %11 = arith.muli %9, %10 : vector<24x1xi32>
    %c0_i32_4 = arith.constant 0 : i32
    %12 = vector.broadcast %c0_i32_4 : i32 to vector<24x1xi32>
    %13 = arith.addi %11, %12 : vector<24x1xi32>
    %c1_i32_5 = arith.constant 1 : i32
    %14 = vector.broadcast %c1_i32_5 : i32 to vector<24x1xi32>
    %15 = arith.cmpi sge, %13, %14 : vector<24x1xi32>
    %c17_i32 = arith.constant 17 : i32
    %16 = vector.broadcast %c17_i32 : i32 to vector<24x1xi32>
    %17 = arith.cmpi slt, %13, %16 : vector<24x1xi32>
    %18 = arith.andi %15, %17 : vector<24x1xi1>
    %c0 = arith.constant 0 : index
    %c0_6 = arith.constant 0 : index
    %c0_7 = arith.constant 0 : index
    %19 = vector.load %arg12[%c0, %c0_6, %c0_7] : memref<1x24x128xbf16, #tpu.memory_space<vmem>>, vector<1x24x128xbf16>
    %20 = vector.shape_cast %19 : vector<1x24x128xbf16> to vector<24x128xbf16>
    %c0_8 = arith.constant 0 : index
    %c0_9 = arith.constant 0 : index
    %21 = vector.load %arg3[%c0_8, %c0_9] : memref<128x128xbf16, #tpu.memory_space<vmem>>, vector<128x128xbf16>
    %cst = arith.constant dense<0.000000e+00> : vector<24x128xf32>
    %22 = tpu.matmul %20, %21, %cst {dimension_numbers = #tpu.dot_dimension_numbers<[1], [0], [0], [1], [0, 0, 1, 1], [], []>} : vector<24x128xbf16>, vector<128x128xbf16>, vector<24x128xf32> -> vector<24x128xf32>
    %c0_10 = arith.constant 0 : index
    %c0_11 = arith.constant 0 : index
    %23 = vector.load %arg4[%c0_10, %c0_11] : memref<1x128xf32, #tpu.memory_space<vmem>>, vector<1x128xf32>
    %24 = vector.broadcast %23 : vector<1x128xf32> to vector<24x128xf32>
    %25 = arith.addf %22, %24 : vector<24x128xf32>
    %cst_12 = arith.constant 0.000000e+00 : f32
    %26 = vector.broadcast %cst_12 : f32 to vector<24x128xf32>
    %27 = arith.maximumf %25, %26 : vector<24x128xf32>
    %cst_13 = arith.constant 0.000000e+00 : f32
    %28 = vector.shape_cast %18 : vector<24x1xi1> to vector<24x1xi1>
    %29 = vector.broadcast %28 : vector<24x1xi1> to vector<24x128xi1>
    %30 = vector.broadcast %cst_13 : f32 to vector<24x128xf32>
    %31 = arith.select %29, %27, %30 : vector<24x128xi1>, vector<24x128xf32>
    %32 = arith.truncf %31 : vector<24x128xf32> to vector<24x128xbf16>
    %c0_14 = arith.constant 0 : index
    %c0_15 = arith.constant 0 : index
    %c0_16 = arith.constant 0 : index
    %33 = vector.load %arg13[%c0_14, %c0_15, %c0_16] : memref<1x24x128xbf16, #tpu.memory_space<vmem>>, vector<1x24x128xbf16>
    %34 = vector.shape_cast %33 : vector<1x24x128xbf16> to vector<24x128xbf16>
    %35 = vector.shape_cast %32 : vector<24x128xbf16> to vector<1x24x128xbf16>
    tpu.vector_store %arg13[%c0_14, %c0_15, %c0_16], %35 {strides = array<i32>} : memref<1x24x128xbf16, #tpu.memory_space<vmem>>, vector<1x24x128xbf16>,
    %c0_17 = arith.constant 0 : index
    %c0_18 = arith.constant 0 : index
    %c0_19 = arith.constant 0 : index
    %36 = vector.load %arg13[%c0_17, %c0_18, %c0_19] : memref<1x24x128xbf16, #tpu.memory_space<vmem>>, vector<1x16x128xbf16>
    %37 = vector.shape_cast %36 : vector<1x16x128xbf16> to vector<16x128xbf16>
    %c0_20 = arith.constant 0 : index
    %c0_21 = arith.constant 0 : index
    %c0_22 = arith.constant 0 : index
    %38 = vector.load %arg5[%c0_20, %c0_21, %c0_22] : memref<3x128x128xbf16, #tpu.memory_space<vmem>>, vector<1x128x128xbf16>
    %39 = vector.shape_cast %38 : vector<1x128x128xbf16> to vector<128x128xbf16>
    %cst_23 = arith.constant dense<0.000000e+00> : vector<16x128xf32>
    %40 = tpu.matmul %37, %39, %cst_23 {dimension_numbers = #tpu.dot_dimension_numbers<[1], [0], [0], [1], [0, 0, 1, 1], [], []>} : vector<16x128xbf16>, vector<128x128xbf16>, vector<16x128xf32> -> vector<16x128xf32>
    %c0_24 = arith.constant 0 : index
    %c1 = arith.constant 1 : index
    %c0_25 = arith.constant 0 : index
    %41 = vector.load %arg13[%c0_24, %c1, %c0_25] : memref<1x24x128xbf16, #tpu.memory_space<vmem>>, vector<1x16x128xbf16>
    %42 = vector.shape_cast %41 : vector<1x16x128xbf16> to vector<16x128xbf16>
    %c1_26 = arith.constant 1 : index
    %c0_27 = arith.constant 0 : index
    %c0_28 = arith.constant 0 : index
    %43 = vector.load %arg5[%c1_26, %c0_27, %c0_28] : memref<3x128x128xbf16, #tpu.memory_space<vmem>>, vector<1x128x128xbf16>
    %44 = vector.shape_cast %43 : vector<1x128x128xbf16> to vector<128x128xbf16>
    %cst_29 = arith.constant dense<0.000000e+00> : vector<16x128xf32>
    %45 = tpu.matmul %42, %44, %cst_29 {dimension_numbers = #tpu.dot_dimension_numbers<[1], [0], [0], [1], [0, 0, 1, 1], [], []>} : vector<16x128xbf16>, vector<128x128xbf16>, vector<16x128xf32> -> vector<16x128xf32>
    %46 = arith.addf %40, %45 : vector<16x128xf32>
    %c0_30 = arith.constant 0 : index
    %c2 = arith.constant 2 : index
    %c0_31 = arith.constant 0 : index
    %47 = vector.load %arg13[%c0_30, %c2, %c0_31] : memref<1x24x128xbf16, #tpu.memory_space<vmem>>, vector<1x16x128xbf16>
    %48 = vector.shape_cast %47 : vector<1x16x128xbf16> to vector<16x128xbf16>
    %c2_32 = arith.constant 2 : index
    %c0_33 = arith.constant 0 : index
    %c0_34 = arith.constant 0 : index
    %49 = vector.load %arg5[%c2_32, %c0_33, %c0_34] : memref<3x128x128xbf16, #tpu.memory_space<vmem>>, vector<1x128x128xbf16>
    %50 = vector.shape_cast %49 : vector<1x128x128xbf16> to vector<128x128xbf16>
    %cst_35 = arith.constant dense<0.000000e+00> : vector<16x128xf32>
    %51 = tpu.matmul %48, %50, %cst_35 {dimension_numbers = #tpu.dot_dimension_numbers<[1], [0], [0], [1], [0, 0, 1, 1], [], []>} : vector<16x128xbf16>, vector<128x128xbf16>, vector<16x128xf32> -> vector<16x128xf32>
    %52 = arith.addf %46, %51 : vector<16x128xf32>
    %c0_36 = arith.constant 0 : index
    %c0_37 = arith.constant 0 : index
    %53 = vector.load %arg6[%c0_36, %c0_37] : memref<1x128xf32, #tpu.memory_space<vmem>>, vector<1x128xf32>
    %54 = vector.broadcast %53 : vector<1x128xf32> to vector<16x128xf32>
    %55 = arith.addf %52, %54 : vector<16x128xf32>
    %cst_38 = arith.constant 0.000000e+00 : f32
    %56 = vector.broadcast %cst_38 : f32 to vector<16x128xf32>
    %57 = arith.maximumf %55, %56 : vector<16x128xf32>
    %58 = arith.truncf %57 : vector<16x128xf32> to vector<16x128xbf16>
    %c0_39 = arith.constant 0 : index
    %c0_40 = arith.constant 0 : index
    %59 = vector.load %arg7[%c0_39, %c0_40] : memref<128x128xbf16, #tpu.memory_space<vmem>>, vector<128x128xbf16>
    %cst_41 = arith.constant dense<0.000000e+00> : vector<16x128xf32>
    %60 = tpu.matmul %58, %59, %cst_41 {dimension_numbers = #tpu.dot_dimension_numbers<[1], [0], [0], [1], [0, 0, 1, 1], [], []>} : vector<16x128xbf16>, vector<128x128xbf16>, vector<16x128xf32> -> vector<16x128xf32>
    %c0_42 = arith.constant 0 : index
    %c0_43 = arith.constant 0 : index
    %61 = vector.load %arg8[%c0_42, %c0_43] : memref<1x128xf32, #tpu.memory_space<vmem>>, vector<1x128xf32>
    %62 = vector.broadcast %61 : vector<1x128xf32> to vector<16x128xf32>
    %63 = arith.addf %60, %62 : vector<16x128xf32>
    %c0_44 = arith.constant 0 : index
    %c1_45 = arith.constant 1 : index
    %c0_46 = arith.constant 0 : index
    %64 = vector.load %arg12[%c0_44, %c1_45, %c0_46] : memref<1x24x128xbf16, #tpu.memory_space<vmem>>, vector<1x16x128xbf16>
    %65 = vector.shape_cast %64 : vector<1x16x128xbf16> to vector<16x128xbf16>
    %c0_47 = arith.constant 0 : index
    %c0_48 = arith.constant 0 : index
    %66 = vector.load %arg9[%c0_47, %c0_48] : memref<128x128xbf16, #tpu.memory_space<vmem>>, vector<128x128xbf16>
    %cst_49 = arith.constant dense<0.000000e+00> : vector<16x128xf32>
    %67 = tpu.matmul %65, %66, %cst_49 {dimension_numbers = #tpu.dot_dimension_numbers<[1], [0], [0], [1], [0, 0, 1, 1], [], []>} : vector<16x128xbf16>, vector<128x128xbf16>, vector<16x128xf32> -> vector<16x128xf32>
    %c0_50 = arith.constant 0 : index
    %c0_51 = arith.constant 0 : index
    %68 = vector.load %arg10[%c0_50, %c0_51] : memref<1x128xf32, #tpu.memory_space<vmem>>, vector<1x128xf32>
    %69 = vector.broadcast %68 : vector<1x128xf32> to vector<16x128xf32>
    %70 = arith.addf %67, %69 : vector<16x128xf32>
    %71 = arith.addf %63, %70 : vector<16x128xf32>
    %cst_52 = arith.constant 0.000000e+00 : f32
    %72 = vector.broadcast %cst_52 : f32 to vector<16x128xf32>
    %73 = arith.maximumf %71, %72 : vector<16x128xf32>
    %74 = arith.truncf %73 : vector<16x128xf32> to vector<16x128xbf16>
    %c0_53 = arith.constant 0 : index
    %c0_54 = arith.constant 0 : index
    %c0_55 = arith.constant 0 : index
    %75 = vector.load %arg11[%c0_53, %c0_54, %c0_55] : memref<1x16x128xbf16, #tpu.memory_space<vmem>>, vector<1x16x128xbf16>
    %76 = vector.shape_cast %75 : vector<1x16x128xbf16> to vector<16x128xbf16>
    %77 = vector.shape_cast %74 : vector<16x128xbf16> to vector<1x16x128xbf16>
    tpu.vector_store %arg11[%c0_53, %c0_54, %c0_55], %77 {strides = array<i32>} : memref<1x16x128xbf16, #tpu.memory_space<vmem>>, vector<1x16x128xbf16>,
    return
  }
  func.func @transform_1(%arg0: i32, %arg1: i32) -> (i32, i32) {
    %c0_i32 = arith.constant 0 : i32
    %c0_i32_0 = arith.constant 0 : i32
    %c0_i32_1 = arith.constant 0 : i32
    return %c0_i32, %c0_i32_0 : i32, i32
  }
  func.func @transform_2(%arg0: i32, %arg1: i32) -> (i32, i32) {
    %c0_i32 = arith.constant 0 : i32
    %c0_i32_0 = arith.constant 0 : i32
    %c0_i32_1 = arith.constant 0 : i32
    return %c0_i32, %c0_i32_0 : i32, i32
  }
  func.func @transform_3(%arg0: i32, %arg1: i32) -> (i32, i32, i32) {
    %c0_i32 = arith.constant 0 : i32
    %c0_i32_0 = arith.constant 0 : i32
    %c0_i32_1 = arith.constant 0 : i32
    %c0_i32_2 = arith.constant 0 : i32
    return %c0_i32, %c0_i32_0, %c0_i32_1 : i32, i32, i32
  }
  func.func @transform_4(%arg0: i32, %arg1: i32) -> (i32, i32) {
    %c0_i32 = arith.constant 0 : i32
    %c0_i32_0 = arith.constant 0 : i32
    %c0_i32_1 = arith.constant 0 : i32
    return %c0_i32, %c0_i32_0 : i32, i32
  }
  func.func @transform_5(%arg0: i32, %arg1: i32) -> (i32, i32) {
    %c0_i32 = arith.constant 0 : i32
    %c0_i32_0 = arith.constant 0 : i32
    %c0_i32_1 = arith.constant 0 : i32
    return %c0_i32, %c0_i32_0 : i32, i32
  }
  func.func @transform_6(%arg0: i32, %arg1: i32) -> (i32, i32) {
    %c0_i32 = arith.constant 0 : i32
    %c0_i32_0 = arith.constant 0 : i32
    %c0_i32_1 = arith.constant 0 : i32
    return %c0_i32, %c0_i32_0 : i32, i32
  }
  func.func @transform_7(%arg0: i32, %arg1: i32) -> (i32, i32) {
    %c0_i32 = arith.constant 0 : i32
    %c0_i32_0 = arith.constant 0 : i32
    %c0_i32_1 = arith.constant 0 : i32
    return %c0_i32, %c0_i32_0 : i32, i32
  }
  func.func @transform_8(%arg0: i32, %arg1: i32) -> (i32, i32) {
    %c0_i32 = arith.constant 0 : i32
    %c0_i32_0 = arith.constant 0 : i32
    %c0_i32_1 = arith.constant 0 : i32
    return %c0_i32, %c0_i32_0 : i32, i32
  }
  func.func @transform_9(%arg0: i32, %arg1: i32) -> (i32, i32, i32) {
    %c0_i32 = arith.constant 0 : i32
    %c0_i32_0 = arith.constant 0 : i32
    return %arg0, %arg1, %c0_i32 : i32, i32, i32
  }
}

module attributes {stable_mosaic.version = 11 : i64} {
  func.func @_stem_kernel(%arg0: i32, %arg1: memref<16x56xbf16, #tpu.memory_space<vmem>>, %arg2: memref<56x128xbf16, #tpu.memory_space<vmem>>, %arg3: memref<1x128xf32, #tpu.memory_space<vmem>>, %arg4: memref<16x128xbf16, #tpu.memory_space<vmem>>) attributes {dimension_semantics = [#tpu.dimension_semantics<parallel>], iteration_bounds = array<i64: 2>, scalar_prefetch = 0 : i64, scratch_operands = 0 : i64, tpu.core_type = #tpu.core_type<tc>, window_params = [{transform_indices = @transform_0, window_bounds = array<i64: 16, 56>}, {pipeline_mode = #tpu.pipeline_mode<synchronous>, transform_indices = @transform_1, window_bounds = array<i64: 56, 128>}, {pipeline_mode = #tpu.pipeline_mode<synchronous>, transform_indices = @transform_2, window_bounds = array<i64: 1, 128>}, {transform_indices = @transform_3, window_bounds = array<i64: 16, 128>}]} {
    %c0 = arith.constant 0 : index
    %c0_0 = arith.constant 0 : index
    %0 = vector.load %arg1[%c0, %c0_0] : memref<16x56xbf16, #tpu.memory_space<vmem>>, vector<16x56xbf16>
    %c0_1 = arith.constant 0 : index
    %c0_2 = arith.constant 0 : index
    %1 = vector.load %arg2[%c0_1, %c0_2] : memref<56x128xbf16, #tpu.memory_space<vmem>>, vector<56x128xbf16>
    %cst = arith.constant dense<0.000000e+00> : vector<16x128xf32>
    %2 = tpu.matmul %0, %1, %cst {dimension_numbers = #tpu.dot_dimension_numbers<[1], [0], [0], [1], [0, 0, 1, 1], [], []>} : vector<16x56xbf16>, vector<56x128xbf16>, vector<16x128xf32> -> vector<16x128xf32>
    %c0_3 = arith.constant 0 : index
    %c0_4 = arith.constant 0 : index
    %3 = vector.load %arg3[%c0_3, %c0_4] : memref<1x128xf32, #tpu.memory_space<vmem>>, vector<1x128xf32>
    %4 = vector.broadcast %3 : vector<1x128xf32> to vector<16x128xf32>
    %5 = arith.addf %2, %4 : vector<16x128xf32>
    %cst_5 = arith.constant 0.000000e+00 : f32
    %6 = vector.broadcast %cst_5 : f32 to vector<16x128xf32>
    %7 = arith.maximumf %5, %6 : vector<16x128xf32>
    %8 = arith.truncf %7 : vector<16x128xf32> to vector<16x128xbf16>
    %c0_6 = arith.constant 0 : index
    %c0_7 = arith.constant 0 : index
    %9 = vector.load %arg4[%c0_6, %c0_7] : memref<16x128xbf16, #tpu.memory_space<vmem>>, vector<16x128xbf16>
    tpu.vector_store %arg4[%c0_6, %c0_7], %8 {strides = array<i32>} : memref<16x128xbf16, #tpu.memory_space<vmem>>, vector<16x128xbf16>,
    return
  }
  func.func @transform_0(%arg0: i32) -> (i32, i32) {
    %c0_i32 = arith.constant 0 : i32
    %c0_i32_0 = arith.constant 0 : i32
    return %arg0, %c0_i32 : i32, i32
  }
  func.func @transform_1(%arg0: i32) -> (i32, i32) {
    %c0_i32 = arith.constant 0 : i32
    %c0_i32_0 = arith.constant 0 : i32
    %c0_i32_1 = arith.constant 0 : i32
    return %c0_i32, %c0_i32_0 : i32, i32
  }
  func.func @transform_2(%arg0: i32) -> (i32, i32) {
    %c0_i32 = arith.constant 0 : i32
    %c0_i32_0 = arith.constant 0 : i32
    %c0_i32_1 = arith.constant 0 : i32
    return %c0_i32, %c0_i32_0 : i32, i32
  }
  func.func @transform_3(%arg0: i32) -> (i32, i32) {
    %c0_i32 = arith.constant 0 : i32
    %c0_i32_0 = arith.constant 0 : i32
    return %arg0, %c0_i32 : i32, i32
  }
}

module attributes {stable_mosaic.version = 11 : i64} {
  func.func @kernel(%arg0: i32, %arg1: i32, %arg2: memref<2x1x24x128xbf16, #tpu.memory_space<any>>, %arg3: memref<128x128xbf16, #tpu.memory_space<vmem>>, %arg4: memref<1x128xf32, #tpu.memory_space<vmem>>, %arg5: memref<3x128x128xbf16, #tpu.memory_space<vmem>>, %arg6: memref<1x128xf32, #tpu.memory_space<vmem>>, %arg7: memref<128x128xbf16, #tpu.memory_space<vmem>>, %arg8: memref<1x128xf32, #tpu.memory_space<vmem>>, %arg9: memref<1x16x128xbf16, #tpu.memory_space<vmem>>, %arg10: memref<1x24x128xbf16, #tpu.memory_space<vmem>>, %arg11: memref<1x24x128xbf16, #tpu.memory_space<vmem>>, %arg12: memref<!tpu.dma_semaphore, #tpu.memory_space<semaphore_mem>>) attributes {dimension_semantics = [#tpu.dimension_semantics<parallel>, #tpu.dimension_semantics<parallel>], iteration_bounds = array<i64: 2, 1>, scalar_prefetch = 0 : i64, scratch_operands = 3 : i64, tpu.core_type = #tpu.core_type<tc>, window_params = [{}, {pipeline_mode = #tpu.pipeline_mode<synchronous>, transform_indices = @transform_1, window_bounds = array<i64: 128, 128>}, {pipeline_mode = #tpu.pipeline_mode<synchronous>, transform_indices = @transform_2, window_bounds = array<i64: 1, 128>}, {pipeline_mode = #tpu.pipeline_mode<synchronous>, transform_indices = @transform_3, window_bounds = array<i64: 3, 128, 128>}, {pipeline_mode = #tpu.pipeline_mode<synchronous>, transform_indices = @transform_4, window_bounds = array<i64: 1, 128>}, {pipeline_mode = #tpu.pipeline_mode<synchronous>, transform_indices = @transform_5, window_bounds = array<i64: 128, 128>}, {pipeline_mode = #tpu.pipeline_mode<synchronous>, transform_indices = @transform_6, window_bounds = array<i64: 1, 128>}, {transform_indices = @transform_7, window_bounds = array<i64: 1, 16, 128>}]} {
    %c16_i32 = arith.constant 16 : i32
    %0 = arith.muli %arg1, %c16_i32 : i32
    %1 = tpu.assume_multiple %0, 8 : i32
    %c0_i32 = arith.constant 0 : i32
    %c0_i32_0 = arith.constant 0 : i32
    %2 = tpu.memref_slice %arg2[%arg0, %c0_i32, %1, %c0_i32_0] : memref<2x1x24x128xbf16, #tpu.memory_space<any>> -> memref<1x1x24x128xbf16, #tpu.memory_space<any>>
    %3 = tpu.memref_squeeze %2 : memref<1x1x24x128xbf16, #tpu.memory_space<any>> -> memref<1x24x128xbf16, #tpu.memory_space<any>>
    tpu.enqueue_dma source(%3 : memref<1x24x128xbf16, #tpu.memory_space<any>>) target(%arg10 : memref<1x24x128xbf16, #tpu.memory_space<vmem>>) target_semaphore(%arg12 : memref<!tpu.dma_semaphore, #tpu.memory_space<semaphore_mem>>)
    %c0_i32_1 = arith.constant 0 : i32
    %c0_i32_2 = arith.constant 0 : i32
    %4 = tpu.memref_slice %arg2[%arg0, %c0_i32_1, %1, %c0_i32_2] : memref<2x1x24x128xbf16, #tpu.memory_space<any>> -> memref<1x1x24x128xbf16, #tpu.memory_space<any>>
    %5 = tpu.memref_squeeze %4 : memref<1x1x24x128xbf16, #tpu.memory_space<any>> -> memref<1x24x128xbf16, #tpu.memory_space<any>>
    tpu.wait_dma2 semaphore(%arg12 : memref<!tpu.dma_semaphore, #tpu.memory_space<semaphore_mem>>) src(%5 : memref<1x24x128xbf16, #tpu.memory_space<any>>) dst(%arg10 : memref<1x24x128xbf16, #tpu.memory_space<vmem>>)
    %6 = tpu.iota {dimensions = array<i32: 0>} : vector<24x1xi32>
    %c16_i32_3 = arith.constant 16 : i32
    %7 = arith.muli %arg1, %c16_i32_3 : i32
    %8 = vector.broadcast %7 : i32 to vector<24x1xi32>
    %9 = arith.addi %6, %8 : vector<24x1xi32>
    %c1_i32 = arith.constant 1 : i32
    %10 = vector.broadcast %c1_i32 : i32 to vector<24x1xi32>
    %11 = arith.muli %9, %10 : vector<24x1xi32>
    %c0_i32_4 = arith.constant 0 : i32
    %12 = vector.broadcast %c0_i32_4 : i32 to vector<24x1xi32>
    %13 = arith.addi %11, %12 : vector<24x1xi32>
    %c1_i32_5 = arith.constant 1 : i32
    %14 = vector.broadcast %c1_i32_5 : i32 to vector<24x1xi32>
    %15 = arith.cmpi sge, %13, %14 : vector<24x1xi32>
    %c17_i32 = arith.constant 17 : i32
    %16 = vector.broadcast %c17_i32 : i32 to vector<24x1xi32>
    %17 = arith.cmpi slt, %13, %16 : vector<24x1xi32>
    %18 = arith.andi %15, %17 : vector<24x1xi1>
    %c0 = arith.constant 0 : index
    %c0_6 = arith.constant 0 : index
    %c0_7 = arith.constant 0 : index
    %19 = vector.load %arg10[%c0, %c0_6, %c0_7] : memref<1x24x128xbf16, #tpu.memory_space<vmem>>, vector<1x24x128xbf16>
    %20 = vector.shape_cast %19 : vector<1x24x128xbf16> to vector<24x128xbf16>
    %c0_8 = arith.constant 0 : index
    %c0_9 = arith.constant 0 : index
    %21 = vector.load %arg3[%c0_8, %c0_9] : memref<128x128xbf16, #tpu.memory_space<vmem>>, vector<128x128xbf16>
    %cst = arith.constant dense<0.000000e+00> : vector<24x128xf32>
    %22 = tpu.matmul %20, %21, %cst {dimension_numbers = #tpu.dot_dimension_numbers<[1], [0], [0], [1], [0, 0, 1, 1], [], []>} : vector<24x128xbf16>, vector<128x128xbf16>, vector<24x128xf32> -> vector<24x128xf32>
    %c0_10 = arith.constant 0 : index
    %c0_11 = arith.constant 0 : index
    %23 = vector.load %arg4[%c0_10, %c0_11] : memref<1x128xf32, #tpu.memory_space<vmem>>, vector<1x128xf32>
    %24 = vector.broadcast %23 : vector<1x128xf32> to vector<24x128xf32>
    %25 = arith.addf %22, %24 : vector<24x128xf32>
    %cst_12 = arith.constant 0.000000e+00 : f32
    %26 = vector.broadcast %cst_12 : f32 to vector<24x128xf32>
    %27 = arith.maximumf %25, %26 : vector<24x128xf32>
    %cst_13 = arith.constant 0.000000e+00 : f32
    %28 = vector.shape_cast %18 : vector<24x1xi1> to vector<24x1xi1>
    %29 = vector.broadcast %28 : vector<24x1xi1> to vector<24x128xi1>
    %30 = vector.broadcast %cst_13 : f32 to vector<24x128xf32>
    %31 = arith.select %29, %27, %30 : vector<24x128xi1>, vector<24x128xf32>
    %32 = arith.truncf %31 : vector<24x128xf32> to vector<24x128xbf16>
    %c0_14 = arith.constant 0 : index
    %c0_15 = arith.constant 0 : index
    %c0_16 = arith.constant 0 : index
    %33 = vector.load %arg11[%c0_14, %c0_15, %c0_16] : memref<1x24x128xbf16, #tpu.memory_space<vmem>>, vector<1x24x128xbf16>
    %34 = vector.shape_cast %33 : vector<1x24x128xbf16> to vector<24x128xbf16>
    %35 = vector.shape_cast %32 : vector<24x128xbf16> to vector<1x24x128xbf16>
    tpu.vector_store %arg11[%c0_14, %c0_15, %c0_16], %35 {strides = array<i32>} : memref<1x24x128xbf16, #tpu.memory_space<vmem>>, vector<1x24x128xbf16>,
    %c0_17 = arith.constant 0 : index
    %c0_18 = arith.constant 0 : index
    %c0_19 = arith.constant 0 : index
    %36 = vector.load %arg11[%c0_17, %c0_18, %c0_19] : memref<1x24x128xbf16, #tpu.memory_space<vmem>>, vector<1x16x128xbf16>
    %37 = vector.shape_cast %36 : vector<1x16x128xbf16> to vector<16x128xbf16>
    %c0_20 = arith.constant 0 : index
    %c0_21 = arith.constant 0 : index
    %c0_22 = arith.constant 0 : index
    %38 = vector.load %arg5[%c0_20, %c0_21, %c0_22] : memref<3x128x128xbf16, #tpu.memory_space<vmem>>, vector<1x128x128xbf16>
    %39 = vector.shape_cast %38 : vector<1x128x128xbf16> to vector<128x128xbf16>
    %cst_23 = arith.constant dense<0.000000e+00> : vector<16x128xf32>
    %40 = tpu.matmul %37, %39, %cst_23 {dimension_numbers = #tpu.dot_dimension_numbers<[1], [0], [0], [1], [0, 0, 1, 1], [], []>} : vector<16x128xbf16>, vector<128x128xbf16>, vector<16x128xf32> -> vector<16x128xf32>
    %c0_24 = arith.constant 0 : index
    %c1 = arith.constant 1 : index
    %c0_25 = arith.constant 0 : index
    %41 = vector.load %arg11[%c0_24, %c1, %c0_25] : memref<1x24x128xbf16, #tpu.memory_space<vmem>>, vector<1x16x128xbf16>
    %42 = vector.shape_cast %41 : vector<1x16x128xbf16> to vector<16x128xbf16>
    %c1_26 = arith.constant 1 : index
    %c0_27 = arith.constant 0 : index
    %c0_28 = arith.constant 0 : index
    %43 = vector.load %arg5[%c1_26, %c0_27, %c0_28] : memref<3x128x128xbf16, #tpu.memory_space<vmem>>, vector<1x128x128xbf16>
    %44 = vector.shape_cast %43 : vector<1x128x128xbf16> to vector<128x128xbf16>
    %cst_29 = arith.constant dense<0.000000e+00> : vector<16x128xf32>
    %45 = tpu.matmul %42, %44, %cst_29 {dimension_numbers = #tpu.dot_dimension_numbers<[1], [0], [0], [1], [0, 0, 1, 1], [], []>} : vector<16x128xbf16>, vector<128x128xbf16>, vector<16x128xf32> -> vector<16x128xf32>
    %46 = arith.addf %40, %45 : vector<16x128xf32>
    %c0_30 = arith.constant 0 : index
    %c2 = arith.constant 2 : index
    %c0_31 = arith.constant 0 : index
    %47 = vector.load %arg11[%c0_30, %c2, %c0_31] : memref<1x24x128xbf16, #tpu.memory_space<vmem>>, vector<1x16x128xbf16>
    %48 = vector.shape_cast %47 : vector<1x16x128xbf16> to vector<16x128xbf16>
    %c2_32 = arith.constant 2 : index
    %c0_33 = arith.constant 0 : index
    %c0_34 = arith.constant 0 : index
    %49 = vector.load %arg5[%c2_32, %c0_33, %c0_34] : memref<3x128x128xbf16, #tpu.memory_space<vmem>>, vector<1x128x128xbf16>
    %50 = vector.shape_cast %49 : vector<1x128x128xbf16> to vector<128x128xbf16>
    %cst_35 = arith.constant dense<0.000000e+00> : vector<16x128xf32>
    %51 = tpu.matmul %48, %50, %cst_35 {dimension_numbers = #tpu.dot_dimension_numbers<[1], [0], [0], [1], [0, 0, 1, 1], [], []>} : vector<16x128xbf16>, vector<128x128xbf16>, vector<16x128xf32> -> vector<16x128xf32>
    %52 = arith.addf %46, %51 : vector<16x128xf32>
    %c0_36 = arith.constant 0 : index
    %c0_37 = arith.constant 0 : index
    %53 = vector.load %arg6[%c0_36, %c0_37] : memref<1x128xf32, #tpu.memory_space<vmem>>, vector<1x128xf32>
    %54 = vector.broadcast %53 : vector<1x128xf32> to vector<16x128xf32>
    %55 = arith.addf %52, %54 : vector<16x128xf32>
    %cst_38 = arith.constant 0.000000e+00 : f32
    %56 = vector.broadcast %cst_38 : f32 to vector<16x128xf32>
    %57 = arith.maximumf %55, %56 : vector<16x128xf32>
    %58 = arith.truncf %57 : vector<16x128xf32> to vector<16x128xbf16>
    %c0_39 = arith.constant 0 : index
    %c0_40 = arith.constant 0 : index
    %59 = vector.load %arg7[%c0_39, %c0_40] : memref<128x128xbf16, #tpu.memory_space<vmem>>, vector<128x128xbf16>
    %cst_41 = arith.constant dense<0.000000e+00> : vector<16x128xf32>
    %60 = tpu.matmul %58, %59, %cst_41 {dimension_numbers = #tpu.dot_dimension_numbers<[1], [0], [0], [1], [0, 0, 1, 1], [], []>} : vector<16x128xbf16>, vector<128x128xbf16>, vector<16x128xf32> -> vector<16x128xf32>
    %c0_42 = arith.constant 0 : index
    %c0_43 = arith.constant 0 : index
    %61 = vector.load %arg8[%c0_42, %c0_43] : memref<1x128xf32, #tpu.memory_space<vmem>>, vector<1x128xf32>
    %62 = vector.broadcast %61 : vector<1x128xf32> to vector<16x128xf32>
    %63 = arith.addf %60, %62 : vector<16x128xf32>
    %c0_44 = arith.constant 0 : index
    %c1_45 = arith.constant 1 : index
    %c0_46 = arith.constant 0 : index
    %64 = vector.load %arg10[%c0_44, %c1_45, %c0_46] : memref<1x24x128xbf16, #tpu.memory_space<vmem>>, vector<1x16x128xbf16>
    %65 = vector.shape_cast %64 : vector<1x16x128xbf16> to vector<16x128xbf16>
    %66 = arith.extf %65 : vector<16x128xbf16> to vector<16x128xf32>
    %67 = arith.addf %63, %66 : vector<16x128xf32>
    %cst_47 = arith.constant 0.000000e+00 : f32
    %68 = vector.broadcast %cst_47 : f32 to vector<16x128xf32>
    %69 = arith.maximumf %67, %68 : vector<16x128xf32>
    %70 = arith.truncf %69 : vector<16x128xf32> to vector<16x128xbf16>
    %c0_48 = arith.constant 0 : index
    %c0_49 = arith.constant 0 : index
    %c0_50 = arith.constant 0 : index
    %71 = vector.load %arg9[%c0_48, %c0_49, %c0_50] : memref<1x16x128xbf16, #tpu.memory_space<vmem>>, vector<1x16x128xbf16>
    %72 = vector.shape_cast %71 : vector<1x16x128xbf16> to vector<16x128xbf16>
    %73 = vector.shape_cast %70 : vector<16x128xbf16> to vector<1x16x128xbf16>
    tpu.vector_store %arg9[%c0_48, %c0_49, %c0_50], %73 {strides = array<i32>} : memref<1x16x128xbf16, #tpu.memory_space<vmem>>, vector<1x16x128xbf16>,
    return
  }
  func.func @transform_1(%arg0: i32, %arg1: i32) -> (i32, i32) {
    %c0_i32 = arith.constant 0 : i32
    %c0_i32_0 = arith.constant 0 : i32
    %c0_i32_1 = arith.constant 0 : i32
    return %c0_i32, %c0_i32_0 : i32, i32
  }
  func.func @transform_2(%arg0: i32, %arg1: i32) -> (i32, i32) {
    %c0_i32 = arith.constant 0 : i32
    %c0_i32_0 = arith.constant 0 : i32
    %c0_i32_1 = arith.constant 0 : i32
    return %c0_i32, %c0_i32_0 : i32, i32
  }
  func.func @transform_3(%arg0: i32, %arg1: i32) -> (i32, i32, i32) {
    %c0_i32 = arith.constant 0 : i32
    %c0_i32_0 = arith.constant 0 : i32
    %c0_i32_1 = arith.constant 0 : i32
    %c0_i32_2 = arith.constant 0 : i32
    return %c0_i32, %c0_i32_0, %c0_i32_1 : i32, i32, i32
  }
  func.func @transform_4(%arg0: i32, %arg1: i32) -> (i32, i32) {
    %c0_i32 = arith.constant 0 : i32
    %c0_i32_0 = arith.constant 0 : i32
    %c0_i32_1 = arith.constant 0 : i32
    return %c0_i32, %c0_i32_0 : i32, i32
  }
  func.func @transform_5(%arg0: i32, %arg1: i32) -> (i32, i32) {
    %c0_i32 = arith.constant 0 : i32
    %c0_i32_0 = arith.constant 0 : i32
    %c0_i32_1 = arith.constant 0 : i32
    return %c0_i32, %c0_i32_0 : i32, i32
  }
  func.func @transform_6(%arg0: i32, %arg1: i32) -> (i32, i32) {
    %c0_i32 = arith.constant 0 : i32
    %c0_i32_0 = arith.constant 0 : i32
    %c0_i32_1 = arith.constant 0 : i32
    return %c0_i32, %c0_i32_0 : i32, i32
  }
  func.func @transform_7(%arg0: i32, %arg1: i32) -> (i32, i32, i32) {
    %c0_i32 = arith.constant 0 : i32
    %c0_i32_0 = arith.constant 0 : i32
    return %arg0, %arg1, %c0_i32 : i32, i32, i32
  }
}

module attributes {stable_mosaic.version = 11 : i64} {
  func.func @kernel(%arg0: i32, %arg1: i32, %arg2: memref<2x2x16x128xbf16, #tpu.memory_space<any>>, %arg3: memref<128x128xbf16, #tpu.memory_space<vmem>>, %arg4: memref<1x128xf32, #tpu.memory_space<vmem>>, %arg5: memref<3x128x128xbf16, #tpu.memory_space<vmem>>, %arg6: memref<1x128xf32, #tpu.memory_space<vmem>>, %arg7: memref<128x128xbf16, #tpu.memory_space<vmem>>, %arg8: memref<1x128xf32, #tpu.memory_space<vmem>>, %arg9: memref<128x128xbf16, #tpu.memory_space<vmem>>, %arg10: memref<1x128xf32, #tpu.memory_space<vmem>>, %arg11: memref<1x8x128xbf16, #tpu.memory_space<vmem>>, %arg12: memref<2x16x128xbf16, #tpu.memory_space<vmem>>, %arg13: memref<2x16x128xbf16, #tpu.memory_space<vmem>>, %arg14: memref<!tpu.dma_semaphore, #tpu.memory_space<semaphore_mem>>) attributes {dimension_semantics = [#tpu.dimension_semantics<parallel>, #tpu.dimension_semantics<parallel>], iteration_bounds = array<i64: 2, 1>, scalar_prefetch = 0 : i64, scratch_operands = 3 : i64, tpu.core_type = #tpu.core_type<tc>, window_params = [{}, {pipeline_mode = #tpu.pipeline_mode<synchronous>, transform_indices = @transform_1, window_bounds = array<i64: 128, 128>}, {pipeline_mode = #tpu.pipeline_mode<synchronous>, transform_indices = @transform_2, window_bounds = array<i64: 1, 128>}, {pipeline_mode = #tpu.pipeline_mode<synchronous>, transform_indices = @transform_3, window_bounds = array<i64: 3, 128, 128>}, {pipeline_mode = #tpu.pipeline_mode<synchronous>, transform_indices = @transform_4, window_bounds = array<i64: 1, 128>}, {pipeline_mode = #tpu.pipeline_mode<synchronous>, transform_indices = @transform_5, window_bounds = array<i64: 128, 128>}, {pipeline_mode = #tpu.pipeline_mode<synchronous>, transform_indices = @transform_6, window_bounds = array<i64: 1, 128>}, {pipeline_mode = #tpu.pipeline_mode<synchronous>, transform_indices = @transform_7, window_bounds = array<i64: 128, 128>}, {pipeline_mode = #tpu.pipeline_mode<synchronous>, transform_indices = @transform_8, window_bounds = array<i64: 1, 128>}, {transform_indices = @transform_9, window_bounds = array<i64: 1, 8, 128>}]} {
    %c8_i32 = arith.constant 8 : i32
    %0 = arith.muli %arg1, %c8_i32 : i32
    %1 = tpu.assume_multiple %0, 8 : i32
    %c0_i32 = arith.constant 0 : i32
    %c0_i32_0 = arith.constant 0 : i32
    %2 = tpu.memref_slice %arg2[%arg0, %c0_i32, %1, %c0_i32_0] : memref<2x2x16x128xbf16, #tpu.memory_space<any>> -> memref<1x2x16x128xbf16, #tpu.memory_space<any>>
    %3 = tpu.memref_squeeze %2 : memref<1x2x16x128xbf16, #tpu.memory_space<any>> -> memref<2x16x128xbf16, #tpu.memory_space<any>>
    tpu.enqueue_dma source(%3 : memref<2x16x128xbf16, #tpu.memory_space<any>>) target(%arg12 : memref<2x16x128xbf16, #tpu.memory_space<vmem>>) target_semaphore(%arg14 : memref<!tpu.dma_semaphore, #tpu.memory_space<semaphore_mem>>)
    %c0_i32_1 = arith.constant 0 : i32
    %c0_i32_2 = arith.constant 0 : i32
    %4 = tpu.memref_slice %arg2[%arg0, %c0_i32_1, %1, %c0_i32_2] : memref<2x2x16x128xbf16, #tpu.memory_space<any>> -> memref<1x2x16x128xbf16, #tpu.memory_space<any>>
    %5 = tpu.memref_squeeze %4 : memref<1x2x16x128xbf16, #tpu.memory_space<any>> -> memref<2x16x128xbf16, #tpu.memory_space<any>>
    tpu.wait_dma2 semaphore(%arg14 : memref<!tpu.dma_semaphore, #tpu.memory_space<semaphore_mem>>) src(%5 : memref<2x16x128xbf16, #tpu.memory_space<any>>) dst(%arg12 : memref<2x16x128xbf16, #tpu.memory_space<vmem>>)
    %6 = tpu.iota {dimensions = array<i32: 0>} : vector<16x1xi32>
    %c8_i32_3 = arith.constant 8 : i32
    %7 = arith.muli %arg1, %c8_i32_3 : i32
    %8 = vector.broadcast %7 : i32 to vector<16x1xi32>
    %9 = arith.addi %6, %8 : vector<16x1xi32>
    %c2_i32 = arith.constant 2 : i32
    %10 = vector.broadcast %c2_i32 : i32 to vector<16x1xi32>
    %11 = arith.muli %9, %10 : vector<16x1xi32>
    %c0_i32_4 = arith.constant 0 : i32
    %12 = vector.broadcast %c0_i32_4 : i32 to vector<16x1xi32>
    %13 = arith.addi %11, %12 : vector<16x1xi32>
    %c1_i32 = arith.constant 1 : i32
    %14 = vector.broadcast %c1_i32 : i32 to vector<16x1xi32>
    %15 = arith.cmpi sge, %13, %14 : vector<16x1xi32>
    %c17_i32 = arith.constant 17 : i32
    %16 = vector.broadcast %c17_i32 : i32 to vector<16x1xi32>
    %17 = arith.cmpi slt, %13, %16 : vector<16x1xi32>
    %18 = arith.andi %15, %17 : vector<16x1xi1>
    %c0 = arith.constant 0 : index
    %c0_5 = arith.constant 0 : index
    %c0_6 = arith.constant 0 : index
    %19 = vector.load %arg12[%c0, %c0_5, %c0_6] : memref<2x16x128xbf16, #tpu.memory_space<vmem>>, vector<1x16x128xbf16>
    %20 = vector.shape_cast %19 : vector<1x16x128xbf16> to vector<16x128xbf16>
    %c0_7 = arith.constant 0 : index
    %c0_8 = arith.constant 0 : index
    %21 = vector.load %arg3[%c0_7, %c0_8] : memref<128x128xbf16, #tpu.memory_space<vmem>>, vector<128x128xbf16>
    %cst = arith.constant dense<0.000000e+00> : vector<16x128xf32>
    %22 = tpu.matmul %20, %21, %cst {dimension_numbers = #tpu.dot_dimension_numbers<[1], [0], [0], [1], [0, 0, 1, 1], [], []>} : vector<16x128xbf16>, vector<128x128xbf16>, vector<16x128xf32> -> vector<16x128xf32>
    %c0_9 = arith.constant 0 : index
    %c0_10 = arith.constant 0 : index
    %23 = vector.load %arg4[%c0_9, %c0_10] : memref<1x128xf32, #tpu.memory_space<vmem>>, vector<1x128xf32>
    %24 = vector.broadcast %23 : vector<1x128xf32> to vector<16x128xf32>
    %25 = arith.addf %22, %24 : vector<16x128xf32>
    %cst_11 = arith.constant 0.000000e+00 : f32
    %26 = vector.broadcast %cst_11 : f32 to vector<16x128xf32>
    %27 = arith.maximumf %25, %26 : vector<16x128xf32>
    %cst_12 = arith.constant 0.000000e+00 : f32
    %28 = vector.shape_cast %18 : vector<16x1xi1> to vector<16x1xi1>
    %29 = vector.broadcast %28 : vector<16x1xi1> to vector<16x128xi1>
    %30 = vector.broadcast %cst_12 : f32 to vector<16x128xf32>
    %31 = arith.select %29, %27, %30 : vector<16x128xi1>, vector<16x128xf32>
    %32 = arith.truncf %31 : vector<16x128xf32> to vector<16x128xbf16>
    %c0_13 = arith.constant 0 : index
    %c0_14 = arith.constant 0 : index
    %c0_15 = arith.constant 0 : index
    %33 = vector.load %arg13[%c0_13, %c0_14, %c0_15] : memref<2x16x128xbf16, #tpu.memory_space<vmem>>, vector<1x16x128xbf16>
    %34 = vector.shape_cast %33 : vector<1x16x128xbf16> to vector<16x128xbf16>
    %35 = vector.shape_cast %32 : vector<16x128xbf16> to vector<1x16x128xbf16>
    tpu.vector_store %arg13[%c0_13, %c0_14, %c0_15], %35 {strides = array<i32>} : memref<2x16x128xbf16, #tpu.memory_space<vmem>>, vector<1x16x128xbf16>,
    %c2_i32_16 = arith.constant 2 : i32
    %36 = vector.broadcast %c2_i32_16 : i32 to vector<16x1xi32>
    %37 = arith.muli %9, %36 : vector<16x1xi32>
    %c1_i32_17 = arith.constant 1 : i32
    %38 = vector.broadcast %c1_i32_17 : i32 to vector<16x1xi32>
    %39 = arith.addi %37, %38 : vector<16x1xi32>
    %c1_i32_18 = arith.constant 1 : i32
    %40 = vector.broadcast %c1_i32_18 : i32 to vector<16x1xi32>
    %41 = arith.cmpi sge, %39, %40 : vector<16x1xi32>
    %c17_i32_19 = arith.constant 17 : i32
    %42 = vector.broadcast %c17_i32_19 : i32 to vector<16x1xi32>
    %43 = arith.cmpi slt, %39, %42 : vector<16x1xi32>
    %44 = arith.andi %41, %43 : vector<16x1xi1>
    %c1 = arith.constant 1 : index
    %c0_20 = arith.constant 0 : index
    %c0_21 = arith.constant 0 : index
    %45 = vector.load %arg12[%c1, %c0_20, %c0_21] : memref<2x16x128xbf16, #tpu.memory_space<vmem>>, vector<1x16x128xbf16>
    %46 = vector.shape_cast %45 : vector<1x16x128xbf16> to vector<16x128xbf16>
    %c0_22 = arith.constant 0 : index
    %c0_23 = arith.constant 0 : index
    %47 = vector.load %arg3[%c0_22, %c0_23] : memref<128x128xbf16, #tpu.memory_space<vmem>>, vector<128x128xbf16>
    %cst_24 = arith.constant dense<0.000000e+00> : vector<16x128xf32>
    %48 = tpu.matmul %46, %47, %cst_24 {dimension_numbers = #tpu.dot_dimension_numbers<[1], [0], [0], [1], [0, 0, 1, 1], [], []>} : vector<16x128xbf16>, vector<128x128xbf16>, vector<16x128xf32> -> vector<16x128xf32>
    %c0_25 = arith.constant 0 : index
    %c0_26 = arith.constant 0 : index
    %49 = vector.load %arg4[%c0_25, %c0_26] : memref<1x128xf32, #tpu.memory_space<vmem>>, vector<1x128xf32>
    %50 = vector.broadcast %49 : vector<1x128xf32> to vector<16x128xf32>
    %51 = arith.addf %48, %50 : vector<16x128xf32>
    %cst_27 = arith.constant 0.000000e+00 : f32
    %52 = vector.broadcast %cst_27 : f32 to vector<16x128xf32>
    %53 = arith.maximumf %51, %52 : vector<16x128xf32>
    %cst_28 = arith.constant 0.000000e+00 : f32
    %54 = vector.shape_cast %44 : vector<16x1xi1> to vector<16x1xi1>
    %55 = vector.broadcast %54 : vector<16x1xi1> to vector<16x128xi1>
    %56 = vector.broadcast %cst_28 : f32 to vector<16x128xf32>
    %57 = arith.select %55, %53, %56 : vector<16x128xi1>, vector<16x128xf32>
    %58 = arith.truncf %57 : vector<16x128xf32> to vector<16x128xbf16>
    %c1_29 = arith.constant 1 : index
    %c0_30 = arith.constant 0 : index
    %c0_31 = arith.constant 0 : index
    %59 = vector.load %arg13[%c1_29, %c0_30, %c0_31] : memref<2x16x128xbf16, #tpu.memory_space<vmem>>, vector<1x16x128xbf16>
    %60 = vector.shape_cast %59 : vector<1x16x128xbf16> to vector<16x128xbf16>
    %61 = vector.shape_cast %58 : vector<16x128xbf16> to vector<1x16x128xbf16>
    tpu.vector_store %arg13[%c1_29, %c0_30, %c0_31], %61 {strides = array<i32>} : memref<2x16x128xbf16, #tpu.memory_space<vmem>>, vector<1x16x128xbf16>,
    %c0_32 = arith.constant 0 : index
    %c0_33 = arith.constant 0 : index
    %c0_34 = arith.constant 0 : index
    %62 = vector.load %arg13[%c0_32, %c0_33, %c0_34] : memref<2x16x128xbf16, #tpu.memory_space<vmem>>, vector<1x8x128xbf16>
    %63 = vector.shape_cast %62 : vector<1x8x128xbf16> to vector<8x128xbf16>
    %c0_35 = arith.constant 0 : index
    %c0_36 = arith.constant 0 : index
    %c0_37 = arith.constant 0 : index
    %64 = vector.load %arg5[%c0_35, %c0_36, %c0_37] : memref<3x128x128xbf16, #tpu.memory_space<vmem>>, vector<1x128x128xbf16>
    %65 = vector.shape_cast %64 : vector<1x128x128xbf16> to vector<128x128xbf16>
    %cst_38 = arith.constant dense<0.000000e+00> : vector<8x128xf32>
    %66 = tpu.matmul %63, %65, %cst_38 {dimension_numbers = #tpu.dot_dimension_numbers<[1], [0], [0], [1], [0, 0, 1, 1], [], []>} : vector<8x128xbf16>, vector<128x128xbf16>, vector<8x128xf32> -> vector<8x128xf32>
    %c1_39 = arith.constant 1 : index
    %c0_40 = arith.constant 0 : index
    %c0_41 = arith.constant 0 : index
    %67 = vector.load %arg13[%c1_39, %c0_40, %c0_41] : memref<2x16x128xbf16, #tpu.memory_space<vmem>>, vector<1x8x128xbf16>
    %68 = vector.shape_cast %67 : vector<1x8x128xbf16> to vector<8x128xbf16>
    %c1_42 = arith.constant 1 : index
    %c0_43 = arith.constant 0 : index
    %c0_44 = arith.constant 0 : index
    %69 = vector.load %arg5[%c1_42, %c0_43, %c0_44] : memref<3x128x128xbf16, #tpu.memory_space<vmem>>, vector<1x128x128xbf16>
    %70 = vector.shape_cast %69 : vector<1x128x128xbf16> to vector<128x128xbf16>
    %cst_45 = arith.constant dense<0.000000e+00> : vector<8x128xf32>
    %71 = tpu.matmul %68, %70, %cst_45 {dimension_numbers = #tpu.dot_dimension_numbers<[1], [0], [0], [1], [0, 0, 1, 1], [], []>} : vector<8x128xbf16>, vector<128x128xbf16>, vector<8x128xf32> -> vector<8x128xf32>
    %72 = arith.addf %66, %71 : vector<8x128xf32>
    %c0_46 = arith.constant 0 : index
    %c1_47 = arith.constant 1 : index
    %c0_48 = arith.constant 0 : index
    %73 = vector.load %arg13[%c0_46, %c1_47, %c0_48] : memref<2x16x128xbf16, #tpu.memory_space<vmem>>, vector<1x8x128xbf16>
    %74 = vector.shape_cast %73 : vector<1x8x128xbf16> to vector<8x128xbf16>
    %c2 = arith.constant 2 : index
    %c0_49 = arith.constant 0 : index
    %c0_50 = arith.constant 0 : index
    %75 = vector.load %arg5[%c2, %c0_49, %c0_50] : memref<3x128x128xbf16, #tpu.memory_space<vmem>>, vector<1x128x128xbf16>
    %76 = vector.shape_cast %75 : vector<1x128x128xbf16> to vector<128x128xbf16>
    %cst_51 = arith.constant dense<0.000000e+00> : vector<8x128xf32>
    %77 = tpu.matmul %74, %76, %cst_51 {dimension_numbers = #tpu.dot_dimension_numbers<[1], [0], [0], [1], [0, 0, 1, 1], [], []>} : vector<8x128xbf16>, vector<128x128xbf16>, vector<8x128xf32> -> vector<8x128xf32>
    %78 = arith.addf %72, %77 : vector<8x128xf32>
    %c0_52 = arith.constant 0 : index
    %c0_53 = arith.constant 0 : index
    %79 = vector.load %arg6[%c0_52, %c0_53] : memref<1x128xf32, #tpu.memory_space<vmem>>, vector<1x128xf32>
    %80 = vector.broadcast %79 : vector<1x128xf32> to vector<8x128xf32>
    %81 = arith.addf %78, %80 : vector<8x128xf32>
    %cst_54 = arith.constant 0.000000e+00 : f32
    %82 = vector.broadcast %cst_54 : f32 to vector<8x128xf32>
    %83 = arith.maximumf %81, %82 : vector<8x128xf32>
    %84 = arith.truncf %83 : vector<8x128xf32> to vector<8x128xbf16>
    %c0_55 = arith.constant 0 : index
    %c0_56 = arith.constant 0 : index
    %85 = vector.load %arg7[%c0_55, %c0_56] : memref<128x128xbf16, #tpu.memory_space<vmem>>, vector<128x128xbf16>
    %cst_57 = arith.constant dense<0.000000e+00> : vector<8x128xf32>
    %86 = tpu.matmul %84, %85, %cst_57 {dimension_numbers = #tpu.dot_dimension_numbers<[1], [0], [0], [1], [0, 0, 1, 1], [], []>} : vector<8x128xbf16>, vector<128x128xbf16>, vector<8x128xf32> -> vector<8x128xf32>
    %c0_58 = arith.constant 0 : index
    %c0_59 = arith.constant 0 : index
    %87 = vector.load %arg8[%c0_58, %c0_59] : memref<1x128xf32, #tpu.memory_space<vmem>>, vector<1x128xf32>
    %88 = vector.broadcast %87 : vector<1x128xf32> to vector<8x128xf32>
    %89 = arith.addf %86, %88 : vector<8x128xf32>
    %c1_60 = arith.constant 1 : index
    %c0_61 = arith.constant 0 : index
    %c0_62 = arith.constant 0 : index
    %90 = vector.load %arg12[%c1_60, %c0_61, %c0_62] : memref<2x16x128xbf16, #tpu.memory_space<vmem>>, vector<1x8x128xbf16>
    %91 = vector.shape_cast %90 : vector<1x8x128xbf16> to vector<8x128xbf16>
    %c0_63 = arith.constant 0 : index
    %c0_64 = arith.constant 0 : index
    %92 = vector.load %arg9[%c0_63, %c0_64] : memref<128x128xbf16, #tpu.memory_space<vmem>>, vector<128x128xbf16>
    %cst_65 = arith.constant dense<0.000000e+00> : vector<8x128xf32>
    %93 = tpu.matmul %91, %92, %cst_65 {dimension_numbers = #tpu.dot_dimension_numbers<[1], [0], [0], [1], [0, 0, 1, 1], [], []>} : vector<8x128xbf16>, vector<128x128xbf16>, vector<8x128xf32> -> vector<8x128xf32>
    %c0_66 = arith.constant 0 : index
    %c0_67 = arith.constant 0 : index
    %94 = vector.load %arg10[%c0_66, %c0_67] : memref<1x128xf32, #tpu.memory_space<vmem>>, vector<1x128xf32>
    %95 = vector.broadcast %94 : vector<1x128xf32> to vector<8x128xf32>
    %96 = arith.addf %93, %95 : vector<8x128xf32>
    %97 = arith.addf %89, %96 : vector<8x128xf32>
    %cst_68 = arith.constant 0.000000e+00 : f32
    %98 = vector.broadcast %cst_68 : f32 to vector<8x128xf32>
    %99 = arith.maximumf %97, %98 : vector<8x128xf32>
    %100 = arith.truncf %99 : vector<8x128xf32> to vector<8x128xbf16>
    %c0_69 = arith.constant 0 : index
    %c0_70 = arith.constant 0 : index
    %c0_71 = arith.constant 0 : index
    %101 = vector.load %arg11[%c0_69, %c0_70, %c0_71] : memref<1x8x128xbf16, #tpu.memory_space<vmem>>, vector<1x8x128xbf16>
    %102 = vector.shape_cast %101 : vector<1x8x128xbf16> to vector<8x128xbf16>
    %103 = vector.shape_cast %100 : vector<8x128xbf16> to vector<1x8x128xbf16>
    tpu.vector_store %arg11[%c0_69, %c0_70, %c0_71], %103 {strides = array<i32>} : memref<1x8x128xbf16, #tpu.memory_space<vmem>>, vector<1x8x128xbf16>,
    return
  }
  func.func @transform_1(%arg0: i32, %arg1: i32) -> (i32, i32) {
    %c0_i32 = arith.constant 0 : i32
    %c0_i32_0 = arith.constant 0 : i32
    %c0_i32_1 = arith.constant 0 : i32
    return %c0_i32, %c0_i32_0 : i32, i32
  }
  func.func @transform_2(%arg0: i32, %arg1: i32) -> (i32, i32) {
    %c0_i32 = arith.constant 0 : i32
    %c0_i32_0 = arith.constant 0 : i32
    %c0_i32_1 = arith.constant 0 : i32
    return %c0_i32, %c0_i32_0 : i32, i32
  }
  func.func @transform_3(%arg0: i32, %arg1: i32) -> (i32, i32, i32) {
    %c0_i32 = arith.constant 0 : i32
    %c0_i32_0 = arith.constant 0 : i32
    %c0_i32_1 = arith.constant 0 : i32
    %c0_i32_2 = arith.constant 0 : i32
    return %c0_i32, %c0_i32_0, %c0_i32_1 : i32, i32, i32
  }
  func.func @transform_4(%arg0: i32, %arg1: i32) -> (i32, i32) {
    %c0_i32 = arith.constant 0 : i32
    %c0_i32_0 = arith.constant 0 : i32
    %c0_i32_1 = arith.constant 0 : i32
    return %c0_i32, %c0_i32_0 : i32, i32
  }
  func.func @transform_5(%arg0: i32, %arg1: i32) -> (i32, i32) {
    %c0_i32 = arith.constant 0 : i32
    %c0_i32_0 = arith.constant 0 : i32
    %c0_i32_1 = arith.constant 0 : i32
    return %c0_i32, %c0_i32_0 : i32, i32
  }
  func.func @transform_6(%arg0: i32, %arg1: i32) -> (i32, i32) {
    %c0_i32 = arith.constant 0 : i32
    %c0_i32_0 = arith.constant 0 : i32
    %c0_i32_1 = arith.constant 0 : i32
    return %c0_i32, %c0_i32_0 : i32, i32
  }
  func.func @transform_7(%arg0: i32, %arg1: i32) -> (i32, i32) {
    %c0_i32 = arith.constant 0 : i32
    %c0_i32_0 = arith.constant 0 : i32
    %c0_i32_1 = arith.constant 0 : i32
    return %c0_i32, %c0_i32_0 : i32, i32
  }
  func.func @transform_8(%arg0: i32, %arg1: i32) -> (i32, i32) {
    %c0_i32 = arith.constant 0 : i32
    %c0_i32_0 = arith.constant 0 : i32
    %c0_i32_1 = arith.constant 0 : i32
    return %c0_i32, %c0_i32_0 : i32, i32
  }
  func.func @transform_9(%arg0: i32, %arg1: i32) -> (i32, i32, i32) {
    %c0_i32 = arith.constant 0 : i32
    %c0_i32_0 = arith.constant 0 : i32
    return %arg0, %arg1, %c0_i32 : i32, i32, i32
  }
}

</mosaic_0001>

<llo_original>
// kernel: _lambda_.4
$region0: #{_lambda_.4}
  #allocation0 [shape = 'u32[]', space=smem, size = 0x4, offset = 0x4, fixed_abs, tag = 'smem constant byte address 0x4 - core index']
  #allocation1 [shape = 'u32[144,128]{1,0:T(1,128)}', space=vmem, size = 0x12000, scoped, tag = 'internal scratch']
  %s0 = inlined_call_operand.vmem [shape: bf16[32,56], index: 0, kind: input, shape index: {}]
  %s1 = inlined_call_operand.vmem [shape: bf16[56,128], index: 1, kind: input, shape index: {}]
  %s2 = inlined_call_operand.vmem [shape: f32[1,128], index: 2, kind: input, shape index: {}]
  %s3 = inlined_call_operand.vmem [shape: bf16[32,128], index: 3, kind: output, shape index: {}]
  %s4 = sld [smem:[#allocation0]]
  $region45: #{_lambda_.4} parent=0
    _
  %s6 = ssub.s32 1, %s4
  %s7 = scalar_select 0, %s6, %s4
  loop: start=0, step=1, limit=4
  $region2: #{_lambda_.4} parent=0 // loop_pre_header
    _
  $region3: #{_lambda_.4} parent=0 // loop_header
    %s9 = sphi 0, %s13
    %p10 = scmp.ge.s32.totalorder %s9, 4
    %s19 = sphi 0, %s21
    %s22 = sphi 0, %s19
    %s23 = sphi 0, %s22
    %s39 = sphi 0, %s23
    %s43 = sphi 0, %s43
    %s45 = sphi 0, %s43
    %s46 = sphi 0, %s45
    %s60 = sphi 0, %s46
    %s64 = sphi 0, %s64
    %s66 = sphi 0, %s64
    %s67 = sphi 0, %s66
    %s81 = sphi 0, %s67
    %s87 = sphi 0, %s89
    %s90 = sphi 0, %s87
    %s91 = sphi 0, %s90
    %s107 = sphi 0, %s91
  $region4: #{_lambda_.4} parent=0 // loop_header_branch
    %12 = sbr.rel (%p10) target = $region8
  $region5: #{_lambda_.4} parent=0 // loop_body
    %s14 = ssub.s32 %s9, 1
    %s15 = ssub.s32 %s9, 2
    %s16 = sadd.s32 %s9, 1
    %s17 = ssub.s32 %s9, %s16
    %p18 = scmp.eq.s32.totalorder %s17, 0
    %s20 = sadd.s32 %s19, 1
    %s21 = scalar_select %p18, %s19, %s20
    %p24 = pneg %p18
    %p25 = scmp.eq.s32.totalorder %s9, 1
    %p26 = por %p24, %p25
    %p27 = scmp.ne.s32.totalorder %s19, %s22
    %p28 = scmp.eq.s32.totalorder %s9, 0
    %p29 = por %p27, %p28
    %p30 = scmp.ne.s32.totalorder %s19, %s22
    %p31 = scmp.eq.s32.totalorder %s14, 1
    %p32 = por %p30, %p31
    %p33 = scmp.ne.s32.totalorder %s22, %s23
    %p34 = scmp.eq.s32.totalorder %s14, 0
    %p35 = por %p33, %p34
    %p36 = scmp.ne.s32.totalorder %s22, %s23
    %p37 = scmp.eq.s32.totalorder %s15, 1
    %p38 = por %p36, %p37
    %p40 = scmp.ne.s32.totalorder %s23, %s39
    %p41 = scmp.eq.s32.totalorder %s15, 0
    %p42 = por %p40, %p41
    %s44 = sadd.s32 %s43, 1
    %p47 = scmp.eq.s32.totalorder %s9, 1
    %p48 = scmp.ne.s32.totalorder %s43, %s45
    %p49 = scmp.eq.s32.totalorder %s9, 0
    %p50 = por %p48, %p49
    %p51 = scmp.ne.s32.totalorder %s43, %s45
    %p52 = scmp.eq.s32.totalorder %s14, 1
    %p53 = por %p51, %p52
    %p54 = scmp.ne.s32.totalorder %s45, %s46
    %p55 = scmp.eq.s32.totalorder %s14, 0
    %p56 = por %p54, %p55
    %p57 = scmp.ne.s32.totalorder %s45, %s46
    %p58 = scmp.eq.s32.totalorder %s15, 1
    %p59 = por %p57, %p58
    %p61 = scmp.ne.s32.totalorder %s46, %s60
    %p62 = scmp.eq.s32.totalorder %s15, 0
    %p63 = por %p61, %p62
    %s65 = sadd.s32 %s64, 1
    %p68 = scmp.eq.s32.totalorder %s9, 1
    %p69 = scmp.ne.s32.totalorder %s64, %s66
    %p70 = scmp.eq.s32.totalorder %s9, 0
    %p71 = por %p69, %p70
    %p72 = scmp.ne.s32.totalorder %s64, %s66
    %p73 = scmp.eq.s32.totalorder %s14, 1
    %p74 = por %p72, %p73
    %p75 = scmp.ne.s32.totalorder %s66, %s67
    %p76 = scmp.eq.s32.totalorder %s14, 0
    %p77 = por %p75, %p76
    %p78 = scmp.ne.s32.totalorder %s66, %s67
    %p79 = scmp.eq.s32.totalorder %s15, 1
    %p80 = por %p78, %p79
    %p82 = scmp.ne.s32.totalorder %s67, %s81
    %p83 = scmp.eq.s32.totalorder %s15, 0
    %p84 = por %p82, %p83
    %s85 = ssub.s32 %s9, %s16
    %p86 = scmp.eq.s32.totalorder %s85, 0
    %s88 = sadd.s32 %s87, 1
    %s89 = scalar_select %p86, %s87, %s88
    %p92 = pneg %p86
    %p93 = scmp.eq.s32.totalorder %s9, 1
    %p94 = por %p92, %p93
    %p95 = scmp.ne.s32.totalorder %s87, %s90
    %p96 = scmp.eq.s32.totalorder %s9, 0
    %p97 = por %p95, %p96
    %p98 = scmp.ne.s32.totalorder %s87, %s90
    %p99 = scmp.eq.s32.totalorder %s14, 1
    %p100 = por %p98, %p99
    %p101 = scmp.ne.s32.totalorder %s90, %s91
    %p102 = scmp.eq.s32.totalorder %s14, 0
    %p103 = por %p101, %p102
    %p104 = scmp.ne.s32.totalorder %s90, %s91
    %p105 = scmp.eq.s32.totalorder %s15, 1
    %p106 = por %p104, %p105
    %p108 = scmp.ne.s32.totalorder %s91, %s107
    %p109 = scmp.eq.s32.totalorder %s15, 0
    %p110 = por %p108, %p109
    %p111 = scmp.le.s32.totalorder 1, %s9
    %p112 = scmp.lt.s32.totalorder %s9, 3
    %p113 = pnand %p111, %p112
    %p114 = pneg %p113
    // Predicated region
    $region9: #{_lambda_.4} parent=5 // pred_check
      _
    $region10: #{_lambda_.4} parent=5 // pred_check_branch
      %116 = sbr.rel (%p113) target = $region12
    $region11: #{_lambda_.4} parent=5 // pred_region
      %s117 = ssub.s32 %s9, 1
      // Predicated region
      $region13: #{_lambda_.4} parent=11 // pred_check
        %p118 = pneg %p56
      $region14: #{_lambda_.4} parent=11 // pred_check_branch
        %120 = sbr.rel (%p118) target = $region16
      $region15: #{_lambda_.4} parent=11 // pred_region
        _
      $region16: #{_lambda_.4} parent=11 // pred_fallthru
        _
      // Predicated region
      $region17: #{_lambda_.4} parent=11 // pred_check
        %p121 = pneg %p77
      $region18: #{_lambda_.4} parent=11 // pred_check_branch
        %123 = sbr.rel (%p121) target = $region20
      $region19: #{_lambda_.4} parent=11 // pred_region
        _
      $region20: #{_lambda_.4} parent=11 // pred_fallthru
        _
    $region12: #{_lambda_.4} parent=5 // pred_fallthru
      _
    %p124 = scmp.lt.s32.totalorder %s9, 2
    // Predicated region
    $region21: #{_lambda_.4} parent=5 // pred_check
      %p125 = pneg %p124
    $region22: #{_lambda_.4} parent=5 // pred_check_branch
      %127 = sbr.rel (%p125) target = $region24
    $region23: #{_lambda_.4} parent=5 // pred_region
      // Predicated region
      $region25: #{_lambda_.4} parent=23 // pred_check
        %p128 = pneg %p29
      $region26: #{_lambda_.4} parent=23 // pred_check_branch
        %130 = sbr.rel (%p128) target = $region28
      $region27: #{_lambda_.4} parent=23 // pred_region
        %s131 = smul.u32 2, %s9
        %p132 = scmp.lt.s32.totalorder %s131, 3
        %s133 = scalar_select %p132, %s131, 3
        %s134 = smul.addr %s133, 4
        %s135 = scalar_lea.vmem %s0, %s134
        %s136 = smul.u32 2, %s9
      $region28: #{_lambda_.4} parent=23 // pred_fallthru
        _
    $region24: #{_lambda_.4} parent=5 // pred_fallthru
      _
    %p137 = scmp.le.s32.totalorder 1, %s9
    %p138 = scmp.lt.s32.totalorder %s9, 3
    %p139 = pnand %p137, %p138
    %p140 = pneg %p139
    // Predicated region
    $region29: #{_lambda_.4} parent=5 // pred_check
      _
    $region30: #{_lambda_.4} parent=5 // pred_check_branch
      %142 = sbr.rel (%p139) target = $region32
    $region31: #{_lambda_.4} parent=5 // pred_region
      %s143 = ssub.s32 %s9, 1
      %s144 = smul.u32 2, %s14
      %p145 = scmp.lt.s32.totalorder %s144, 3
      %s146 = scalar_select %p145, %s144, 3
      %s147 = smul.addr %s146, 4
      %s148 = scalar_lea.vmem %s0, %s147
      %p149 = pneg %p35
      %p150 = pneg %p32
      %p151 = pneg %p56
      %p152 = pneg %p53
      %p153 = pneg %p77
      %p154 = pneg %p74
      %p155 = pneg %p103
      %p156 = pneg %p100
      %s157 = smul.u32 2, %s14
      %p158 = scmp.lt.s32.totalorder %s157, 3
      %s159 = scalar_select %p158, %s157, 3
      %s160 = smul.addr %s159, 4
      %s161 = scalar_lea.vmem %s3, %s160
      %s162 = smul.u32 2, %s14
      %p163 = scmp.lt.s32.totalorder %s162, 3
      %s164 = scalar_select %p163, %s162, 3
      %s165 = smul.addr %s164, 4
      %s166 = scalar_lea.vmem %s0, %s165
      %s167 = smul.u32 2, %s14
      %s168 = smul.u32 2, %s14
      %p169 = scmp.lt.s32.totalorder %s168, 3
      %s170 = scalar_select %p169, %s168, 3
      %s171 = smul.addr %s170, 4
      %s172 = scalar_lea.vmem %s3, %s171
      %s173 = smul.u32 2, %s14
      %v175 = vld [vmem:[%s166] sm:$0xf]
      %v176 = vld [vmem:[%s166 + $0x4] sm:$0xf]
      %v177 = vld [vmem:[%s1] sm:$0xf]
      %v178 = vld [vmem:[%s1 + $0x4] sm:$0xf]
      %v179 = vld [vmem:[%s1 + $0x8] sm:$0xf]
      %v180 = vld [vmem:[%s1 + $0xc] sm:$0xf]
      %v181 = vld [vmem:[%s1 + $0x10] sm:$0xf]
      %v182 = vld [vmem:[%s1 + $0x14] sm:$0xf]
      %v183 = vld [vmem:[%s1 + $0x18] sm:$0xf]
      %v184 = vld [vmem:[%s2] sm:$0x1]
      %v186 = vlaneseq
      %v187 = vshrl.u32 %v186, 7
      %v188 = vsub.s32 0, %v187
      %v189 = vrot.slane %v184, %v188
      %v193 = vunpack.c.l.b16 %v175
      %v194 = vunpack.c.l.b16 %v176
      %v195 = vpack.c.b16 %v194, %v193
      %v203 = vunpack.c.l.b16 %v177
      %v204 = vunpack.c.l.b16 %v178
      %v205 = vunpack.c.l.b16 %v179
      %v206 = vunpack.c.l.b16 %v180
      %v207 = vunpack.c.l.b16 %v181
      %v208 = vunpack.c.l.b16 %v182
      %v209 = vunpack.c.l.b16 %v183
      %v210 = vpack.c.b16 %v204, %v203
      %v211 = vpack.c.b16 %v206, %v205
      %v212 = vpack.c.b16 %v208, %v207
      %v213 = vpack.c.b16 %v209, %v209
      %vm217 = vcmask 457728
      %v219 = vsel %vm217, %v195, 0
      %vm221 = vcmask 1043456
      %v223 = vsel %vm221, %v213, 0
      %225 = vmatprep.subr.bf16.mxu0 0
      %226 = vmatpush1.bf16.msra.mxu0 %v210
      %227 = vmatprep.subr.bf16.mxu0 0
      %228 = vmatpush1.bf16.msra.mxu0 %v211
      %229 = vmatprep.subr.bf16.mxu0 0
      %230 = vmatpush1.bf16.msra.mxu0 %v212
      %231 = vmatprep.subr.bf16.mxu0 0
      %232 = vmatpush1.bf16.msra.mxu0 %v223
      %233 = vmatprep.subr.bf16.mxu0 0
      %234 = vmatpush1.bf16.msra.mxu0 0
      %235 = vmatprep.subr.bf16.mxu0 0
      %236 = vmatpush1.bf16.msra.mxu0 0
      %237 = vmatprep.subr.bf16.mxu0 0
      %238 = vmatpush1.bf16.msra.mxu0 0
      %239 = vmatprep.subr.bf16.mxu0 0
      %240 = vmatpush1.bf16.msra.mxu0 0
      %241 = vmatprep.subr.bf16.mxu0 0
      %242 = vmatpush1.bf16.msra.mxu0 0
      %243 = vmatprep.subr.bf16.mxu0 0
      %244 = vmatpush1.bf16.msra.mxu0 0
      %245 = vmatprep.subr.bf16.mxu0 0
      %246 = vmatpush1.bf16.msra.mxu0 0
      %247 = vmatprep.subr.bf16.mxu0 0
      %248 = vmatpush1.bf16.msra.mxu0 0
      %249 = vmatprep.subr.bf16.mxu0 0
      %250 = vmatpush1.bf16.msra.mxu0 0
      %251 = vmatprep.subr.bf16.mxu0 0
      %252 = vmatpush1.bf16.msra.mxu0 0
      %253 = vmatprep.subr.bf16.mxu0 0
      %254 = vmatpush1.bf16.msra.mxu0 0
      %255 = vmatprep.subr.bf16.mxu0 0
      %256 = vmatpush1.bf16.msra.mxu0 0
      %257 = vmatprep.mubr.bf16.mxu0 0
      %258 = vmatmul.mubr.bf16.gmra.mrb[0].mxu0 %v219
      %v259 = vpop.f32.mrb[0].mxu0
      %v260 = vadd.f32 %v189, %v259
      %v261 = vpop.f32.mrb[0].mxu0
      %v262 = vpop.f32.mrb[0].mxu0
      %v263 = vadd.f32 %v189, %v262
      %v264 = vpop.f32.mrb[0].mxu0
      %265 = vdwg.mxu0
      %v266 = vmax.f32 %v260, 0.0
      %v267 = vmax.f32 %v263, 0.0
      %v268 = vpack.c.bf16 %v267, %v266
      %v270 = vunpack.c.l.b16 %v268
      %v271 = vunpack.c.h.b16 %v268
      %v272 = vpack.c.b16 %v270, %v270
      %v273 = vpack.c.b16 %v271, %v271
      %276 = vst [vmem:[%s172] sm:$0xf] %v272
      %277 = vst [vmem:[%s172 + $0x4] sm:$0xf] %v273
      %s278 = smul.u32 2, %s14
      %p279 = scmp.lt.s32.totalorder %s278, 3
      %s280 = scalar_select %p279, %s278, 3
      %s281 = smul.addr %s280, 4
      %s282 = scalar_lea.vmem %s3, %s281
      // Predicated region
      $region33: #{_lambda_.4} parent=31 // pred_check
        %p283 = pneg %p100
      $region34: #{_lambda_.4} parent=31 // pred_check_branch
        %285 = sbr.rel (%p283) target = $region36
      $region35: #{_lambda_.4} parent=31 // pred_region
        %s286 = smul.u32 2, %s14
      $region36: #{_lambda_.4} parent=31 // pred_fallthru
        _
    $region32: #{_lambda_.4} parent=5 // pred_fallthru
      _
    %p287 = scmp.le.s32.totalorder 2, %s9
    // Predicated region
    $region37: #{_lambda_.4} parent=5 // pred_check
      %p288 = pneg %p287
    $region38: #{_lambda_.4} parent=5 // pred_check_branch
      %290 = sbr.rel (%p288) target = $region40
    $region39: #{_lambda_.4} parent=5 // pred_region
      %s291 = ssub.s32 %s9, 2
      // Predicated region
      $region41: #{_lambda_.4} parent=39 // pred_check
        %p292 = pneg %p106
      $region42: #{_lambda_.4} parent=39 // pred_check_branch
        %294 = sbr.rel (%p292) target = $region44
      $region43: #{_lambda_.4} parent=39 // pred_region
        %s295 = smul.u32 2, %s15
        %p296 = scmp.lt.s32.totalorder %s295, 3
        %s297 = scalar_select %p296, %s295, 3
        %s298 = smul.addr %s297, 4
        %s299 = scalar_lea.vmem %s3, %s298
      $region44: #{_lambda_.4} parent=39 // pred_fallthru
        _
    $region40: #{_lambda_.4} parent=5 // pred_fallthru
      _
  $region6: #{_lambda_.4} parent=0 // loop_footer
    %s13 = sadd.s32 1, %s9
  $region7: #{_lambda_.4} parent=0 // loop_footer_branch
    %8 = sbr.rel target = $region3
  $region8: #{_lambda_.4} parent=0 // loop_exit
    _

// kernel: _lambda_.6
$region0: #{_lambda_.6}
  #allocation0 [shape = 'u32[]', space=smem, size = 0x4, offset = 0x4, fixed_abs, tag = 'smem constant byte address 0x4 - core index']
  #allocation1 [shape = 'u32[144,128]{1,0:T(1,128)}', space=vmem, size = 0x12000, scoped, tag = 'internal scratch']
  #allocation2 [shape = 'bf16[1,24,128]{2,1,0:T(8,128)(2,1)}', space=vmem, size = 0x1800, scoped, tag = 'scratch operand']
  #allocation3 [shape = 'bf16[1,24,128]{2,1,0:T(8,128)(2,1)}', space=vmem, size = 0x1800, scoped, tag = 'scratch operand']
  #allocation4 [shape = 's32[1]{0}', space=sflag, size = 0x4, scoped, tag = 'scratch operand']
  #allocation5 [shape = 's32[]', space=sflag, size = 0x4, offset = 0, fixed_abs, tag = 'sflag constant byte address 0x0 - dummy sync flag']
  %s0 = inlined_call_operand.vmem [shape: bf16[2,1,24,128], index: 0, kind: input, shape index: {}]
  %s1 = inlined_call_operand.vmem [shape: bf16[128,128], index: 1, kind: input, shape index: {}]
  %s2 = inlined_call_operand.vmem [shape: f32[1,128], index: 2, kind: input, shape index: {}]
  %s3 = inlined_call_operand.vmem [shape: bf16[3,128,128], index: 3, kind: input, shape index: {}]
  %s4 = inlined_call_operand.vmem [shape: f32[1,128], index: 4, kind: input, shape index: {}]
  %s5 = inlined_call_operand.vmem [shape: bf16[128,128], index: 5, kind: input, shape index: {}]
  %s6 = inlined_call_operand.vmem [shape: f32[1,128], index: 6, kind: input, shape index: {}]
  %s7 = inlined_call_operand.vmem [shape: bf16[2,16,128], index: 7, kind: output, shape index: {}]
  %s8 = sld [smem:[#allocation0]]
  $region94: #{_lambda_.6} parent=0
    _
  %s10 = ssub.s32 1, %s8
  %s11 = scalar_select 0, %s10, %s8
  loop: start=0, step=1, limit=4
  $region2: #{_lambda_.6} parent=0 // loop_pre_header
    _
  $region3: #{_lambda_.6} parent=0 // loop_header
    %s13 = sphi 0, %s17
    %p14 = scmp.ge.s32.totalorder %s13, 4
    %s20 = sphi 0, %s32
    %s21 = sphi 0, %s28
    %s22 = sphi 0, %s20
    %s23 = sphi 0, %s21
    %s24 = sphi 0, %s22
    %s25 = sphi 0, %s23
    %s33 = sphi 0, %s33
    %s35 = sphi 0, %s33
    %s36 = sphi 0, %s35
    %s50 = sphi 0, %s36
    %s54 = sphi 0, %s54
    %s56 = sphi 0, %s54
    %s57 = sphi 0, %s56
    %s71 = sphi 0, %s57
    %s75 = sphi 0, %s75
    %s77 = sphi 0, %s75
    %s78 = sphi 0, %s77
    %s92 = sphi 0, %s78
    %s96 = sphi 0, %s96
    %s98 = sphi 0, %s96
    %s99 = sphi 0, %s98
    %s113 = sphi 0, %s99
    %s117 = sphi 0, %s117
    %s119 = sphi 0, %s117
    %s120 = sphi 0, %s119
    %s134 = sphi 0, %s120
    %s138 = sphi 0, %s138
    %s140 = sphi 0, %s138
    %s141 = sphi 0, %s140
    %s155 = sphi 0, %s141
    %s163 = sphi 0, %s165
    %s166 = sphi 0, %s163
    %s167 = sphi 0, %s166
    %s183 = sphi 0, %s167
  $region4: #{_lambda_.6} parent=0 // loop_header_branch
    %16 = sbr.rel (%p14) target = $region8
  $region5: #{_lambda_.6} parent=0 // loop_body
    %s18 = ssub.s32 %s13, 1
    %s19 = ssub.s32 %s13, 2
    %s26 = sadd.s32 1, %s21
    %p27 = scmp.ge.s32.totalorder %s26, 1
    %s28 = scalar_select %p27, 0, %s26
    %s29 = sadd.s32 1, %s20
    %s30 = scalar_select %p27, %s29, %s20
    %p31 = scmp.ge.s32.totalorder %s30, 2
    %s32 = scalar_select %p31, 0, %s30
    %s34 = sadd.s32 %s33, 1
    %p37 = scmp.eq.s32.totalorder %s13, 1
    %p38 = scmp.ne.s32.totalorder %s33, %s35
    %p39 = scmp.eq.s32.totalorder %s13, 0
    %p40 = por %p38, %p39
    %p41 = scmp.ne.s32.totalorder %s33, %s35
    %p42 = scmp.eq.s32.totalorder %s18, 1
    %p43 = por %p41, %p42
    %p44 = scmp.ne.s32.totalorder %s35, %s36
    %p45 = scmp.eq.s32.totalorder %s18, 0
    %p46 = por %p44, %p45
    %p47 = scmp.ne.s32.totalorder %s35, %s36
    %p48 = scmp.eq.s32.totalorder %s19, 1
    %p49 = por %p47, %p48
    %p51 = scmp.ne.s32.totalorder %s36, %s50
    %p52 = scmp.eq.s32.totalorder %s19, 0
    %p53 = por %p51, %p52
    %s55 = sadd.s32 %s54, 1
    %p58 = scmp.eq.s32.totalorder %s13, 1
    %p59 = scmp.ne.s32.totalorder %s54, %s56
    %p60 = scmp.eq.s32.totalorder %s13, 0
    %p61 = por %p59, %p60
    %p62 = scmp.ne.s32.totalorder %s54, %s56
    %p63 = scmp.eq.s32.totalorder %s18, 1
    %p64 = por %p62, %p63
    %p65 = scmp.ne.s32.totalorder %s56, %s57
    %p66 = scmp.eq.s32.totalorder %s18, 0
    %p67 = por %p65, %p66
    %p68 = scmp.ne.s32.totalorder %s56, %s57
    %p69 = scmp.eq.s32.totalorder %s19, 1
    %p70 = por %p68, %p69
    %p72 = scmp.ne.s32.totalorder %s57, %s71
    %p73 = scmp.eq.s32.totalorder %s19, 0
    %p74 = por %p72, %p73
    %s76 = sadd.s32 %s75, 1
    %p79 = scmp.eq.s32.totalorder %s13, 1
    %p80 = scmp.ne.s32.totalorder %s75, %s77
    %p81 = scmp.eq.s32.totalorder %s13, 0
    %p82 = por %p80, %p81
    %p83 = scmp.ne.s32.totalorder %s75, %s77
    %p84 = scmp.eq.s32.totalorder %s18, 1
    %p85 = por %p83, %p84
    %p86 = scmp.ne.s32.totalorder %s77, %s78
    %p87 = scmp.eq.s32.totalorder %s18, 0
    %p88 = por %p86, %p87
    %p89 = scmp.ne.s32.totalorder %s77, %s78
    %p90 = scmp.eq.s32.totalorder %s19, 1
    %p91 = por %p89, %p90
    %p93 = scmp.ne.s32.totalorder %s78, %s92
    %p94 = scmp.eq.s32.totalorder %s19, 0
    %p95 = por %p93, %p94
    %s97 = sadd.s32 %s96, 1
    %p100 = scmp.eq.s32.totalorder %s13, 1
    %p101 = scmp.ne.s32.totalorder %s96, %s98
    %p102 = scmp.eq.s32.totalorder %s13, 0
    %p103 = por %p101, %p102
    %p104 = scmp.ne.s32.totalorder %s96, %s98
    %p105 = scmp.eq.s32.totalorder %s18, 1
    %p106 = por %p104, %p105
    %p107 = scmp.ne.s32.totalorder %s98, %s99
    %p108 = scmp.eq.s32.totalorder %s18, 0
    %p109 = por %p107, %p108
    %p110 = scmp.ne.s32.totalorder %s98, %s99
    %p111 = scmp.eq.s32.totalorder %s19, 1
    %p112 = por %p110, %p111
    %p114 = scmp.ne.s32.totalorder %s99, %s113
    %p115 = scmp.eq.s32.totalorder %s19, 0
    %p116 = por %p114, %p115
    %s118 = sadd.s32 %s117, 1
    %p121 = scmp.eq.s32.totalorder %s13, 1
    %p122 = scmp.ne.s32.totalorder %s117, %s119
    %p123 = scmp.eq.s32.totalorder %s13, 0
    %p124 = por %p122, %p123
    %p125 = scmp.ne.s32.totalorder %s117, %s119
    %p126 = scmp.eq.s32.totalorder %s18, 1
    %p127 = por %p125, %p126
    %p128 = scmp.ne.s32.totalorder %s119, %s120
    %p129 = scmp.eq.s32.totalorder %s18, 0
    %p130 = por %p128, %p129
    %p131 = scmp.ne.s32.totalorder %s119, %s120
    %p132 = scmp.eq.s32.totalorder %s19, 1
    %p133 = por %p131, %p132
    %p135 = scmp.ne.s32.totalorder %s120, %s134
    %p136 = scmp.eq.s32.totalorder %s19, 0
    %p137 = por %p135, %p136
    %s139 = sadd.s32 %s138, 1
    %p142 = scmp.eq.s32.totalorder %s13, 1
    %p143 = scmp.ne.s32.totalorder %s138, %s140
    %p144 = scmp.eq.s32.totalorder %s13, 0
    %p145 = por %p143, %p144
    %p146 = scmp.ne.s32.totalorder %s138, %s140
    %p147 = scmp.eq.s32.totalorder %s18, 1
    %p148 = por %p146, %p147
    %p149 = scmp.ne.s32.totalorder %s140, %s141
    %p150 = scmp.eq.s32.totalorder %s18, 0
    %p151 = por %p149, %p150
    %p152 = scmp.ne.s32.totalorder %s140, %s141
    %p153 = scmp.eq.s32.totalorder %s19, 1
    %p154 = por %p152, %p153
    %p156 = scmp.ne.s32.totalorder %s141, %s155
    %p157 = scmp.eq.s32.totalorder %s19, 0
    %p158 = por %p156, %p157
    %s159 = ssub.s32 %s20, %s32
    %s160 = ssub.s32 %s21, %s28
    %s161 = sor.u32 %s159, %s160
    %p162 = scmp.eq.s32.totalorder %s161, 0
    %s164 = sadd.s32 %s163, 1
    %s165 = scalar_select %p162, %s163, %s164
    %p168 = pneg %p162
    %p169 = scmp.eq.s32.totalorder %s13, 1
    %p170 = por %p168, %p169
    %p171 = scmp.ne.s32.totalorder %s163, %s166
    %p172 = scmp.eq.s32.totalorder %s13, 0
    %p173 = por %p171, %p172
    %p174 = scmp.ne.s32.totalorder %s163, %s166
    %p175 = scmp.eq.s32.totalorder %s18, 1
    %p176 = por %p174, %p175
    %p177 = scmp.ne.s32.totalorder %s166, %s167
    %p178 = scmp.eq.s32.totalorder %s18, 0
    %p179 = por %p177, %p178
    %p180 = scmp.ne.s32.totalorder %s166, %s167
    %p181 = scmp.eq.s32.totalorder %s19, 1
    %p182 = por %p180, %p181
    %p184 = scmp.ne.s32.totalorder %s167, %s183
    %p185 = scmp.eq.s32.totalorder %s19, 0
    %p186 = por %p184, %p185
    %p187 = scmp.le.s32.totalorder 1, %s13
    %p188 = scmp.lt.s32.totalorder %s13, 3
    %p189 = pnand %p187, %p188
    %p190 = pneg %p189
    // Predicated region
    $region9: #{_lambda_.6} parent=5 // pred_check
      _
    $region10: #{_lambda_.6} parent=5 // pred_check_branch
      %192 = sbr.rel (%p189) target = $region12
    $region11: #{_lambda_.6} parent=5 // pred_region
      %s193 = ssub.s32 %s13, 1
      // Predicated region
      $region13: #{_lambda_.6} parent=11 // pred_check
        %p194 = pneg %p46
      $region14: #{_lambda_.6} parent=11 // pred_check_branch
        %196 = sbr.rel (%p194) target = $region16
      $region15: #{_lambda_.6} parent=11 // pred_region
        _
      $region16: #{_lambda_.6} parent=11 // pred_fallthru
        _
      // Predicated region
      $region17: #{_lambda_.6} parent=11 // pred_check
        %p197 = pneg %p67
      $region18: #{_lambda_.6} parent=11 // pred_check_branch
        %199 = sbr.rel (%p197) target = $region20
      $region19: #{_lambda_.6} parent=11 // pred_region
        _
      $region20: #{_lambda_.6} parent=11 // pred_fallthru
        _
      // Predicated region
      $region21: #{_lambda_.6} parent=11 // pred_check
        %p200 = pneg %p88
      $region22: #{_lambda_.6} parent=11 // pred_check_branch
        %202 = sbr.rel (%p200) target = $region24
      $region23: #{_lambda_.6} parent=11 // pred_region
        _
      $region24: #{_lambda_.6} parent=11 // pred_fallthru
        _
      // Predicated region
      $region25: #{_lambda_.6} parent=11 // pred_check
        %p203 = pneg %p109
      $region26: #{_lambda_.6} parent=11 // pred_check_branch
        %205 = sbr.rel (%p203) target = $region28
      $region27: #{_lambda_.6} parent=11 // pred_region
        _
      $region28: #{_lambda_.6} parent=11 // pred_fallthru
        _
      // Predicated region
      $region29: #{_lambda_.6} parent=11 // pred_check
        %p206 = pneg %p130
      $region30: #{_lambda_.6} parent=11 // pred_check_branch
        %208 = sbr.rel (%p206) target = $region32
      $region31: #{_lambda_.6} parent=11 // pred_region
        _
      $region32: #{_lambda_.6} parent=11 // pred_fallthru
        _
      // Predicated region
      $region33: #{_lambda_.6} parent=11 // pred_check
        %p209 = pneg %p151
      $region34: #{_lambda_.6} parent=11 // pred_check_branch
        %211 = sbr.rel (%p209) target = $region36
      $region35: #{_lambda_.6} parent=11 // pred_region
        _
      $region36: #{_lambda_.6} parent=11 // pred_fallthru
        _
    $region12: #{_lambda_.6} parent=5 // pred_fallthru
      _
    %p212 = scmp.lt.s32.totalorder %s13, 2
    // Predicated region
    $region37: #{_lambda_.6} parent=5 // pred_check
      %p213 = pneg %p212
    $region38: #{_lambda_.6} parent=5 // pred_check_branch
      %215 = sbr.rel (%p213) target = $region40
    $region39: #{_lambda_.6} parent=5 // pred_region
      _
    $region40: #{_lambda_.6} parent=5 // pred_fallthru
      _
    %p216 = scmp.le.s32.totalorder 1, %s13
    %p217 = scmp.lt.s32.totalorder %s13, 3
    %p218 = pnand %p216, %p217
    %p219 = pneg %p218
    // Predicated region
    $region41: #{_lambda_.6} parent=5 // pred_check
      _
    $region42: #{_lambda_.6} parent=5 // pred_check_branch
      %221 = sbr.rel (%p218) target = $region44
    $region43: #{_lambda_.6} parent=5 // pred_region
      %s222 = ssub.s32 %s13, 1
      %p223 = pneg %p46
      %p224 = pneg %p43
      %p225 = pneg %p67
      %p226 = pneg %p64
      %p227 = pneg %p88
      %p228 = pneg %p85
      %p229 = pneg %p109
      %p230 = pneg %p106
      %p231 = pneg %p130
      %p232 = pneg %p127
      %p233 = pneg %p151
      %p234 = pneg %p148
      %p235 = pneg %p179
      %p236 = pneg %p176
      %s237 = smul.u32 2, %s23
      %p238 = scmp.lt.s32.totalorder %s22, 1
      %s239 = scalar_select %p238, %s22, 1
      %p240 = scmp.lt.s32.totalorder %s237, 1
      %s241 = scalar_select %p240, %s237, 1
      %s242 = smul.addr %s239, 2
      %s243 = sadd.s32 %s241, %s242
      %s244 = smul.addr %s243, 4
      %s245 = scalar_lea.vmem %s7, %s244
      %s246 = smul.u32 2, %s23
      %p247 = scmp.lt.s32.totalorder %s22, 1
      %s248 = scalar_select %p247, %s22, 1
      %p249 = scmp.lt.s32.totalorder %s246, 1
      %s250 = scalar_select %p249, %s246, 1
      %s251 = smul.addr %s248, 2
      %s252 = sadd.s32 %s250, %s251
      %s253 = smul.addr %s252, 4
      %s254 = scalar_lea.vmem %s7, %s253
      %s255 = smul.u32 2, %s23
      %s257 = smul.u32 %s23, 16
      %s258 = sshra.s32 %s257, 3
      %s259 = sand.u32 %s257, 7
      %s260 = smul.u32 %s22, 3
      %s261 = sadd.s32 %s258, %s260
      %s262 = smul.addr %s261, 4
      %s263 = scalar_lea.vmem %s0, %s262
      %p265 = scmp.lt.u32.totalorder 12, 8
      %p266 = pneg %p265
      // Predicated region
      $region45: #{_lambda_.6} parent=43 // pred_check
        _
      $region46: #{_lambda_.6} parent=43 // pred_check_branch
        %268 = sbr.rel (%p265) target = $region48
      $region47: #{_lambda_.6} parent=43 // pred_region
        %s283 = sand.u32 12, 7
        %p284 = scmp.eq.s32.totalorder %s283, 0
        %p285 = pneg %p284
        // Predicated region
        $region60: #{_lambda_.6} parent=47 // pred_check
          _
        $region61: #{_lambda_.6} parent=47 // pred_check_branch
          %287 = sbr.rel (%p284) target = $region63
        $region62: #{_lambda_.6} parent=47 // pred_region
          %s288 = sand.u32 12, 7
          %s289 = ssub.s32 12, %s288
          %s290 = scalar_lea.vmem %s263, %s289
          %s291 = ssub.s32 12, %s288
          %s292 = scalar_lea.vmem [#allocation2], %s291
          loop: start=0, step=1, limit=1
          $region64: #{_lambda_.6} parent=62 // loop_pre_header
            _
          $region65: #{_lambda_.6} parent=62 // loop_header
            %s294 = sphi 0, %s298
            %p295 = scmp.ge.s32.totalorder %s294, 1
            %s299 = sphi %s263, %s263
            %s300 = sphi [#allocation2], [#allocation2]
          $region66: #{_lambda_.6} parent=62 // loop_header_branch
            %297 = sbr.rel (%p295) target = $region70
          $region67: #{_lambda_.6} parent=62 // loop_body
            %v301 = vld [vmem:[%s299] sm:$0xff]
            %302 = vst [vmem:[%s300] sm:$0xff] %v301
          $region68: #{_lambda_.6} parent=62 // loop_footer
            %s298 = sadd.s32 1, %s294
          $region69: #{_lambda_.6} parent=62 // loop_footer_branch
            %293 = sbr.rel target = $region65
          $region70: #{_lambda_.6} parent=62 // loop_exit
            _
          %s303 = sshllo.u32 0, %s288
          loop: start=0, step=1, limit=1
          $region71: #{_lambda_.6} parent=62 // loop_pre_header
            _
          $region72: #{_lambda_.6} parent=62 // loop_header
            %s305 = sphi 0, %s309
            %p306 = scmp.ge.s32.totalorder %s305, 1
            %s310 = sphi %s290, %s290
            %s311 = sphi %s292, %s292
          $region73: #{_lambda_.6} parent=62 // loop_header_branch
            %308 = sbr.rel (%p306) target = $region77
          $region74: #{_lambda_.6} parent=62 // loop_body
            %v312 = vld [vmem:[%s310] sm:%s303]
            %313 = vst [vmem:[%s311] sm:%s303] %v312
          $region75: #{_lambda_.6} parent=62 // loop_footer
            %s309 = sadd.s32 1, %s305
          $region76: #{_lambda_.6} parent=62 // loop_footer_branch
            %304 = sbr.rel target = $region72
          $region77: #{_lambda_.6} parent=62 // loop_exit
            _
        $region63: #{_lambda_.6} parent=47 // pred_fallthru
          _
      $region48: #{_lambda_.6} parent=43 // pred_fallthru
        _
      // Predicated region
      $region49: #{_lambda_.6} parent=43 // pred_check
        %p269 = pneg %p265
      $region50: #{_lambda_.6} parent=43 // pred_check_branch
        %271 = sbr.rel (%p269) target = $region52
      $region51: #{_lambda_.6} parent=43 // pred_region
        %s272 = sshllo.u32 0, 12
        loop: start=0, step=1, limit=1
        $region53: #{_lambda_.6} parent=51 // loop_pre_header
          _
        $region54: #{_lambda_.6} parent=51 // loop_header
          %s274 = sphi 0, %s278
          %p275 = scmp.ge.s32.totalorder %s274, 1
          %s279 = sphi %s263, %s263
          %s280 = sphi [#allocation2], [#allocation2]
        $region55: #{_lambda_.6} parent=51 // loop_header_branch
          %277 = sbr.rel (%p275) target = $region59
        $region56: #{_lambda_.6} parent=51 // loop_body
          %v281 = vld [vmem:[%s279] sm:%s272]
          %282 = vst [vmem:[%s280] sm:%s272] %v281
        $region57: #{_lambda_.6} parent=51 // loop_footer
          %s278 = sadd.s32 1, %s274
        $region58: #{_lambda_.6} parent=51 // loop_footer_branch
          %273 = sbr.rel target = $region54
        $region59: #{_lambda_.6} parent=51 // loop_exit
          _
      $region52: #{_lambda_.6} parent=43 // pred_fallthru
        _
      // Predicated region
      $region78: #{_lambda_.6} parent=43 // pred_check
        _
      $region79: #{_lambda_.6} parent=43 // pred_check_branch
        %316 = sbr.rel (0) target = $region81
      $region80: #{_lambda_.6} parent=43 // pred_region
        %317 = vsyncadd [#allocation4], 192
      $region81: #{_lambda_.6} parent=43 // pred_fallthru
        _
      %s318 = smul.u32 4, 1
      %s319 = smul.u32 %s318, 3
      %s320 = smul.u32 %s319, 1
      %s321 = sshll.u32 %s320, 4
      %322 = dma.done [#allocation4], %s321
      %v323 = vlaneseq
      %v324 = vshrl.u32 %v323, 7
      %v325 = vadd.s32 %v324, 8
      %v326 = vadd.s32 %v324, 16
      %v327 = vstv %s257
      %v328 = vadd.s32 %v324, %v327
      %v329 = vadd.s32 %v325, %v327
      %v330 = vadd.s32 %v326, %v327
      %vm331 = vcmp.ge.s32.totalorder %v328, 1
      %vm332 = vcmp.ge.s32.totalorder %v329, 1
      %vm333 = vcmp.ge.s32.totalorder %v330, 1
      %vm334 = vcmp.lt.s32.totalorder %v328, 17
      %vm335 = vcmp.lt.s32.totalorder %v329, 17
      %vm336 = vcmp.lt.s32.totalorder %v330, 17
      %vm337 = vmand %vm331, %vm334
      %vm338 = vmand %vm332, %vm335
      %vm339 = vmand %vm333, %vm336
      %v340 = vld [vmem:[#allocation2] sm:$0xf]
      %v341 = vld [vmem:[#allocation2 + $0x4] sm:$0xf]
      %v342 = vld [vmem:[#allocation2 + $0x8] sm:$0xf]
      %v343 = vld [vmem:[%s1] sm:$0xf]
      %v344 = vld [vmem:[%s1 + $0x4] sm:$0xf]
      %v345 = vld [vmem:[%s1 + $0x8] sm:$0xf]
      %v346 = vld [vmem:[%s1 + $0xc] sm:$0xf]
      %v347 = vld [vmem:[%s1 + $0x10] sm:$0xf]
      %v348 = vld [vmem:[%s1 + $0x14] sm:$0xf]
      %v349 = vld [vmem:[%s1 + $0x18] sm:$0xf]
      %v350 = vld [vmem:[%s1 + $0x1c] sm:$0xf]
      %v351 = vld [vmem:[%s1 + $0x20] sm:$0xf]
      %v352 = vld [vmem:[%s1 + $0x24] sm:$0xf]
      %v353 = vld [vmem:[%s1 + $0x28] sm:$0xf]
      %v354 = vld [vmem:[%s1 + $0x2c] sm:$0xf]
      %v355 = vld [vmem:[%s1 + $0x30] sm:$0xf]
      %v356 = vld [vmem:[%s1 + $0x34] sm:$0xf]
      %v357 = vld [vmem:[%s1 + $0x38] sm:$0xf]
      %v358 = vld [vmem:[%s1 + $0x3c] sm:$0xf]
      %v359 = vld [vmem:[%s2] sm:$0x1]
      %v361 = vlaneseq
      %v362 = vshrl.u32 %v361, 7
      %v363 = vsub.s32 0, %v362
      %v364 = vrot.slane %v359, %v363
      %v369 = vunpack.c.l.b16 %v340
      %v370 = vunpack.c.l.b16 %v341
      %v371 = vunpack.c.l.b16 %v342
      %v372 = vpack.c.b16 %v370, %v369
      %v373 = vpack.c.b16 %v371, %v371
      %v392 = vunpack.c.l.b16 %v343
      %v393 = vunpack.c.l.b16 %v344
      %v394 = vunpack.c.l.b16 %v345
      %v395 = vunpack.c.l.b16 %v346
      %v396 = vunpack.c.l.b16 %v347
      %v397 = vunpack.c.l.b16 %v348
      %v398 = vunpack.c.l.b16 %v349
      %v399 = vunpack.c.l.b16 %v350
      %v400 = vunpack.c.l.b16 %v351
      %v401 = vunpack.c.l.b16 %v352
      %v402 = vunpack.c.l.b16 %v353
      %v403 = vunpack.c.l.b16 %v354
      %v404 = vunpack.c.l.b16 %v355
      %v405 = vunpack.c.l.b16 %v356
      %v406 = vunpack.c.l.b16 %v357
      %v407 = vunpack.c.l.b16 %v358
      %v408 = vpack.c.b16 %v393, %v392
      %v409 = vpack.c.b16 %v395, %v394
      %v410 = vpack.c.b16 %v397, %v396
      %v411 = vpack.c.b16 %v399, %v398
      %v412 = vpack.c.b16 %v401, %v400
      %v413 = vpack.c.b16 %v403, %v402
      %v414 = vpack.c.b16 %v405, %v404
      %v415 = vpack.c.b16 %v407, %v406
      %424 = vmatprep.subr.bf16.mxu0 0
      %425 = vmatpush1.bf16.msra.mxu0 %v408
      %426 = vmatprep.subr.bf16.mxu0 0
      %427 = vmatpush1.bf16.msra.mxu0 %v409
      %428 = vmatprep.subr.bf16.mxu0 0
      %429 = vmatpush1.bf16.msra.mxu0 %v410
      %430 = vmatprep.subr.bf16.mxu0 0
      %431 = vmatpush1.bf16.msra.mxu0 %v411
      %432 = vmatprep.subr.bf16.mxu0 0
      %433 = vmatpush1.bf16.msra.mxu0 %v412
      %434 = vmatprep.subr.bf16.mxu0 0
      %435 = vmatpush1.bf16.msra.mxu0 %v413
      %436 = vmatprep.subr.bf16.mxu0 0
      %437 = vmatpush1.bf16.msra.mxu0 %v414
      %438 = vmatprep.subr.bf16.mxu0 0
      %439 = vmatpush1.bf16.msra.mxu0 %v415
      %440 = vmatprep.subr.bf16.mxu0 0
      %441 = vmatpush1.bf16.msra.mxu0 0
      %442 = vmatprep.subr.bf16.mxu0 0
      %443 = vmatpush1.bf16.msra.mxu0 0
      %444 = vmatprep.subr.bf16.mxu0 0
      %445 = vmatpush1.bf16.msra.mxu0 0
      %446 = vmatprep.subr.bf16.mxu0 0
      %447 = vmatpush1.bf16.msra.mxu0 0
      %448 = vmatprep.subr.bf16.mxu0 0
      %449 = vmatpush1.bf16.msra.mxu0 0
      %450 = vmatprep.subr.bf16.mxu0 0
      %451 = vmatpush1.bf16.msra.mxu0 0
      %452 = vmatprep.subr.bf16.mxu0 0
      %453 = vmatpush1.bf16.msra.mxu0 0
      %454 = vmatprep.subr.bf16.mxu0 0
      %455 = vmatpush1.bf16.msra.mxu0 0
      %456 = vmatprep.mubr.bf16.mxu0 0
      %457 = vmatmul.mubr.bf16.gmra.mrb[0].mxu0 %v372
      %v458 = vpop.f32.mrb[0].mxu0
      %v459 = vadd.f32 %v364, %v458
      %v460 = vpop.f32.mrb[0].mxu0
      %v461 = vpop.f32.mrb[0].mxu0
      %v462 = vadd.f32 %v364, %v461
      %v463 = vpop.f32.mrb[0].mxu0
      %464 = vmatprep.mubr.bf16.mxu0 0
      %465 = vmatmul.mubr.bf16.gmra.mrb[0].mxu0 %v373
      %v466 = vpop.f32.mrb[0].mxu0
      %v467 = vadd.f32 %v364, %v466
      %v468 = vpop.f32.mrb[0].mxu0
      %v469 = vpop.f32.mrb[0].mxu0
      %v470 = vpop.f32.mrb[0].mxu0
      %471 = vdwg.mxu0
      %v472 = vmax.f32 %v459, 0.0
      %v473 = vmax.f32 %v462, 0.0
      %v474 = vmax.f32 %v467, 0.0
      %v475 = vsel %vm337, 1, 0
      %v476 = vsel %vm338, 1, 0
      %v477 = vsel %vm339, 1, 0
      %vm478 = vcmp.eq.s32.totalorder %v475, 1
      %vm479 = vcmp.eq.s32.totalorder %v476, 1
      %vm480 = vcmp.eq.s32.totalorder %v477, 1
      %v481 = vsel %vm478, %v472, 0.0
      %v482 = vsel %vm479, %v473, 0.0
      %v483 = vsel %vm480, %v474, 0.0
      %v484 = vpack.c.bf16 %v482, %v481
      %v485 = vpack.c.bf16 %v483, %v483
      %v488 = vunpack.c.l.b16 %v484
      %v489 = vunpack.c.h.b16 %v484
      %v490 = vunpack.c.l.b16 %v485
      %v491 = vpack.c.b16 %v488, %v488
      %v492 = vpack.c.b16 %v489, %v489
      %v493 = vpack.c.b16 %v490, %v490
      %497 = vst [vmem:[#allocation3] sm:$0xf] %v491
      %498 = vst [vmem:[#allocation3 + $0x4] sm:$0xf] %v492
      %499 = vst [vmem:[#allocation3 + $0x8] sm:$0xf] %v493
      %v500 = vld [vmem:[#allocation3] sm:$0xf]
      %v501 = vld [vmem:[#allocation3 + $0x4] sm:$0xf]
      %v502 = vld [vmem:[%s3] sm:$0xf]
      %v503 = vld [vmem:[%s3 + $0x4] sm:$0xf]
      %v504 = vld [vmem:[%s3 + $0x8] sm:$0xf]
      %v505 = vld [vmem:[%s3 + $0xc] sm:$0xf]
      %v506 = vld [vmem:[%s3 + $0x10] sm:$0xf]
      %v507 = vld [vmem:[%s3 + $0x14] sm:$0xf]
      %v508 = vld [vmem:[%s3 + $0x18] sm:$0xf]
      %v509 = vld [vmem:[%s3 + $0x1c] sm:$0xf]
      %v510 = vld [vmem:[%s3 + $0x20] sm:$0xf]
      %v511 = vld [vmem:[%s3 + $0x24] sm:$0xf]
      %v512 = vld [vmem:[%s3 + $0x28] sm:$0xf]
      %v513 = vld [vmem:[%s3 + $0x2c] sm:$0xf]
      %v514 = vld [vmem:[%s3 + $0x30] sm:$0xf]
      %v515 = vld [vmem:[%s3 + $0x34] sm:$0xf]
      %v516 = vld [vmem:[%s3 + $0x38] sm:$0xf]
      %v517 = vld [vmem:[%s3 + $0x3c] sm:$0xf]
      %v518 = vld [vmem:[#allocation3] sm:$0xf]
      %v519 = vld [vmem:[#allocation3 + $0x4] sm:$0xf]
      %v520 = vld [vmem:[#allocation3 + $0x8] sm:$0x1]
      %s521 = scalar_lea.vmem %s3, 64
      %v522 = vld [vmem:[%s521] sm:$0xf]
      %v523 = vld [vmem:[%s521 + $0x4] sm:$0xf]
      %v524 = vld [vmem:[%s521 + $0x8] sm:$0xf]
      %v525 = vld [vmem:[%s521 + $0xc] sm:$0xf]
      %v526 = vld [vmem:[%s521 + $0x10] sm:$0xf]
      %v527 = vld [vmem:[%s521 + $0x14] sm:$0xf]
      %v528 = vld [vmem:[%s521 + $0x18] sm:$0xf]
      %v529 = vld [vmem:[%s521 + $0x1c] sm:$0xf]
      %v530 = vld [vmem:[%s521 + $0x20] sm:$0xf]
      %v531 = vld [vmem:[%s521 + $0x24] sm:$0xf]
      %v532 = vld [vmem:[%s521 + $0x28] sm:$0xf]
      %v533 = vld [vmem:[%s521 + $0x2c] sm:$0xf]
      %v534 = vld [vmem:[%s521 + $0x30] sm:$0xf]
      %v535 = vld [vmem:[%s521 + $0x34] sm:$0xf]
      %v536 = vld [vmem:[%s521 + $0x38] sm:$0xf]
      %v537 = vld [vmem:[%s521 + $0x3c] sm:$0xf]
      %v541 = vunpack.c.l.b16 %v518
      %v542 = vunpack.c.l.b16 %v519
      %v543 = vunpack.c.l.b16 %v520
      %v544 = vpack.c.b16 %v542, %v541
      %v545 = vpack.c.b16 %v543, %v543
      %vm546 = vsmask.f32 7424
      %v548 = vshrl.u32 %v544, 16
      %v550 = vshll.u32 %v544, 16
      %v552 = vrot.slane %v550, 1
      %v553 = vor.u32 %v548, %v552
      %v555 = vshll.u32 %v545, 16
      %v557 = vrot.slane %v555, 1
      %v558 = vsel %vm546, %v553, %v557
      %v576 = vunpack.c.l.b16 %v522
      %v577 = vunpack.c.l.b16 %v523
      %v578 = vunpack.c.l.b16 %v524
      %v579 = vunpack.c.l.b16 %v525
      %v580 = vunpack.c.l.b16 %v526
      %v581 = vunpack.c.l.b16 %v527
      %v582 = vunpack.c.l.b16 %v528
      %v583 = vunpack.c.l.b16 %v529
      %v584 = vunpack.c.l.b16 %v530
      %v585 = vunpack.c.l.b16 %v531
      %v586 = vunpack.c.l.b16 %v532
      %v587 = vunpack.c.l.b16 %v533
      %v588 = vunpack.c.l.b16 %v534
      %v589 = vunpack.c.l.b16 %v535
      %v590 = vunpack.c.l.b16 %v536
      %v591 = vunpack.c.l.b16 %v537
      %v592 = vpack.c.b16 %v577, %v576
      %v593 = vpack.c.b16 %v579, %v578
      %v594 = vpack.c.b16 %v581, %v580
      %v595 = vpack.c.b16 %v583, %v582
      %v596 = vpack.c.b16 %v585, %v584
      %v597 = vpack.c.b16 %v587, %v586
      %v598 = vpack.c.b16 %v589, %v588
      %v599 = vpack.c.b16 %v591, %v590
      %608 = vmatprep.subr.bf16.mxu0 0
      %609 = vmatpush1.bf16.msra.mxu0 %v592
      %610 = vmatprep.subr.bf16.mxu0 0
      %611 = vmatpush1.bf16.msra.mxu0 %v593
      %612 = vmatprep.subr.bf16.mxu0 0
      %613 = vmatpush1.bf16.msra.mxu0 %v594
      %614 = vmatprep.subr.bf16.mxu0 0
      %615 = vmatpush1.bf16.msra.mxu0 %v595
      %616 = vmatprep.subr.bf16.mxu0 0
      %617 = vmatpush1.bf16.msra.mxu0 %v596
      %618 = vmatprep.subr.bf16.mxu0 0
      %619 = vmatpush1.bf16.msra.mxu0 %v597
      %620 = vmatprep.subr.bf16.mxu0 0
      %621 = vmatpush1.bf16.msra.mxu0 %v598
      %622 = vmatprep.subr.bf16.mxu0 0
      %623 = vmatpush1.bf16.msra.mxu0 %v599
      %624 = vmatprep.subr.bf16.mxu0 0
      %625 = vmatpush1.bf16.msra.mxu0 0
      %626 = vmatprep.subr.bf16.mxu0 0
      %627 = vmatpush1.bf16.msra.mxu0 0
      %628 = vmatprep.subr.bf16.mxu0 0
      %629 = vmatpush1.bf16.msra.mxu0 0
      %630 = vmatprep.subr.bf16.mxu0 0
      %631 = vmatpush1.bf16.msra.mxu0 0
      %632 = vmatprep.subr.bf16.mxu0 0
      %633 = vmatpush1.bf16.msra.mxu0 0
      %634 = vmatprep.subr.bf16.mxu0 0
      %635 = vmatpush1.bf16.msra.mxu0 0
      %636 = vmatprep.subr.bf16.mxu0 0
      %637 = vmatpush1.bf16.msra.mxu0 0
      %638 = vmatprep.subr.bf16.mxu0 0
      %639 = vmatpush1.bf16.msra.mxu0 0
      %640 = vmatprep.mubr.bf16.mxu0 0
      %641 = vmatmul.mubr.bf16.gmra.mrb[0].mxu0 %v558
      %v642 = vpop.f32.mrb[0].mxu0
      %v643 = vadd.f32 0.0, %v642
      %v644 = vpop.f32.mrb[0].mxu0
      %v645 = vpop.f32.mrb[0].mxu0
      %v646 = vadd.f32 0.0, %v645
      %v647 = vpop.f32.mrb[0].mxu0
      %648 = vdwg.mxu0
      %v651 = vunpack.c.l.b16 %v500
      %v652 = vunpack.c.l.b16 %v501
      %v653 = vpack.c.b16 %v652, %v651
      %v671 = vunpack.c.l.b16 %v502
      %v672 = vunpack.c.l.b16 %v503
      %v673 = vunpack.c.l.b16 %v504
      %v674 = vunpack.c.l.b16 %v505
      %v675 = vunpack.c.l.b16 %v506
      %v676 = vunpack.c.l.b16 %v507
      %v677 = vunpack.c.l.b16 %v508
      %v678 = vunpack.c.l.b16 %v509
      %v679 = vunpack.c.l.b16 %v510
      %v680 = vunpack.c.l.b16 %v511
      %v681 = vunpack.c.l.b16 %v512
      %v682 = vunpack.c.l.b16 %v513
      %v683 = vunpack.c.l.b16 %v514
      %v684 = vunpack.c.l.b16 %v515
      %v685 = vunpack.c.l.b16 %v516
      %v686 = vunpack.c.l.b16 %v517
      %v687 = vpack.c.b16 %v672, %v671
      %v688 = vpack.c.b16 %v674, %v673
      %v689 = vpack.c.b16 %v676, %v675
      %v690 = vpack.c.b16 %v678, %v677
      %v691 = vpack.c.b16 %v680, %v679
      %v692 = vpack.c.b16 %v682, %v681
      %v693 = vpack.c.b16 %v684, %v683
      %v694 = vpack.c.b16 %v686, %v685
      %703 = vmatprep.subr.bf16.mxu0 0
      %704 = vmatpush1.bf16.msra.mxu0 %v687
      %705 = vmatprep.subr.bf16.mxu0 0
      %706 = vmatpush1.bf16.msra.mxu0 %v688
      %707 = vmatprep.subr.bf16.mxu0 0
      %708 = vmatpush1.bf16.msra.mxu0 %v689
      %709 = vmatprep.subr.bf16.mxu0 0
      %710 = vmatpush1.bf16.msra.mxu0 %v690
      %711 = vmatprep.subr.bf16.mxu0 0
      %712 = vmatpush1.bf16.msra.mxu0 %v691
      %713 = vmatprep.subr.bf16.mxu0 0
      %714 = vmatpush1.bf16.msra.mxu0 %v692
      %715 = vmatprep.subr.bf16.mxu0 0
      %716 = vmatpush1.bf16.msra.mxu0 %v693
      %717 = vmatprep.subr.bf16.mxu0 0
      %718 = vmatpush1.bf16.msra.mxu0 %v694
      %719 = vmatprep.subr.bf16.mxu0 0
      %720 = vmatpush1.bf16.msra.mxu0 0
      %721 = vmatprep.subr.bf16.mxu0 0
      %722 = vmatpush1.bf16.msra.mxu0 0
      %723 = vmatprep.subr.bf16.mxu0 0
      %724 = vmatpush1.bf16.msra.mxu0 0
      %725 = vmatprep.subr.bf16.mxu0 0
      %726 = vmatpush1.bf16.msra.mxu0 0
      %727 = vmatprep.subr.bf16.mxu0 0
      %728 = vmatpush1.bf16.msra.mxu0 0
      %729 = vmatprep.subr.bf16.mxu0 0
      %730 = vmatpush1.bf16.msra.mxu0 0
      %731 = vmatprep.subr.bf16.mxu0 0
      %732 = vmatpush1.bf16.msra.mxu0 0
      %733 = vmatprep.subr.bf16.mxu0 0
      %734 = vmatpush1.bf16.msra.mxu0 0
      %735 = vmatprep.mubr.bf16.mxu0 0
      %736 = vmatmul.mubr.bf16.gmra.mrb[0].mxu0 %v653
      %v737 = vpop.f32.mrb[0].mxu0
      %v738 = vadd.f32 %v643, %v737
      %v739 = vpop.f32.mrb[0].mxu0
      %v740 = vpop.f32.mrb[0].mxu0
      %v741 = vadd.f32 %v646, %v740
      %v742 = vpop.f32.mrb[0].mxu0
      %743 = vdwg.mxu0
      %v744 = vld [vmem:[#allocation3] sm:$0xe]
      %s745 = scalar_lea.vmem %s3, 128
      %v746 = vld [vmem:[%s745] sm:$0xf]
      %v747 = vld [vmem:[%s745 + $0x4] sm:$0xf]
      %v748 = vld [vmem:[%s745 + $0x8] sm:$0xf]
      %v749 = vld [vmem:[%s745 + $0xc] sm:$0xf]
      %v750 = vld [vmem:[%s745 + $0x10] sm:$0xf]
      %v751 = vld [vmem:[%s745 + $0x14] sm:$0xf]
      %v752 = vld [vmem:[%s745 + $0x18] sm:$0xf]
      %v753 = vld [vmem:[%s745 + $0x1c] sm:$0xf]
      %v754 = vld [vmem:[%s745 + $0x20] sm:$0xf]
      %v755 = vld [vmem:[%s745 + $0x24] sm:$0xf]
      %v756 = vld [vmem:[%s745 + $0x28] sm:$0xf]
      %v757 = vld [vmem:[%s745 + $0x2c] sm:$0xf]
      %v758 = vld [vmem:[%s745 + $0x30] sm:$0xf]
      %v759 = vld [vmem:[%s745 + $0x34] sm:$0xf]
      %v760 = vld [vmem:[%s745 + $0x38] sm:$0xf]
      %v761 = vld [vmem:[%s745 + $0x3c] sm:$0xf]
      %v763 = vunpack.c.l.b16 %v744
      %v764 = vpack.c.b16 %v542, %v763
      %vm765 = vcmask 1046528
      %v766 = vrot.slane %v764, 1
      %v767 = vrot.slane %v545, 1
      %v768 = vsel %vm765, %v766, %v767
      %v786 = vunpack.c.l.b16 %v746
      %v787 = vunpack.c.l.b16 %v747
      %v788 = vunpack.c.l.b16 %v748
      %v789 = vunpack.c.l.b16 %v749
      %v790 = vunpack.c.l.b16 %v750
      %v791 = vunpack.c.l.b16 %v751
      %v792 = vunpack.c.l.b16 %v752
      %v793 = vunpack.c.l.b16 %v753
      %v794 = vunpack.c.l.b16 %v754
      %v795 = vunpack.c.l.b16 %v755
      %v796 = vunpack.c.l.b16 %v756
      %v797 = vunpack.c.l.b16 %v757
      %v798 = vunpack.c.l.b16 %v758
      %v799 = vunpack.c.l.b16 %v759
      %v800 = vunpack.c.l.b16 %v760
      %v801 = vunpack.c.l.b16 %v761
      %v802 = vpack.c.b16 %v787, %v786
      %v803 = vpack.c.b16 %v789, %v788
      %v804 = vpack.c.b16 %v791, %v790
      %v805 = vpack.c.b16 %v793, %v792
      %v806 = vpack.c.b16 %v795, %v794
      %v807 = vpack.c.b16 %v797, %v796
      %v808 = vpack.c.b16 %v799, %v798
      %v809 = vpack.c.b16 %v801, %v800
      %818 = vmatprep.subr.bf16.mxu0 0
      %819 = vmatpush1.bf16.msra.mxu0 %v802
      %820 = vmatprep.subr.bf16.mxu0 0
      %821 = vmatpush1.bf16.msra.mxu0 %v803
      %822 = vmatprep.subr.bf16.mxu0 0
      %823 = vmatpush1.bf16.msra.mxu0 %v804
      %824 = vmatprep.subr.bf16.mxu0 0
      %825 = vmatpush1.bf16.msra.mxu0 %v805
      %826 = vmatprep.subr.bf16.mxu0 0
      %827 = vmatpush1.bf16.msra.mxu0 %v806
      %828 = vmatprep.subr.bf16.mxu0 0
      %829 = vmatpush1.bf16.msra.mxu0 %v807
      %830 = vmatprep.subr.bf16.mxu0 0
      %831 = vmatpush1.bf16.msra.mxu0 %v808
      %832 = vmatprep.subr.bf16.mxu0 0
      %833 = vmatpush1.bf16.msra.mxu0 %v809
      %834 = vmatprep.subr.bf16.mxu0 0
      %835 = vmatpush1.bf16.msra.mxu0 0
      %836 = vmatprep.subr.bf16.mxu0 0
      %837 = vmatpush1.bf16.msra.mxu0 0
      %838 = vmatprep.subr.bf16.mxu0 0
      %839 = vmatpush1.bf16.msra.mxu0 0
      %840 = vmatprep.subr.bf16.mxu0 0
      %841 = vmatpush1.bf16.msra.mxu0 0
      %842 = vmatprep.subr.bf16.mxu0 0
      %843 = vmatpush1.bf16.msra.mxu0 0
      %844 = vmatprep.subr.bf16.mxu0 0
      %845 = vmatpush1.bf16.msra.mxu0 0
      %846 = vmatprep.subr.bf16.mxu0 0
      %847 = vmatpush1.bf16.msra.mxu0 0
      %848 = vmatprep.subr.bf16.mxu0 0
      %849 = vmatpush1.bf16.msra.mxu0 0
      %850 = vmatprep.mubr.bf16.mxu0 0
      %851 = vmatmul.mubr.bf16.gmra.mrb[0].mxu0 %v768
      %v852 = vpop.f32.mrb[0].mxu0
      %v853 = vadd.f32 0.0, %v852
      %v854 = vpop.f32.mrb[0].mxu0
      %v855 = vpop.f32.mrb[0].mxu0
      %v856 = vadd.f32 0.0, %v855
      %v857 = vpop.f32.mrb[0].mxu0
      %858 = vdwg.mxu0
      %v859 = vadd.f32 %v738, %v853
      %v860 = vadd.f32 %v741, %v856
      %v861 = vld [vmem:[%s4] sm:$0x1]
      %v863 = vlaneseq
      %v864 = vshrl.u32 %v863, 7
      %v865 = vsub.s32 0, %v864
      %v866 = vrot.slane %v861, %v865
      %v868 = vadd.f32 %v859, %v866
      %v869 = vadd.f32 %v860, %v866
      %v870 = vmax.f32 %v868, 0.0
      %v871 = vmax.f32 %v869, 0.0
      %v872 = vpack.c.bf16 %v871, %v870
      %v873 = vld [vmem:[%s5] sm:$0xf]
      %v874 = vld [vmem:[%s5 + $0x4] sm:$0xf]
      %v875 = vld [vmem:[%s5 + $0x8] sm:$0xf]
      %v876 = vld [vmem:[%s5 + $0xc] sm:$0xf]
      %v877 = vld [vmem:[%s5 + $0x10] sm:$0xf]
      %v878 = vld [vmem:[%s5 + $0x14] sm:$0xf]
      %v879 = vld [vmem:[%s5 + $0x18] sm:$0xf]
      %v880 = vld [vmem:[%s5 + $0x1c] sm:$0xf]
      %v881 = vld [vmem:[%s5 + $0x20] sm:$0xf]
      %v882 = vld [vmem:[%s5 + $0x24] sm:$0xf]
      %v883 = vld [vmem:[%s5 + $0x28] sm:$0xf]
      %v884 = vld [vmem:[%s5 + $0x2c] sm:$0xf]
      %v885 = vld [vmem:[%s5 + $0x30] sm:$0xf]
      %v886 = vld [vmem:[%s5 + $0x34] sm:$0xf]
      %v887 = vld [vmem:[%s5 + $0x38] sm:$0xf]
      %v888 = vld [vmem:[%s5 + $0x3c] sm:$0xf]
      %v889 = vld [vmem:[%s6] sm:$0x1]
      %v891 = vlaneseq
      %v892 = vshrl.u32 %v891, 7
      %v893 = vsub.s32 0, %v892
      %v894 = vrot.slane %v889, %v893
      %v912 = vunpack.c.l.b16 %v873
      %v913 = vunpack.c.l.b16 %v874
      %v914 = vunpack.c.l.b16 %v875
      %v915 = vunpack.c.l.b16 %v876
      %v916 = vunpack.c.l.b16 %v877
      %v917 = vunpack.c.l.b16 %v878
      %v918 = vunpack.c.l.b16 %v879
      %v919 = vunpack.c.l.b16 %v880
      %v920 = vunpack.c.l.b16 %v881
      %v921 = vunpack.c.l.b16 %v882
      %v922 = vunpack.c.l.b16 %v883
      %v923 = vunpack.c.l.b16 %v884
      %v924 = vunpack.c.l.b16 %v885
      %v925 = vunpack.c.l.b16 %v886
      %v926 = vunpack.c.l.b16 %v887
      %v927 = vunpack.c.l.b16 %v888
      %v928 = vpack.c.b16 %v913, %v912
      %v929 = vpack.c.b16 %v915, %v914
      %v930 = vpack.c.b16 %v917, %v916
      %v931 = vpack.c.b16 %v919, %v918
      %v932 = vpack.c.b16 %v921, %v920
      %v933 = vpack.c.b16 %v923, %v922
      %v934 = vpack.c.b16 %v925, %v924
      %v935 = vpack.c.b16 %v927, %v926
      %944 = vmatprep.subr.bf16.mxu0 0
      %945 = vmatpush1.bf16.msra.mxu0 %v928
      %946 = vmatprep.subr.bf16.mxu0 0
      %947 = vmatpush1.bf16.msra.mxu0 %v929
      %948 = vmatprep.subr.bf16.mxu0 0
      %949 = vmatpush1.bf16.msra.mxu0 %v930
      %950 = vmatprep.subr.bf16.mxu0 0
      %951 = vmatpush1.bf16.msra.mxu0 %v931
      %952 = vmatprep.subr.bf16.mxu0 0
      %953 = vmatpush1.bf16.msra.mxu0 %v932
      %954 = vmatprep.subr.bf16.mxu0 0
      %955 = vmatpush1.bf16.msra.mxu0 %v933
      %956 = vmatprep.subr.bf16.mxu0 0
      %957 = vmatpush1.bf16.msra.mxu0 %v934
      %958 = vmatprep.subr.bf16.mxu0 0
      %959 = vmatpush1.bf16.msra.mxu0 %v935
      %960 = vmatprep.subr.bf16.mxu0 0
      %961 = vmatpush1.bf16.msra.mxu0 0
      %962 = vmatprep.subr.bf16.mxu0 0
      %963 = vmatpush1.bf16.msra.mxu0 0
      %964 = vmatprep.subr.bf16.mxu0 0
      %965 = vmatpush1.bf16.msra.mxu0 0
      %966 = vmatprep.subr.bf16.mxu0 0
      %967 = vmatpush1.bf16.msra.mxu0 0
      %968 = vmatprep.subr.bf16.mxu0 0
      %969 = vmatpush1.bf16.msra.mxu0 0
      %970 = vmatprep.subr.bf16.mxu0 0
      %971 = vmatpush1.bf16.msra.mxu0 0
      %972 = vmatprep.subr.bf16.mxu0 0
      %973 = vmatpush1.bf16.msra.mxu0 0
      %974 = vmatprep.subr.bf16.mxu0 0
      %975 = vmatpush1.bf16.msra.mxu0 0
      %976 = vmatprep.mubr.bf16.mxu0 0
      %977 = vmatmul.mubr.bf16.gmra.mrb[0].mxu0 %v872
      %v978 = vpop.f32.mrb[0].mxu0
      %v979 = vadd.f32 %v894, %v978
      %v980 = vpop.f32.mrb[0].mxu0
      %v981 = vpop.f32.mrb[0].mxu0
      %v982 = vadd.f32 %v894, %v981
      %v983 = vpop.f32.mrb[0].mxu0
      %984 = vdwg.mxu0
      %v985 = vld [vmem:[#allocation2] sm:$0xf]
      %v986 = vld [vmem:[#allocation2 + $0x4] sm:$0xf]
      %v987 = vld [vmem:[#allocation2 + $0x8] sm:$0x1]
      %v988 = vunpack.c.l.bf16 %v985
      %v989 = vunpack.c.l.bf16 %v986
      %v990 = vunpack.c.l.bf16 %v987
      %vm994 = vcmask 1046528
      %v995 = vrot.slane %v988, 1
      %v996 = vrot.slane %v989, 1
      %v997 = vsel %vm994, %v995, %v996
      %v998 = vrot.slane %v990, 1
      %v999 = vsel %vm994, %v996, %v998
      %v1002 = vadd.f32 %v979, %v997
      %v1003 = vadd.f32 %v982, %v999
      %v1004 = vmax.f32 %v1002, 0.0
      %v1005 = vmax.f32 %v1003, 0.0
      %v1006 = vpack.c.bf16 %v1005, %v1004
      %v1008 = vunpack.c.l.b16 %v1006
      %v1009 = vunpack.c.h.b16 %v1006
      %v1010 = vpack.c.b16 %v1008, %v1008
      %v1011 = vpack.c.b16 %v1009, %v1009
      %1014 = vst [vmem:[%s254] sm:$0xf] %v1010
      %1015 = vst [vmem:[%s254 + $0x4] sm:$0xf] %v1011
      %s1016 = smul.u32 2, %s23
      %p1017 = scmp.lt.s32.totalorder %s22, 1
      %s1018 = scalar_select %p1017, %s22, 1
      %p1019 = scmp.lt.s32.totalorder %s1016, 1
      %s1020 = scalar_select %p1019, %s1016, 1
      %s1021 = smul.addr %s1018, 2
      %s1022 = sadd.s32 %s1020, %s1021
      %s1023 = smul.addr %s1022, 4
      %s1024 = scalar_lea.vmem %s7, %s1023
      // Predicated region
      $region82: #{_lambda_.6} parent=43 // pred_check
        %p1025 = pneg %p176
      $region83: #{_lambda_.6} parent=43 // pred_check_branch
        %1027 = sbr.rel (%p1025) target = $region85
      $region84: #{_lambda_.6} parent=43 // pred_region
        %s1028 = smul.u32 2, %s23
      $region85: #{_lambda_.6} parent=43 // pred_fallthru
        _
    $region44: #{_lambda_.6} parent=5 // pred_fallthru
      _
    %p1029 = scmp.le.s32.totalorder 2, %s13
    // Predicated region
    $region86: #{_lambda_.6} parent=5 // pred_check
      %p1030 = pneg %p1029
    $region87: #{_lambda_.6} parent=5 // pred_check_branch
      %1032 = sbr.rel (%p1030) target = $region89
    $region88: #{_lambda_.6} parent=5 // pred_region
      %s1033 = ssub.s32 %s13, 2
      // Predicated region
      $region90: #{_lambda_.6} parent=88 // pred_check
        %p1034 = pneg %p182
      $region91: #{_lambda_.6} parent=88 // pred_check_branch
        %1036 = sbr.rel (%p1034) target = $region93
      $region92: #{_lambda_.6} parent=88 // pred_region
        %s1037 = smul.u32 2, %s25
        %p1038 = scmp.lt.s32.totalorder %s24, 1
        %s1039 = scalar_select %p1038, %s24, 1
        %p1040 = scmp.lt.s32.totalorder %s1037, 1
        %s1041 = scalar_select %p1040, %s1037, 1
        %s1042 = smul.addr %s1039, 2
        %s1043 = sadd.s32 %s1041, %s1042
        %s1044 = smul.addr %s1043, 4
        %s1045 = scalar_lea.vmem %s7, %s1044
      $region93: #{_lambda_.6} parent=88 // pred_fallthru
        _
    $region89: #{_lambda_.6} parent=5 // pred_fallthru
      _
  $region6: #{_lambda_.6} parent=0 // loop_footer
    %s17 = sadd.s32 1, %s13
  $region7: #{_lambda_.6} parent=0 // loop_footer_branch
    %12 = sbr.rel target = $region3
  $region8: #{_lambda_.6} parent=0 // loop_exit
    _
  %1046 = vsyncmov [#allocation4]
  %s1047 = vpop.sfrf %1046
  %p1048 = scmp.eq.s32.totalorder %s1047, 0
  %p1049 = pneg %p1048
  %1051 = shalt.err (%p1049)

// kernel: _lambda_.5
$region0: #{_lambda_.5}
  #allocation0 [shape = 'u32[]', space=smem, size = 0x4, offset = 0x4, fixed_abs, tag = 'smem constant byte address 0x4 - core index']
  #allocation1 [shape = 'u32[144,128]{1,0:T(1,128)}', space=vmem, size = 0x12000, scoped, tag = 'internal scratch']
  #allocation2 [shape = 'bf16[1,24,128]{2,1,0:T(8,128)(2,1)}', space=vmem, size = 0x1800, scoped, tag = 'scratch operand']
  #allocation3 [shape = 'bf16[1,24,128]{2,1,0:T(8,128)(2,1)}', space=vmem, size = 0x1800, scoped, tag = 'scratch operand']
  #allocation4 [shape = 's32[1]{0}', space=sflag, size = 0x4, scoped, tag = 'scratch operand']
  #allocation5 [shape = 's32[]', space=sflag, size = 0x4, offset = 0, fixed_abs, tag = 'sflag constant byte address 0x0 - dummy sync flag']
  %s0 = inlined_call_operand.vmem [shape: bf16[2,1,24,128], index: 0, kind: input, shape index: {}]
  %s1 = inlined_call_operand.vmem [shape: bf16[128,128], index: 1, kind: input, shape index: {}]
  %s2 = inlined_call_operand.vmem [shape: f32[1,128], index: 2, kind: input, shape index: {}]
  %s3 = inlined_call_operand.vmem [shape: bf16[3,128,128], index: 3, kind: input, shape index: {}]
  %s4 = inlined_call_operand.vmem [shape: f32[1,128], index: 4, kind: input, shape index: {}]
  %s5 = inlined_call_operand.vmem [shape: bf16[128,128], index: 5, kind: input, shape index: {}]
  %s6 = inlined_call_operand.vmem [shape: f32[1,128], index: 6, kind: input, shape index: {}]
  %s7 = inlined_call_operand.vmem [shape: bf16[128,128], index: 7, kind: input, shape index: {}]
  %s8 = inlined_call_operand.vmem [shape: f32[1,128], index: 8, kind: input, shape index: {}]
  %s9 = inlined_call_operand.vmem [shape: bf16[2,16,128], index: 9, kind: output, shape index: {}]
  %s10 = sld [smem:[#allocation0]]
  $region102: #{_lambda_.5} parent=0
    _
  %s12 = ssub.s32 1, %s10
  %s13 = scalar_select 0, %s12, %s10
  loop: start=0, step=1, limit=4
  $region2: #{_lambda_.5} parent=0 // loop_pre_header
    _
  $region3: #{_lambda_.5} parent=0 // loop_header
    %s15 = sphi 0, %s19
    %p16 = scmp.ge.s32.totalorder %s15, 4
    %s22 = sphi 0, %s34
    %s23 = sphi 0, %s30
    %s24 = sphi 0, %s22
    %s25 = sphi 0, %s23
    %s26 = sphi 0, %s24
    %s27 = sphi 0, %s25
    %s35 = sphi 0, %s35
    %s37 = sphi 0, %s35
    %s38 = sphi 0, %s37
    %s52 = sphi 0, %s38
    %s56 = sphi 0, %s56
    %s58 = sphi 0, %s56
    %s59 = sphi 0, %s58
    %s73 = sphi 0, %s59
    %s77 = sphi 0, %s77
    %s79 = sphi 0, %s77
    %s80 = sphi 0, %s79
    %s94 = sphi 0, %s80
    %s98 = sphi 0, %s98
    %s100 = sphi 0, %s98
    %s101 = sphi 0, %s100
    %s115 = sphi 0, %s101
    %s119 = sphi 0, %s119
    %s121 = sphi 0, %s119
    %s122 = sphi 0, %s121
    %s136 = sphi 0, %s122
    %s140 = sphi 0, %s140
    %s142 = sphi 0, %s140
    %s143 = sphi 0, %s142
    %s157 = sphi 0, %s143
    %s161 = sphi 0, %s161
    %s163 = sphi 0, %s161
    %s164 = sphi 0, %s163
    %s178 = sphi 0, %s164
    %s182 = sphi 0, %s182
    %s184 = sphi 0, %s182
    %s185 = sphi 0, %s184
    %s199 = sphi 0, %s185
    %s207 = sphi 0, %s209
    %s210 = sphi 0, %s207
    %s211 = sphi 0, %s210
    %s227 = sphi 0, %s211
  $region4: #{_lambda_.5} parent=0 // loop_header_branch
    %18 = sbr.rel (%p16) target = $region8
  $region5: #{_lambda_.5} parent=0 // loop_body
    %s20 = ssub.s32 %s15, 1
    %s21 = ssub.s32 %s15, 2
    %s28 = sadd.s32 1, %s23
    %p29 = scmp.ge.s32.totalorder %s28, 1
    %s30 = scalar_select %p29, 0, %s28
    %s31 = sadd.s32 1, %s22
    %s32 = scalar_select %p29, %s31, %s22
    %p33 = scmp.ge.s32.totalorder %s32, 2
    %s34 = scalar_select %p33, 0, %s32
    %s36 = sadd.s32 %s35, 1
    %p39 = scmp.eq.s32.totalorder %s15, 1
    %p40 = scmp.ne.s32.totalorder %s35, %s37
    %p41 = scmp.eq.s32.totalorder %s15, 0
    %p42 = por %p40, %p41
    %p43 = scmp.ne.s32.totalorder %s35, %s37
    %p44 = scmp.eq.s32.totalorder %s20, 1
    %p45 = por %p43, %p44
    %p46 = scmp.ne.s32.totalorder %s37, %s38
    %p47 = scmp.eq.s32.totalorder %s20, 0
    %p48 = por %p46, %p47
    %p49 = scmp.ne.s32.totalorder %s37, %s38
    %p50 = scmp.eq.s32.totalorder %s21, 1
    %p51 = por %p49, %p50
    %p53 = scmp.ne.s32.totalorder %s38, %s52
    %p54 = scmp.eq.s32.totalorder %s21, 0
    %p55 = por %p53, %p54
    %s57 = sadd.s32 %s56, 1
    %p60 = scmp.eq.s32.totalorder %s15, 1
    %p61 = scmp.ne.s32.totalorder %s56, %s58
    %p62 = scmp.eq.s32.totalorder %s15, 0
    %p63 = por %p61, %p62
    %p64 = scmp.ne.s32.totalorder %s56, %s58
    %p65 = scmp.eq.s32.totalorder %s20, 1
    %p66 = por %p64, %p65
    %p67 = scmp.ne.s32.totalorder %s58, %s59
    %p68 = scmp.eq.s32.totalorder %s20, 0
    %p69 = por %p67, %p68
    %p70 = scmp.ne.s32.totalorder %s58, %s59
    %p71 = scmp.eq.s32.totalorder %s21, 1
    %p72 = por %p70, %p71
    %p74 = scmp.ne.s32.totalorder %s59, %s73
    %p75 = scmp.eq.s32.totalorder %s21, 0
    %p76 = por %p74, %p75
    %s78 = sadd.s32 %s77, 1
    %p81 = scmp.eq.s32.totalorder %s15, 1
    %p82 = scmp.ne.s32.totalorder %s77, %s79
    %p83 = scmp.eq.s32.totalorder %s15, 0
    %p84 = por %p82, %p83
    %p85 = scmp.ne.s32.totalorder %s77, %s79
    %p86 = scmp.eq.s32.totalorder %s20, 1
    %p87 = por %p85, %p86
    %p88 = scmp.ne.s32.totalorder %s79, %s80
    %p89 = scmp.eq.s32.totalorder %s20, 0
    %p90 = por %p88, %p89
    %p91 = scmp.ne.s32.totalorder %s79, %s80
    %p92 = scmp.eq.s32.totalorder %s21, 1
    %p93 = por %p91, %p92
    %p95 = scmp.ne.s32.totalorder %s80, %s94
    %p96 = scmp.eq.s32.totalorder %s21, 0
    %p97 = por %p95, %p96
    %s99 = sadd.s32 %s98, 1
    %p102 = scmp.eq.s32.totalorder %s15, 1
    %p103 = scmp.ne.s32.totalorder %s98, %s100
    %p104 = scmp.eq.s32.totalorder %s15, 0
    %p105 = por %p103, %p104
    %p106 = scmp.ne.s32.totalorder %s98, %s100
    %p107 = scmp.eq.s32.totalorder %s20, 1
    %p108 = por %p106, %p107
    %p109 = scmp.ne.s32.totalorder %s100, %s101
    %p110 = scmp.eq.s32.totalorder %s20, 0
    %p111 = por %p109, %p110
    %p112 = scmp.ne.s32.totalorder %s100, %s101
    %p113 = scmp.eq.s32.totalorder %s21, 1
    %p114 = por %p112, %p113
    %p116 = scmp.ne.s32.totalorder %s101, %s115
    %p117 = scmp.eq.s32.totalorder %s21, 0
    %p118 = por %p116, %p117
    %s120 = sadd.s32 %s119, 1
    %p123 = scmp.eq.s32.totalorder %s15, 1
    %p124 = scmp.ne.s32.totalorder %s119, %s121
    %p125 = scmp.eq.s32.totalorder %s15, 0
    %p126 = por %p124, %p125
    %p127 = scmp.ne.s32.totalorder %s119, %s121
    %p128 = scmp.eq.s32.totalorder %s20, 1
    %p129 = por %p127, %p128
    %p130 = scmp.ne.s32.totalorder %s121, %s122
    %p131 = scmp.eq.s32.totalorder %s20, 0
    %p132 = por %p130, %p131
    %p133 = scmp.ne.s32.totalorder %s121, %s122
    %p134 = scmp.eq.s32.totalorder %s21, 1
    %p135 = por %p133, %p134
    %p137 = scmp.ne.s32.totalorder %s122, %s136
    %p138 = scmp.eq.s32.totalorder %s21, 0
    %p139 = por %p137, %p138
    %s141 = sadd.s32 %s140, 1
    %p144 = scmp.eq.s32.totalorder %s15, 1
    %p145 = scmp.ne.s32.totalorder %s140, %s142
    %p146 = scmp.eq.s32.totalorder %s15, 0
    %p147 = por %p145, %p146
    %p148 = scmp.ne.s32.totalorder %s140, %s142
    %p149 = scmp.eq.s32.totalorder %s20, 1
    %p150 = por %p148, %p149
    %p151 = scmp.ne.s32.totalorder %s142, %s143
    %p152 = scmp.eq.s32.totalorder %s20, 0
    %p153 = por %p151, %p152
    %p154 = scmp.ne.s32.totalorder %s142, %s143
    %p155 = scmp.eq.s32.totalorder %s21, 1
    %p156 = por %p154, %p155
    %p158 = scmp.ne.s32.totalorder %s143, %s157
    %p159 = scmp.eq.s32.totalorder %s21, 0
    %p160 = por %p158, %p159
    %s162 = sadd.s32 %s161, 1
    %p165 = scmp.eq.s32.totalorder %s15, 1
    %p166 = scmp.ne.s32.totalorder %s161, %s163
    %p167 = scmp.eq.s32.totalorder %s15, 0
    %p168 = por %p166, %p167
    %p169 = scmp.ne.s32.totalorder %s161, %s163
    %p170 = scmp.eq.s32.totalorder %s20, 1
    %p171 = por %p169, %p170
    %p172 = scmp.ne.s32.totalorder %s163, %s164
    %p173 = scmp.eq.s32.totalorder %s20, 0
    %p174 = por %p172, %p173
    %p175 = scmp.ne.s32.totalorder %s163, %s164
    %p176 = scmp.eq.s32.totalorder %s21, 1
    %p177 = por %p175, %p176
    %p179 = scmp.ne.s32.totalorder %s164, %s178
    %p180 = scmp.eq.s32.totalorder %s21, 0
    %p181 = por %p179, %p180
    %s183 = sadd.s32 %s182, 1
    %p186 = scmp.eq.s32.totalorder %s15, 1
    %p187 = scmp.ne.s32.totalorder %s182, %s184
    %p188 = scmp.eq.s32.totalorder %s15, 0
    %p189 = por %p187, %p188
    %p190 = scmp.ne.s32.totalorder %s182, %s184
    %p191 = scmp.eq.s32.totalorder %s20, 1
    %p192 = por %p190, %p191
    %p193 = scmp.ne.s32.totalorder %s184, %s185
    %p194 = scmp.eq.s32.totalorder %s20, 0
    %p195 = por %p193, %p194
    %p196 = scmp.ne.s32.totalorder %s184, %s185
    %p197 = scmp.eq.s32.totalorder %s21, 1
    %p198 = por %p196, %p197
    %p200 = scmp.ne.s32.totalorder %s185, %s199
    %p201 = scmp.eq.s32.totalorder %s21, 0
    %p202 = por %p200, %p201
    %s203 = ssub.s32 %s22, %s34
    %s204 = ssub.s32 %s23, %s30
    %s205 = sor.u32 %s203, %s204
    %p206 = scmp.eq.s32.totalorder %s205, 0
    %s208 = sadd.s32 %s207, 1
    %s209 = scalar_select %p206, %s207, %s208
    %p212 = pneg %p206
    %p213 = scmp.eq.s32.totalorder %s15, 1
    %p214 = por %p212, %p213
    %p215 = scmp.ne.s32.totalorder %s207, %s210
    %p216 = scmp.eq.s32.totalorder %s15, 0
    %p217 = por %p215, %p216
    %p218 = scmp.ne.s32.totalorder %s207, %s210
    %p219 = scmp.eq.s32.totalorder %s20, 1
    %p220 = por %p218, %p219
    %p221 = scmp.ne.s32.totalorder %s210, %s211
    %p222 = scmp.eq.s32.totalorder %s20, 0
    %p223 = por %p221, %p222
    %p224 = scmp.ne.s32.totalorder %s210, %s211
    %p225 = scmp.eq.s32.totalorder %s21, 1
    %p226 = por %p224, %p225
    %p228 = scmp.ne.s32.totalorder %s211, %s227
    %p229 = scmp.eq.s32.totalorder %s21, 0
    %p230 = por %p228, %p229
    %p231 = scmp.le.s32.totalorder 1, %s15
    %p232 = scmp.lt.s32.totalorder %s15, 3
    %p233 = pnand %p231, %p232
    %p234 = pneg %p233
    // Predicated region
    $region9: #{_lambda_.5} parent=5 // pred_check
      _
    $region10: #{_lambda_.5} parent=5 // pred_check_branch
      %236 = sbr.rel (%p233) target = $region12
    $region11: #{_lambda_.5} parent=5 // pred_region
      %s237 = ssub.s32 %s15, 1
      // Predicated region
      $region13: #{_lambda_.5} parent=11 // pred_check
        %p238 = pneg %p48
      $region14: #{_lambda_.5} parent=11 // pred_check_branch
        %240 = sbr.rel (%p238) target = $region16
      $region15: #{_lambda_.5} parent=11 // pred_region
        _
      $region16: #{_lambda_.5} parent=11 // pred_fallthru
        _
      // Predicated region
      $region17: #{_lambda_.5} parent=11 // pred_check
        %p241 = pneg %p69
      $region18: #{_lambda_.5} parent=11 // pred_check_branch
        %243 = sbr.rel (%p241) target = $region20
      $region19: #{_lambda_.5} parent=11 // pred_region
        _
      $region20: #{_lambda_.5} parent=11 // pred_fallthru
        _
      // Predicated region
      $region21: #{_lambda_.5} parent=11 // pred_check
        %p244 = pneg %p90
      $region22: #{_lambda_.5} parent=11 // pred_check_branch
        %246 = sbr.rel (%p244) target = $region24
      $region23: #{_lambda_.5} parent=11 // pred_region
        _
      $region24: #{_lambda_.5} parent=11 // pred_fallthru
        _
      // Predicated region
      $region25: #{_lambda_.5} parent=11 // pred_check
        %p247 = pneg %p111
      $region26: #{_lambda_.5} parent=11 // pred_check_branch
        %249 = sbr.rel (%p247) target = $region28
      $region27: #{_lambda_.5} parent=11 // pred_region
        _
      $region28: #{_lambda_.5} parent=11 // pred_fallthru
        _
      // Predicated region
      $region29: #{_lambda_.5} parent=11 // pred_check
        %p250 = pneg %p132
      $region30: #{_lambda_.5} parent=11 // pred_check_branch
        %252 = sbr.rel (%p250) target = $region32
      $region31: #{_lambda_.5} parent=11 // pred_region
        _
      $region32: #{_lambda_.5} parent=11 // pred_fallthru
        _
      // Predicated region
      $region33: #{_lambda_.5} parent=11 // pred_check
        %p253 = pneg %p153
      $region34: #{_lambda_.5} parent=11 // pred_check_branch
        %255 = sbr.rel (%p253) target = $region36
      $region35: #{_lambda_.5} parent=11 // pred_region
        _
      $region36: #{_lambda_.5} parent=11 // pred_fallthru
        _
      // Predicated region
      $region37: #{_lambda_.5} parent=11 // pred_check
        %p256 = pneg %p174
      $region38: #{_lambda_.5} parent=11 // pred_check_branch
        %258 = sbr.rel (%p256) target = $region40
      $region39: #{_lambda_.5} parent=11 // pred_region
        _
      $region40: #{_lambda_.5} parent=11 // pred_fallthru
        _
      // Predicated region
      $region41: #{_lambda_.5} parent=11 // pred_check
        %p259 = pneg %p195
      $region42: #{_lambda_.5} parent=11 // pred_check_branch
        %261 = sbr.rel (%p259) target = $region44
      $region43: #{_lambda_.5} parent=11 // pred_region
        _
      $region44: #{_lambda_.5} parent=11 // pred_fallthru
        _
    $region12: #{_lambda_.5} parent=5 // pred_fallthru
      _
    %p262 = scmp.lt.s32.totalorder %s15, 2
    // Predicated region
    $region45: #{_lambda_.5} parent=5 // pred_check
      %p263 = pneg %p262
    $region46: #{_lambda_.5} parent=5 // pred_check_branch
      %265 = sbr.rel (%p263) target = $region48
    $region47: #{_lambda_.5} parent=5 // pred_region
      _
    $region48: #{_lambda_.5} parent=5 // pred_fallthru
      _
    %p266 = scmp.le.s32.totalorder 1, %s15
    %p267 = scmp.lt.s32.totalorder %s15, 3
    %p268 = pnand %p266, %p267
    %p269 = pneg %p268
    // Predicated region
    $region49: #{_lambda_.5} parent=5 // pred_check
      _
    $region50: #{_lambda_.5} parent=5 // pred_check_branch
      %271 = sbr.rel (%p268) target = $region52
    $region51: #{_lambda_.5} parent=5 // pred_region
      %s272 = ssub.s32 %s15, 1
      %p273 = pneg %p48
      %p274 = pneg %p45
      %p275 = pneg %p69
      %p276 = pneg %p66
      %p277 = pneg %p90
      %p278 = pneg %p87
      %p279 = pneg %p111
      %p280 = pneg %p108
      %p281 = pneg %p132
      %p282 = pneg %p129
      %p283 = pneg %p153
      %p284 = pneg %p150
      %p285 = pneg %p174
      %p286 = pneg %p171
      %p287 = pneg %p195
      %p288 = pneg %p192
      %p289 = pneg %p223
      %p290 = pneg %p220
      %s291 = smul.u32 2, %s25
      %p292 = scmp.lt.s32.totalorder %s24, 1
      %s293 = scalar_select %p292, %s24, 1
      %p294 = scmp.lt.s32.totalorder %s291, 1
      %s295 = scalar_select %p294, %s291, 1
      %s296 = smul.addr %s293, 2
      %s297 = sadd.s32 %s295, %s296
      %s298 = smul.addr %s297, 4
      %s299 = scalar_lea.vmem %s9, %s298
      %s300 = smul.u32 2, %s25
      %p301 = scmp.lt.s32.totalorder %s24, 1
      %s302 = scalar_select %p301, %s24, 1
      %p303 = scmp.lt.s32.totalorder %s300, 1
      %s304 = scalar_select %p303, %s300, 1
      %s305 = smul.addr %s302, 2
      %s306 = sadd.s32 %s304, %s305
      %s307 = smul.addr %s306, 4
      %s308 = scalar_lea.vmem %s9, %s307
      %s309 = smul.u32 2, %s25
      %s311 = smul.u32 %s25, 16
      %s312 = sshra.s32 %s311, 3
      %s313 = sand.u32 %s311, 7
      %s314 = smul.u32 %s24, 3
      %s315 = sadd.s32 %s312, %s314
      %s316 = smul.addr %s315, 4
      %s317 = scalar_lea.vmem %s0, %s316
      %p319 = scmp.lt.u32.totalorder 12, 8
      %p320 = pneg %p319
      // Predicated region
      $region53: #{_lambda_.5} parent=51 // pred_check
        _
      $region54: #{_lambda_.5} parent=51 // pred_check_branch
        %322 = sbr.rel (%p319) target = $region56
      $region55: #{_lambda_.5} parent=51 // pred_region
        %s337 = sand.u32 12, 7
        %p338 = scmp.eq.s32.totalorder %s337, 0
        %p339 = pneg %p338
        // Predicated region
        $region68: #{_lambda_.5} parent=55 // pred_check
          _
        $region69: #{_lambda_.5} parent=55 // pred_check_branch
          %341 = sbr.rel (%p338) target = $region71
        $region70: #{_lambda_.5} parent=55 // pred_region
          %s342 = sand.u32 12, 7
          %s343 = ssub.s32 12, %s342
          %s344 = scalar_lea.vmem %s317, %s343
          %s345 = ssub.s32 12, %s342
          %s346 = scalar_lea.vmem [#allocation2], %s345
          loop: start=0, step=1, limit=1
          $region72: #{_lambda_.5} parent=70 // loop_pre_header
            _
          $region73: #{_lambda_.5} parent=70 // loop_header
            %s348 = sphi 0, %s352
            %p349 = scmp.ge.s32.totalorder %s348, 1
            %s353 = sphi %s317, %s317
            %s354 = sphi [#allocation2], [#allocation2]
          $region74: #{_lambda_.5} parent=70 // loop_header_branch
            %351 = sbr.rel (%p349) target = $region78
          $region75: #{_lambda_.5} parent=70 // loop_body
            %v355 = vld [vmem:[%s353] sm:$0xff]
            %356 = vst [vmem:[%s354] sm:$0xff] %v355
          $region76: #{_lambda_.5} parent=70 // loop_footer
            %s352 = sadd.s32 1, %s348
          $region77: #{_lambda_.5} parent=70 // loop_footer_branch
            %347 = sbr.rel target = $region73
          $region78: #{_lambda_.5} parent=70 // loop_exit
            _
          %s357 = sshllo.u32 0, %s342
          loop: start=0, step=1, limit=1
          $region79: #{_lambda_.5} parent=70 // loop_pre_header
            _
          $region80: #{_lambda_.5} parent=70 // loop_header
            %s359 = sphi 0, %s363
            %p360 = scmp.ge.s32.totalorder %s359, 1
            %s364 = sphi %s344, %s344
            %s365 = sphi %s346, %s346
          $region81: #{_lambda_.5} parent=70 // loop_header_branch
            %362 = sbr.rel (%p360) target = $region85
          $region82: #{_lambda_.5} parent=70 // loop_body
            %v366 = vld [vmem:[%s364] sm:%s357]
            %367 = vst [vmem:[%s365] sm:%s357] %v366
          $region83: #{_lambda_.5} parent=70 // loop_footer
            %s363 = sadd.s32 1, %s359
          $region84: #{_lambda_.5} parent=70 // loop_footer_branch
            %358 = sbr.rel target = $region80
          $region85: #{_lambda_.5} parent=70 // loop_exit
            _
        $region71: #{_lambda_.5} parent=55 // pred_fallthru
          _
      $region56: #{_lambda_.5} parent=51 // pred_fallthru
        _
      // Predicated region
      $region57: #{_lambda_.5} parent=51 // pred_check
        %p323 = pneg %p319
      $region58: #{_lambda_.5} parent=51 // pred_check_branch
        %325 = sbr.rel (%p323) target = $region60
      $region59: #{_lambda_.5} parent=51 // pred_region
        %s326 = sshllo.u32 0, 12
        loop: start=0, step=1, limit=1
        $region61: #{_lambda_.5} parent=59 // loop_pre_header
          _
        $region62: #{_lambda_.5} parent=59 // loop_header
          %s328 = sphi 0, %s332
          %p329 = scmp.ge.s32.totalorder %s328, 1
          %s333 = sphi %s317, %s317
          %s334 = sphi [#allocation2], [#allocation2]
        $region63: #{_lambda_.5} parent=59 // loop_header_branch
          %331 = sbr.rel (%p329) target = $region67
        $region64: #{_lambda_.5} parent=59 // loop_body
          %v335 = vld [vmem:[%s333] sm:%s326]
          %336 = vst [vmem:[%s334] sm:%s326] %v335
        $region65: #{_lambda_.5} parent=59 // loop_footer
          %s332 = sadd.s32 1, %s328
        $region66: #{_lambda_.5} parent=59 // loop_footer_branch
          %327 = sbr.rel target = $region62
        $region67: #{_lambda_.5} parent=59 // loop_exit
          _
      $region60: #{_lambda_.5} parent=51 // pred_fallthru
        _
      // Predicated region
      $region86: #{_lambda_.5} parent=51 // pred_check
        _
      $region87: #{_lambda_.5} parent=51 // pred_check_branch
        %370 = sbr.rel (0) target = $region89
      $region88: #{_lambda_.5} parent=51 // pred_region
        %371 = vsyncadd [#allocation4], 192
      $region89: #{_lambda_.5} parent=51 // pred_fallthru
        _
      %s372 = smul.u32 4, 1
      %s373 = smul.u32 %s372, 3
      %s374 = smul.u32 %s373, 1
      %s375 = sshll.u32 %s374, 4
      %376 = dma.done [#allocation4], %s375
      %v377 = vlaneseq
      %v378 = vshrl.u32 %v377, 7
      %v379 = vadd.s32 %v378, 8
      %v380 = vadd.s32 %v378, 16
      %v381 = vstv %s311
      %v382 = vadd.s32 %v378, %v381
      %v383 = vadd.s32 %v379, %v381
      %v384 = vadd.s32 %v380, %v381
      %vm385 = vcmp.ge.s32.totalorder %v382, 1
      %vm386 = vcmp.ge.s32.totalorder %v383, 1
      %vm387 = vcmp.ge.s32.totalorder %v384, 1
      %vm388 = vcmp.lt.s32.totalorder %v382, 17
      %vm389 = vcmp.lt.s32.totalorder %v383, 17
      %vm390 = vcmp.lt.s32.totalorder %v384, 17
      %vm391 = vmand %vm385, %vm388
      %vm392 = vmand %vm386, %vm389
      %vm393 = vmand %vm387, %vm390
      %v394 = vld [vmem:[#allocation2] sm:$0xf]
      %v395 = vld [vmem:[#allocation2 + $0x4] sm:$0xf]
      %v396 = vld [vmem:[#allocation2 + $0x8] sm:$0xf]
      %v397 = vld [vmem:[%s1] sm:$0xf]
      %v398 = vld [vmem:[%s1 + $0x4] sm:$0xf]
      %v399 = vld [vmem:[%s1 + $0x8] sm:$0xf]
      %v400 = vld [vmem:[%s1 + $0xc] sm:$0xf]
      %v401 = vld [vmem:[%s1 + $0x10] sm:$0xf]
      %v402 = vld [vmem:[%s1 + $0x14] sm:$0xf]
      %v403 = vld [vmem:[%s1 + $0x18] sm:$0xf]
      %v404 = vld [vmem:[%s1 + $0x1c] sm:$0xf]
      %v405 = vld [vmem:[%s1 + $0x20] sm:$0xf]
      %v406 = vld [vmem:[%s1 + $0x24] sm:$0xf]
      %v407 = vld [vmem:[%s1 + $0x28] sm:$0xf]
      %v408 = vld [vmem:[%s1 + $0x2c] sm:$0xf]
      %v409 = vld [vmem:[%s1 + $0x30] sm:$0xf]
      %v410 = vld [vmem:[%s1 + $0x34] sm:$0xf]
      %v411 = vld [vmem:[%s1 + $0x38] sm:$0xf]
      %v412 = vld [vmem:[%s1 + $0x3c] sm:$0xf]
      %v413 = vld [vmem:[%s2] sm:$0x1]
      %v415 = vlaneseq
      %v416 = vshrl.u32 %v415, 7
      %v417 = vsub.s32 0, %v416
      %v418 = vrot.slane %v413, %v417
      %v423 = vunpack.c.l.b16 %v394
      %v424 = vunpack.c.l.b16 %v395
      %v425 = vunpack.c.l.b16 %v396
      %v426 = vpack.c.b16 %v424, %v423
      %v427 = vpack.c.b16 %v425, %v425
      %v446 = vunpack.c.l.b16 %v397
      %v447 = vunpack.c.l.b16 %v398
      %v448 = vunpack.c.l.b16 %v399
      %v449 = vunpack.c.l.b16 %v400
      %v450 = vunpack.c.l.b16 %v401
      %v451 = vunpack.c.l.b16 %v402
      %v452 = vunpack.c.l.b16 %v403
      %v453 = vunpack.c.l.b16 %v404
      %v454 = vunpack.c.l.b16 %v405
      %v455 = vunpack.c.l.b16 %v406
      %v456 = vunpack.c.l.b16 %v407
      %v457 = vunpack.c.l.b16 %v408
      %v458 = vunpack.c.l.b16 %v409
      %v459 = vunpack.c.l.b16 %v410
      %v460 = vunpack.c.l.b16 %v411
      %v461 = vunpack.c.l.b16 %v412
      %v462 = vpack.c.b16 %v447, %v446
      %v463 = vpack.c.b16 %v449, %v448
      %v464 = vpack.c.b16 %v451, %v450
      %v465 = vpack.c.b16 %v453, %v452
      %v466 = vpack.c.b16 %v455, %v454
      %v467 = vpack.c.b16 %v457, %v456
      %v468 = vpack.c.b16 %v459, %v458
      %v469 = vpack.c.b16 %v461, %v460
      %478 = vmatprep.subr.bf16.mxu0 0
      %479 = vmatpush1.bf16.msra.mxu0 %v462
      %480 = vmatprep.subr.bf16.mxu0 0
      %481 = vmatpush1.bf16.msra.mxu0 %v463
      %482 = vmatprep.subr.bf16.mxu0 0
      %483 = vmatpush1.bf16.msra.mxu0 %v464
      %484 = vmatprep.subr.bf16.mxu0 0
      %485 = vmatpush1.bf16.msra.mxu0 %v465
      %486 = vmatprep.subr.bf16.mxu0 0
      %487 = vmatpush1.bf16.msra.mxu0 %v466
      %488 = vmatprep.subr.bf16.mxu0 0
      %489 = vmatpush1.bf16.msra.mxu0 %v467
      %490 = vmatprep.subr.bf16.mxu0 0
      %491 = vmatpush1.bf16.msra.mxu0 %v468
      %492 = vmatprep.subr.bf16.mxu0 0
      %493 = vmatpush1.bf16.msra.mxu0 %v469
      %494 = vmatprep.subr.bf16.mxu0 0
      %495 = vmatpush1.bf16.msra.mxu0 0
      %496 = vmatprep.subr.bf16.mxu0 0
      %497 = vmatpush1.bf16.msra.mxu0 0
      %498 = vmatprep.subr.bf16.mxu0 0
      %499 = vmatpush1.bf16.msra.mxu0 0
      %500 = vmatprep.subr.bf16.mxu0 0
      %501 = vmatpush1.bf16.msra.mxu0 0
      %502 = vmatprep.subr.bf16.mxu0 0
      %503 = vmatpush1.bf16.msra.mxu0 0
      %504 = vmatprep.subr.bf16.mxu0 0
      %505 = vmatpush1.bf16.msra.mxu0 0
      %506 = vmatprep.subr.bf16.mxu0 0
      %507 = vmatpush1.bf16.msra.mxu0 0
      %508 = vmatprep.subr.bf16.mxu0 0
      %509 = vmatpush1.bf16.msra.mxu0 0
      %510 = vmatprep.mubr.bf16.mxu0 0
      %511 = vmatmul.mubr.bf16.gmra.mrb[0].mxu0 %v426
      %v512 = vpop.f32.mrb[0].mxu0
      %v513 = vadd.f32 %v418, %v512
      %v514 = vpop.f32.mrb[0].mxu0
      %v515 = vpop.f32.mrb[0].mxu0
      %v516 = vadd.f32 %v418, %v515
      %v517 = vpop.f32.mrb[0].mxu0
      %518 = vmatprep.mubr.bf16.mxu0 0
      %519 = vmatmul.mubr.bf16.gmra.mrb[0].mxu0 %v427
      %v520 = vpop.f32.mrb[0].mxu0
      %v521 = vadd.f32 %v418, %v520
      %v522 = vpop.f32.mrb[0].mxu0
      %v523 = vpop.f32.mrb[0].mxu0
      %v524 = vpop.f32.mrb[0].mxu0
      %525 = vdwg.mxu0
      %v526 = vmax.f32 %v513, 0.0
      %v527 = vmax.f32 %v516, 0.0
      %v528 = vmax.f32 %v521, 0.0
      %v529 = vsel %vm391, 1, 0
      %v530 = vsel %vm392, 1, 0
      %v531 = vsel %vm393, 1, 0
      %vm532 = vcmp.eq.s32.totalorder %v529, 1
      %vm533 = vcmp.eq.s32.totalorder %v530, 1
      %vm534 = vcmp.eq.s32.totalorder %v531, 1
      %v535 = vsel %vm532, %v526, 0.0
      %v536 = vsel %vm533, %v527, 0.0
      %v537 = vsel %vm534, %v528, 0.0
      %v538 = vpack.c.bf16 %v536, %v535
      %v539 = vpack.c.bf16 %v537, %v537
      %v542 = vunpack.c.l.b16 %v538
      %v543 = vunpack.c.h.b16 %v538
      %v544 = vunpack.c.l.b16 %v539
      %v545 = vpack.c.b16 %v542, %v542
      %v546 = vpack.c.b16 %v543, %v543
      %v547 = vpack.c.b16 %v544, %v544
      %551 = vst [vmem:[#allocation3] sm:$0xf] %v545
      %552 = vst [vmem:[#allocation3 + $0x4] sm:$0xf] %v546
      %553 = vst [vmem:[#allocation3 + $0x8] sm:$0xf] %v547
      %v554 = vld [vmem:[#allocation3] sm:$0xf]
      %v555 = vld [vmem:[#allocation3 + $0x4] sm:$0xf]
      %v556 = vld [vmem:[%s3] sm:$0xf]
      %v557 = vld [vmem:[%s3 + $0x4] sm:$0xf]
      %v558 = vld [vmem:[%s3 + $0x8] sm:$0xf]
      %v559 = vld [vmem:[%s3 + $0xc] sm:$0xf]
      %v560 = vld [vmem:[%s3 + $0x10] sm:$0xf]
      %v561 = vld [vmem:[%s3 + $0x14] sm:$0xf]
      %v562 = vld [vmem:[%s3 + $0x18] sm:$0xf]
      %v563 = vld [vmem:[%s3 + $0x1c] sm:$0xf]
      %v564 = vld [vmem:[%s3 + $0x20] sm:$0xf]
      %v565 = vld [vmem:[%s3 + $0x24] sm:$0xf]
      %v566 = vld [vmem:[%s3 + $0x28] sm:$0xf]
      %v567 = vld [vmem:[%s3 + $0x2c] sm:$0xf]
      %v568 = vld [vmem:[%s3 + $0x30] sm:$0xf]
      %v569 = vld [vmem:[%s3 + $0x34] sm:$0xf]
      %v570 = vld [vmem:[%s3 + $0x38] sm:$0xf]
      %v571 = vld [vmem:[%s3 + $0x3c] sm:$0xf]
      %v572 = vld [vmem:[#allocation3] sm:$0xf]
      %v573 = vld [vmem:[#allocation3 + $0x4] sm:$0xf]
      %v574 = vld [vmem:[#allocation3 + $0x8] sm:$0x1]
      %s575 = scalar_lea.vmem %s3, 64
      %v576 = vld [vmem:[%s575] sm:$0xf]
      %v577 = vld [vmem:[%s575 + $0x4] sm:$0xf]
      %v578 = vld [vmem:[%s575 + $0x8] sm:$0xf]
      %v579 = vld [vmem:[%s575 + $0xc] sm:$0xf]
      %v580 = vld [vmem:[%s575 + $0x10] sm:$0xf]
      %v581 = vld [vmem:[%s575 + $0x14] sm:$0xf]
      %v582 = vld [vmem:[%s575 + $0x18] sm:$0xf]
      %v583 = vld [vmem:[%s575 + $0x1c] sm:$0xf]
      %v584 = vld [vmem:[%s575 + $0x20] sm:$0xf]
      %v585 = vld [vmem:[%s575 + $0x24] sm:$0xf]
      %v586 = vld [vmem:[%s575 + $0x28] sm:$0xf]
      %v587 = vld [vmem:[%s575 + $0x2c] sm:$0xf]
      %v588 = vld [vmem:[%s575 + $0x30] sm:$0xf]
      %v589 = vld [vmem:[%s575 + $0x34] sm:$0xf]
      %v590 = vld [vmem:[%s575 + $0x38] sm:$0xf]
      %v591 = vld [vmem:[%s575 + $0x3c] sm:$0xf]
      %v595 = vunpack.c.l.b16 %v572
      %v596 = vunpack.c.l.b16 %v573
      %v597 = vunpack.c.l.b16 %v574
      %v598 = vpack.c.b16 %v596, %v595
      %v599 = vpack.c.b16 %v597, %v597
      %vm600 = vsmask.f32 7424
      %v602 = vshrl.u32 %v598, 16
      %v604 = vshll.u32 %v598, 16
      %v606 = vrot.slane %v604, 1
      %v607 = vor.u32 %v602, %v606
      %v609 = vshll.u32 %v599, 16
      %v611 = vrot.slane %v609, 1
      %v612 = vsel %vm600, %v607, %v611
      %v630 = vunpack.c.l.b16 %v576
      %v631 = vunpack.c.l.b16 %v577
      %v632 = vunpack.c.l.b16 %v578
      %v633 = vunpack.c.l.b16 %v579
      %v634 = vunpack.c.l.b16 %v580
      %v635 = vunpack.c.l.b16 %v581
      %v636 = vunpack.c.l.b16 %v582
      %v637 = vunpack.c.l.b16 %v583
      %v638 = vunpack.c.l.b16 %v584
      %v639 = vunpack.c.l.b16 %v585
      %v640 = vunpack.c.l.b16 %v586
      %v641 = vunpack.c.l.b16 %v587
      %v642 = vunpack.c.l.b16 %v588
      %v643 = vunpack.c.l.b16 %v589
      %v644 = vunpack.c.l.b16 %v590
      %v645 = vunpack.c.l.b16 %v591
      %v646 = vpack.c.b16 %v631, %v630
      %v647 = vpack.c.b16 %v633, %v632
      %v648 = vpack.c.b16 %v635, %v634
      %v649 = vpack.c.b16 %v637, %v636
      %v650 = vpack.c.b16 %v639, %v638
      %v651 = vpack.c.b16 %v641, %v640
      %v652 = vpack.c.b16 %v643, %v642
      %v653 = vpack.c.b16 %v645, %v644
      %662 = vmatprep.subr.bf16.mxu0 0
      %663 = vmatpush1.bf16.msra.mxu0 %v646
      %664 = vmatprep.subr.bf16.mxu0 0
      %665 = vmatpush1.bf16.msra.mxu0 %v647
      %666 = vmatprep.subr.bf16.mxu0 0
      %667 = vmatpush1.bf16.msra.mxu0 %v648
      %668 = vmatprep.subr.bf16.mxu0 0
      %669 = vmatpush1.bf16.msra.mxu0 %v649
      %670 = vmatprep.subr.bf16.mxu0 0
      %671 = vmatpush1.bf16.msra.mxu0 %v650
      %672 = vmatprep.subr.bf16.mxu0 0
      %673 = vmatpush1.bf16.msra.mxu0 %v651
      %674 = vmatprep.subr.bf16.mxu0 0
      %675 = vmatpush1.bf16.msra.mxu0 %v652
      %676 = vmatprep.subr.bf16.mxu0 0
      %677 = vmatpush1.bf16.msra.mxu0 %v653
      %678 = vmatprep.subr.bf16.mxu0 0
      %679 = vmatpush1.bf16.msra.mxu0 0
      %680 = vmatprep.subr.bf16.mxu0 0
      %681 = vmatpush1.bf16.msra.mxu0 0
      %682 = vmatprep.subr.bf16.mxu0 0
      %683 = vmatpush1.bf16.msra.mxu0 0
      %684 = vmatprep.subr.bf16.mxu0 0
      %685 = vmatpush1.bf16.msra.mxu0 0
      %686 = vmatprep.subr.bf16.mxu0 0
      %687 = vmatpush1.bf16.msra.mxu0 0
      %688 = vmatprep.subr.bf16.mxu0 0
      %689 = vmatpush1.bf16.msra.mxu0 0
      %690 = vmatprep.subr.bf16.mxu0 0
      %691 = vmatpush1.bf16.msra.mxu0 0
      %692 = vmatprep.subr.bf16.mxu0 0
      %693 = vmatpush1.bf16.msra.mxu0 0
      %694 = vmatprep.mubr.bf16.mxu0 0
      %695 = vmatmul.mubr.bf16.gmra.mrb[0].mxu0 %v612
      %v696 = vpop.f32.mrb[0].mxu0
      %v697 = vadd.f32 0.0, %v696
      %v698 = vpop.f32.mrb[0].mxu0
      %v699 = vpop.f32.mrb[0].mxu0
      %v700 = vadd.f32 0.0, %v699
      %v701 = vpop.f32.mrb[0].mxu0
      %702 = vdwg.mxu0
      %v705 = vunpack.c.l.b16 %v554
      %v706 = vunpack.c.l.b16 %v555
      %v707 = vpack.c.b16 %v706, %v705
      %v725 = vunpack.c.l.b16 %v556
      %v726 = vunpack.c.l.b16 %v557
      %v727 = vunpack.c.l.b16 %v558
      %v728 = vunpack.c.l.b16 %v559
      %v729 = vunpack.c.l.b16 %v560
      %v730 = vunpack.c.l.b16 %v561
      %v731 = vunpack.c.l.b16 %v562
      %v732 = vunpack.c.l.b16 %v563
      %v733 = vunpack.c.l.b16 %v564
      %v734 = vunpack.c.l.b16 %v565
      %v735 = vunpack.c.l.b16 %v566
      %v736 = vunpack.c.l.b16 %v567
      %v737 = vunpack.c.l.b16 %v568
      %v738 = vunpack.c.l.b16 %v569
      %v739 = vunpack.c.l.b16 %v570
      %v740 = vunpack.c.l.b16 %v571
      %v741 = vpack.c.b16 %v726, %v725
      %v742 = vpack.c.b16 %v728, %v727
      %v743 = vpack.c.b16 %v730, %v729
      %v744 = vpack.c.b16 %v732, %v731
      %v745 = vpack.c.b16 %v734, %v733
      %v746 = vpack.c.b16 %v736, %v735
      %v747 = vpack.c.b16 %v738, %v737
      %v748 = vpack.c.b16 %v740, %v739
      %757 = vmatprep.subr.bf16.mxu0 0
      %758 = vmatpush1.bf16.msra.mxu0 %v741
      %759 = vmatprep.subr.bf16.mxu0 0
      %760 = vmatpush1.bf16.msra.mxu0 %v742
      %761 = vmatprep.subr.bf16.mxu0 0
      %762 = vmatpush1.bf16.msra.mxu0 %v743
      %763 = vmatprep.subr.bf16.mxu0 0
      %764 = vmatpush1.bf16.msra.mxu0 %v744
      %765 = vmatprep.subr.bf16.mxu0 0
      %766 = vmatpush1.bf16.msra.mxu0 %v745
      %767 = vmatprep.subr.bf16.mxu0 0
      %768 = vmatpush1.bf16.msra.mxu0 %v746
      %769 = vmatprep.subr.bf16.mxu0 0
      %770 = vmatpush1.bf16.msra.mxu0 %v747
      %771 = vmatprep.subr.bf16.mxu0 0
      %772 = vmatpush1.bf16.msra.mxu0 %v748
      %773 = vmatprep.subr.bf16.mxu0 0
      %774 = vmatpush1.bf16.msra.mxu0 0
      %775 = vmatprep.subr.bf16.mxu0 0
      %776 = vmatpush1.bf16.msra.mxu0 0
      %777 = vmatprep.subr.bf16.mxu0 0
      %778 = vmatpush1.bf16.msra.mxu0 0
      %779 = vmatprep.subr.bf16.mxu0 0
      %780 = vmatpush1.bf16.msra.mxu0 0
      %781 = vmatprep.subr.bf16.mxu0 0
      %782 = vmatpush1.bf16.msra.mxu0 0
      %783 = vmatprep.subr.bf16.mxu0 0
      %784 = vmatpush1.bf16.msra.mxu0 0
      %785 = vmatprep.subr.bf16.mxu0 0
      %786 = vmatpush1.bf16.msra.mxu0 0
      %787 = vmatprep.subr.bf16.mxu0 0
      %788 = vmatpush1.bf16.msra.mxu0 0
      %789 = vmatprep.mubr.bf16.mxu0 0
      %790 = vmatmul.mubr.bf16.gmra.mrb[0].mxu0 %v707
      %v791 = vpop.f32.mrb[0].mxu0
      %v792 = vadd.f32 %v697, %v791
      %v793 = vpop.f32.mrb[0].mxu0
      %v794 = vpop.f32.mrb[0].mxu0
      %v795 = vadd.f32 %v700, %v794
      %v796 = vpop.f32.mrb[0].mxu0
      %797 = vdwg.mxu0
      %v798 = vld [vmem:[#allocation3] sm:$0xe]
      %s799 = scalar_lea.vmem %s3, 128
      %v800 = vld [vmem:[%s799] sm:$0xf]
      %v801 = vld [vmem:[%s799 + $0x4] sm:$0xf]
      %v802 = vld [vmem:[%s799 + $0x8] sm:$0xf]
      %v803 = vld [vmem:[%s799 + $0xc] sm:$0xf]
      %v804 = vld [vmem:[%s799 + $0x10] sm:$0xf]
      %v805 = vld [vmem:[%s799 + $0x14] sm:$0xf]
      %v806 = vld [vmem:[%s799 + $0x18] sm:$0xf]
      %v807 = vld [vmem:[%s799 + $0x1c] sm:$0xf]
      %v808 = vld [vmem:[%s799 + $0x20] sm:$0xf]
      %v809 = vld [vmem:[%s799 + $0x24] sm:$0xf]
      %v810 = vld [vmem:[%s799 + $0x28] sm:$0xf]
      %v811 = vld [vmem:[%s799 + $0x2c] sm:$0xf]
      %v812 = vld [vmem:[%s799 + $0x30] sm:$0xf]
      %v813 = vld [vmem:[%s799 + $0x34] sm:$0xf]
      %v814 = vld [vmem:[%s799 + $0x38] sm:$0xf]
      %v815 = vld [vmem:[%s799 + $0x3c] sm:$0xf]
      %v817 = vunpack.c.l.b16 %v798
      %v818 = vpack.c.b16 %v596, %v817
      %vm819 = vcmask 1046528
      %v820 = vrot.slane %v818, 1
      %v821 = vrot.slane %v599, 1
      %v822 = vsel %vm819, %v820, %v821
      %v840 = vunpack.c.l.b16 %v800
      %v841 = vunpack.c.l.b16 %v801
      %v842 = vunpack.c.l.b16 %v802
      %v843 = vunpack.c.l.b16 %v803
      %v844 = vunpack.c.l.b16 %v804
      %v845 = vunpack.c.l.b16 %v805
      %v846 = vunpack.c.l.b16 %v806
      %v847 = vunpack.c.l.b16 %v807
      %v848 = vunpack.c.l.b16 %v808
      %v849 = vunpack.c.l.b16 %v809
      %v850 = vunpack.c.l.b16 %v810
      %v851 = vunpack.c.l.b16 %v811
      %v852 = vunpack.c.l.b16 %v812
      %v853 = vunpack.c.l.b16 %v813
      %v854 = vunpack.c.l.b16 %v814
      %v855 = vunpack.c.l.b16 %v815
      %v856 = vpack.c.b16 %v841, %v840
      %v857 = vpack.c.b16 %v843, %v842
      %v858 = vpack.c.b16 %v845, %v844
      %v859 = vpack.c.b16 %v847, %v846
      %v860 = vpack.c.b16 %v849, %v848
      %v861 = vpack.c.b16 %v851, %v850
      %v862 = vpack.c.b16 %v853, %v852
      %v863 = vpack.c.b16 %v855, %v854
      %872 = vmatprep.subr.bf16.mxu0 0
      %873 = vmatpush1.bf16.msra.mxu0 %v856
      %874 = vmatprep.subr.bf16.mxu0 0
      %875 = vmatpush1.bf16.msra.mxu0 %v857
      %876 = vmatprep.subr.bf16.mxu0 0
      %877 = vmatpush1.bf16.msra.mxu0 %v858
      %878 = vmatprep.subr.bf16.mxu0 0
      %879 = vmatpush1.bf16.msra.mxu0 %v859
      %880 = vmatprep.subr.bf16.mxu0 0
      %881 = vmatpush1.bf16.msra.mxu0 %v860
      %882 = vmatprep.subr.bf16.mxu0 0
      %883 = vmatpush1.bf16.msra.mxu0 %v861
      %884 = vmatprep.subr.bf16.mxu0 0
      %885 = vmatpush1.bf16.msra.mxu0 %v862
      %886 = vmatprep.subr.bf16.mxu0 0
      %887 = vmatpush1.bf16.msra.mxu0 %v863
      %888 = vmatprep.subr.bf16.mxu0 0
      %889 = vmatpush1.bf16.msra.mxu0 0
      %890 = vmatprep.subr.bf16.mxu0 0
      %891 = vmatpush1.bf16.msra.mxu0 0
      %892 = vmatprep.subr.bf16.mxu0 0
      %893 = vmatpush1.bf16.msra.mxu0 0
      %894 = vmatprep.subr.bf16.mxu0 0
      %895 = vmatpush1.bf16.msra.mxu0 0
      %896 = vmatprep.subr.bf16.mxu0 0
      %897 = vmatpush1.bf16.msra.mxu0 0
      %898 = vmatprep.subr.bf16.mxu0 0
      %899 = vmatpush1.bf16.msra.mxu0 0
      %900 = vmatprep.subr.bf16.mxu0 0
      %901 = vmatpush1.bf16.msra.mxu0 0
      %902 = vmatprep.subr.bf16.mxu0 0
      %903 = vmatpush1.bf16.msra.mxu0 0
      %904 = vmatprep.mubr.bf16.mxu0 0
      %905 = vmatmul.mubr.bf16.gmra.mrb[0].mxu0 %v822
      %v906 = vpop.f32.mrb[0].mxu0
      %v907 = vadd.f32 0.0, %v906
      %v908 = vpop.f32.mrb[0].mxu0
      %v909 = vpop.f32.mrb[0].mxu0
      %v910 = vadd.f32 0.0, %v909
      %v911 = vpop.f32.mrb[0].mxu0
      %912 = vdwg.mxu0
      %v913 = vadd.f32 %v792, %v907
      %v914 = vadd.f32 %v795, %v910
      %v915 = vld [vmem:[%s4] sm:$0x1]
      %v917 = vlaneseq
      %v918 = vshrl.u32 %v917, 7
      %v919 = vsub.s32 0, %v918
      %v920 = vrot.slane %v915, %v919
      %v922 = vadd.f32 %v913, %v920
      %v923 = vadd.f32 %v914, %v920
      %v924 = vmax.f32 %v922, 0.0
      %v925 = vmax.f32 %v923, 0.0
      %v926 = vpack.c.bf16 %v925, %v924
      %v927 = vld [vmem:[%s5] sm:$0xf]
      %v928 = vld [vmem:[%s5 + $0x4] sm:$0xf]
      %v929 = vld [vmem:[%s5 + $0x8] sm:$0xf]
      %v930 = vld [vmem:[%s5 + $0xc] sm:$0xf]
      %v931 = vld [vmem:[%s5 + $0x10] sm:$0xf]
      %v932 = vld [vmem:[%s5 + $0x14] sm:$0xf]
      %v933 = vld [vmem:[%s5 + $0x18] sm:$0xf]
      %v934 = vld [vmem:[%s5 + $0x1c] sm:$0xf]
      %v935 = vld [vmem:[%s5 + $0x20] sm:$0xf]
      %v936 = vld [vmem:[%s5 + $0x24] sm:$0xf]
      %v937 = vld [vmem:[%s5 + $0x28] sm:$0xf]
      %v938 = vld [vmem:[%s5 + $0x2c] sm:$0xf]
      %v939 = vld [vmem:[%s5 + $0x30] sm:$0xf]
      %v940 = vld [vmem:[%s5 + $0x34] sm:$0xf]
      %v941 = vld [vmem:[%s5 + $0x38] sm:$0xf]
      %v942 = vld [vmem:[%s5 + $0x3c] sm:$0xf]
      %v943 = vld [vmem:[%s6] sm:$0x1]
      %v945 = vlaneseq
      %v946 = vshrl.u32 %v945, 7
      %v947 = vsub.s32 0, %v946
      %v948 = vrot.slane %v943, %v947
      %v966 = vunpack.c.l.b16 %v927
      %v967 = vunpack.c.l.b16 %v928
      %v968 = vunpack.c.l.b16 %v929
      %v969 = vunpack.c.l.b16 %v930
      %v970 = vunpack.c.l.b16 %v931
      %v971 = vunpack.c.l.b16 %v932
      %v972 = vunpack.c.l.b16 %v933
      %v973 = vunpack.c.l.b16 %v934
      %v974 = vunpack.c.l.b16 %v935
      %v975 = vunpack.c.l.b16 %v936
      %v976 = vunpack.c.l.b16 %v937
      %v977 = vunpack.c.l.b16 %v938
      %v978 = vunpack.c.l.b16 %v939
      %v979 = vunpack.c.l.b16 %v940
      %v980 = vunpack.c.l.b16 %v941
      %v981 = vunpack.c.l.b16 %v942
      %v982 = vpack.c.b16 %v967, %v966
      %v983 = vpack.c.b16 %v969, %v968
      %v984 = vpack.c.b16 %v971, %v970
      %v985 = vpack.c.b16 %v973, %v972
      %v986 = vpack.c.b16 %v975, %v974
      %v987 = vpack.c.b16 %v977, %v976
      %v988 = vpack.c.b16 %v979, %v978
      %v989 = vpack.c.b16 %v981, %v980
      %998 = vmatprep.subr.bf16.mxu0 0
      %999 = vmatpush1.bf16.msra.mxu0 %v982
      %1000 = vmatprep.subr.bf16.mxu0 0
      %1001 = vmatpush1.bf16.msra.mxu0 %v983
      %1002 = vmatprep.subr.bf16.mxu0 0
      %1003 = vmatpush1.bf16.msra.mxu0 %v984
      %1004 = vmatprep.subr.bf16.mxu0 0
      %1005 = vmatpush1.bf16.msra.mxu0 %v985
      %1006 = vmatprep.subr.bf16.mxu0 0
      %1007 = vmatpush1.bf16.msra.mxu0 %v986
      %1008 = vmatprep.subr.bf16.mxu0 0
      %1009 = vmatpush1.bf16.msra.mxu0 %v987
      %1010 = vmatprep.subr.bf16.mxu0 0
      %1011 = vmatpush1.bf16.msra.mxu0 %v988
      %1012 = vmatprep.subr.bf16.mxu0 0
      %1013 = vmatpush1.bf16.msra.mxu0 %v989
      %1014 = vmatprep.subr.bf16.mxu0 0
      %1015 = vmatpush1.bf16.msra.mxu0 0
      %1016 = vmatprep.subr.bf16.mxu0 0
      %1017 = vmatpush1.bf16.msra.mxu0 0
      %1018 = vmatprep.subr.bf16.mxu0 0
      %1019 = vmatpush1.bf16.msra.mxu0 0
      %1020 = vmatprep.subr.bf16.mxu0 0
      %1021 = vmatpush1.bf16.msra.mxu0 0
      %1022 = vmatprep.subr.bf16.mxu0 0
      %1023 = vmatpush1.bf16.msra.mxu0 0
      %1024 = vmatprep.subr.bf16.mxu0 0
      %1025 = vmatpush1.bf16.msra.mxu0 0
      %1026 = vmatprep.subr.bf16.mxu0 0
      %1027 = vmatpush1.bf16.msra.mxu0 0
      %1028 = vmatprep.subr.bf16.mxu0 0
      %1029 = vmatpush1.bf16.msra.mxu0 0
      %1030 = vmatprep.mubr.bf16.mxu0 0
      %1031 = vmatmul.mubr.bf16.gmra.mrb[0].mxu0 %v926
      %v1032 = vpop.f32.mrb[0].mxu0
      %v1033 = vadd.f32 %v948, %v1032
      %v1034 = vpop.f32.mrb[0].mxu0
      %v1035 = vpop.f32.mrb[0].mxu0
      %v1036 = vadd.f32 %v948, %v1035
      %v1037 = vpop.f32.mrb[0].mxu0
      %1038 = vdwg.mxu0
      %v1039 = vld [vmem:[#allocation2] sm:$0xf]
      %v1040 = vld [vmem:[#allocation2 + $0x4] sm:$0xf]
      %v1041 = vld [vmem:[#allocation2 + $0x8] sm:$0x1]
      %v1042 = vld [vmem:[%s7] sm:$0xf]
      %v1043 = vld [vmem:[%s7 + $0x4] sm:$0xf]
      %v1044 = vld [vmem:[%s7 + $0x8] sm:$0xf]
      %v1045 = vld [vmem:[%s7 + $0xc] sm:$0xf]
      %v1046 = vld [vmem:[%s7 + $0x10] sm:$0xf]
      %v1047 = vld [vmem:[%s7 + $0x14] sm:$0xf]
      %v1048 = vld [vmem:[%s7 + $0x18] sm:$0xf]
      %v1049 = vld [vmem:[%s7 + $0x1c] sm:$0xf]
      %v1050 = vld [vmem:[%s7 + $0x20] sm:$0xf]
      %v1051 = vld [vmem:[%s7 + $0x24] sm:$0xf]
      %v1052 = vld [vmem:[%s7 + $0x28] sm:$0xf]
      %v1053 = vld [vmem:[%s7 + $0x2c] sm:$0xf]
      %v1054 = vld [vmem:[%s7 + $0x30] sm:$0xf]
      %v1055 = vld [vmem:[%s7 + $0x34] sm:$0xf]
      %v1056 = vld [vmem:[%s7 + $0x38] sm:$0xf]
      %v1057 = vld [vmem:[%s7 + $0x3c] sm:$0xf]
      %v1058 = vld [vmem:[%s8] sm:$0x1]
      %v1060 = vlaneseq
      %v1061 = vshrl.u32 %v1060, 7
      %v1062 = vsub.s32 0, %v1061
      %v1063 = vrot.slane %v1058, %v1062
      %v1068 = vunpack.c.l.b16 %v1039
      %v1069 = vunpack.c.l.b16 %v1040
      %v1070 = vunpack.c.l.b16 %v1041
      %v1071 = vpack.c.b16 %v1069, %v1068
      %v1072 = vpack.c.b16 %v1070, %v1070
      %v1074 = vshrl.u32 %v1071, 16
      %v1076 = vshll.u32 %v1071, 16
      %v1078 = vrot.slane %v1076, 1
      %v1079 = vor.u32 %v1074, %v1078
      %v1081 = vshll.u32 %v1072, 16
      %v1083 = vrot.slane %v1081, 1
      %v1084 = vsel %vm600, %v1079, %v1083
      %v1102 = vunpack.c.l.b16 %v1042
      %v1103 = vunpack.c.l.b16 %v1043
      %v1104 = vunpack.c.l.b16 %v1044
      %v1105 = vunpack.c.l.b16 %v1045
      %v1106 = vunpack.c.l.b16 %v1046
      %v1107 = vunpack.c.l.b16 %v1047
      %v1108 = vunpack.c.l.b16 %v1048
      %v1109 = vunpack.c.l.b16 %v1049
      %v1110 = vunpack.c.l.b16 %v1050
      %v1111 = vunpack.c.l.b16 %v1051
      %v1112 = vunpack.c.l.b16 %v1052
      %v1113 = vunpack.c.l.b16 %v1053
      %v1114 = vunpack.c.l.b16 %v1054
      %v1115 = vunpack.c.l.b16 %v1055
      %v1116 = vunpack.c.l.b16 %v1056
      %v1117 = vunpack.c.l.b16 %v1057
      %v1118 = vpack.c.b16 %v1103, %v1102
      %v1119 = vpack.c.b16 %v1105, %v1104
      %v1120 = vpack.c.b16 %v1107, %v1106
      %v1121 = vpack.c.b16 %v1109, %v1108
      %v1122 = vpack.c.b16 %v1111, %v1110
      %v1123 = vpack.c.b16 %v1113, %v1112
      %v1124 = vpack.c.b16 %v1115, %v1114
      %v1125 = vpack.c.b16 %v1117, %v1116
      %1134 = vmatprep.subr.bf16.mxu0 0
      %1135 = vmatpush1.bf16.msra.mxu0 %v1118
      %1136 = vmatprep.subr.bf16.mxu0 0
      %1137 = vmatpush1.bf16.msra.mxu0 %v1119
      %1138 = vmatprep.subr.bf16.mxu0 0
      %1139 = vmatpush1.bf16.msra.mxu0 %v1120
      %1140 = vmatprep.subr.bf16.mxu0 0
      %1141 = vmatpush1.bf16.msra.mxu0 %v1121
      %1142 = vmatprep.subr.bf16.mxu0 0
      %1143 = vmatpush1.bf16.msra.mxu0 %v1122
      %1144 = vmatprep.subr.bf16.mxu0 0
      %1145 = vmatpush1.bf16.msra.mxu0 %v1123
      %1146 = vmatprep.subr.bf16.mxu0 0
      %1147 = vmatpush1.bf16.msra.mxu0 %v1124
      %1148 = vmatprep.subr.bf16.mxu0 0
      %1149 = vmatpush1.bf16.msra.mxu0 %v1125
      %1150 = vmatprep.subr.bf16.mxu0 0
      %1151 = vmatpush1.bf16.msra.mxu0 0
      %1152 = vmatprep.subr.bf16.mxu0 0
      %1153 = vmatpush1.bf16.msra.mxu0 0
      %1154 = vmatprep.subr.bf16.mxu0 0
      %1155 = vmatpush1.bf16.msra.mxu0 0
      %1156 = vmatprep.subr.bf16.mxu0 0
      %1157 = vmatpush1.bf16.msra.mxu0 0
      %1158 = vmatprep.subr.bf16.mxu0 0
      %1159 = vmatpush1.bf16.msra.mxu0 0
      %1160 = vmatprep.subr.bf16.mxu0 0
      %1161 = vmatpush1.bf16.msra.mxu0 0
      %1162 = vmatprep.subr.bf16.mxu0 0
      %1163 = vmatpush1.bf16.msra.mxu0 0
      %1164 = vmatprep.subr.bf16.mxu0 0
      %1165 = vmatpush1.bf16.msra.mxu0 0
      %1166 = vmatprep.mubr.bf16.mxu0 0
      %1167 = vmatmul.mubr.bf16.gmra.mrb[0].mxu0 %v1084
      %v1168 = vpop.f32.mrb[0].mxu0
      %v1169 = vadd.f32 %v1063, %v1168
      %v1170 = vpop.f32.mrb[0].mxu0
      %v1171 = vpop.f32.mrb[0].mxu0
      %v1172 = vadd.f32 %v1063, %v1171
      %v1173 = vpop.f32.mrb[0].mxu0
      %1174 = vdwg.mxu0
      %v1175 = vadd.f32 %v1033, %v1169
      %v1176 = vadd.f32 %v1036, %v1172
      %v1177 = vmax.f32 %v1175, 0.0
      %v1178 = vmax.f32 %v1176, 0.0
      %v1179 = vpack.c.bf16 %v1178, %v1177
      %v1181 = vunpack.c.l.b16 %v1179
      %v1182 = vunpack.c.h.b16 %v1179
      %v1183 = vpack.c.b16 %v1181, %v1181
      %v1184 = vpack.c.b16 %v1182, %v1182
      %1187 = vst [vmem:[%s308] sm:$0xf] %v1183
      %1188 = vst [vmem:[%s308 + $0x4] sm:$0xf] %v1184
      %s1189 = smul.u32 2, %s25
      %p1190 = scmp.lt.s32.totalorder %s24, 1
      %s1191 = scalar_select %p1190, %s24, 1
      %p1192 = scmp.lt.s32.totalorder %s1189, 1
      %s1193 = scalar_select %p1192, %s1189, 1
      %s1194 = smul.addr %s1191, 2
      %s1195 = sadd.s32 %s1193, %s1194
      %s1196 = smul.addr %s1195, 4
      %s1197 = scalar_lea.vmem %s9, %s1196
      // Predicated region
      $region90: #{_lambda_.5} parent=51 // pred_check
        %p1198 = pneg %p220
      $region91: #{_lambda_.5} parent=51 // pred_check_branch
        %1200 = sbr.rel (%p1198) target = $region93
      $region92: #{_lambda_.5} parent=51 // pred_region
        %s1201 = smul.u32 2, %s25
      $region93: #{_lambda_.5} parent=51 // pred_fallthru
        _
    $region52: #{_lambda_.5} parent=5 // pred_fallthru
      _
    %p1202 = scmp.le.s32.totalorder 2, %s15
    // Predicated region
    $region94: #{_lambda_.5} parent=5 // pred_check
      %p1203 = pneg %p1202
    $region95: #{_lambda_.5} parent=5 // pred_check_branch
      %1205 = sbr.rel (%p1203) target = $region97
    $region96: #{_lambda_.5} parent=5 // pred_region
      %s1206 = ssub.s32 %s15, 2
      // Predicated region
      $region98: #{_lambda_.5} parent=96 // pred_check
        %p1207 = pneg %p226
      $region99: #{_lambda_.5} parent=96 // pred_check_branch
        %1209 = sbr.rel (%p1207) target = $region101
      $region100: #{_lambda_.5} parent=96 // pred_region
        %s1210 = smul.u32 2, %s27
        %p1211 = scmp.lt.s32.totalorder %s26, 1
        %s1212 = scalar_select %p1211, %s26, 1
        %p1213 = scmp.lt.s32.totalorder %s1210, 1
        %s1214 = scalar_select %p1213, %s1210, 1
        %s1215 = smul.addr %s1212, 2
        %s1216 = sadd.s32 %s1214, %s1215
        %s1217 = smul.addr %s1216, 4
        %s1218 = scalar_lea.vmem %s9, %s1217
      $region101: #{_lambda_.5} parent=96 // pred_fallthru
        _
    $region97: #{_lambda_.5} parent=5 // pred_fallthru
      _
  $region6: #{_lambda_.5} parent=0 // loop_footer
    %s19 = sadd.s32 1, %s15
  $region7: #{_lambda_.5} parent=0 // loop_footer_branch
    %14 = sbr.rel target = $region3
  $region8: #{_lambda_.5} parent=0 // loop_exit
    _
  %1219 = vsyncmov [#allocation4]
  %s1220 = vpop.sfrf %1219
  %p1221 = scmp.eq.s32.totalorder %s1220, 0
  %p1222 = pneg %p1221
  %1224 = shalt.err (%p1222)

// kernel: _lambda_.7
$region0: #{_lambda_.7}
  #allocation0 [shape = 'u32[]', space=smem, size = 0x4, offset = 0x4, fixed_abs, tag = 'smem constant byte address 0x4 - core index']
  #allocation1 [shape = 'u32[144,128]{1,0:T(1,128)}', space=vmem, size = 0x12000, scoped, tag = 'internal scratch']
  #allocation2 [shape = 'bf16[2,16,128]{2,1,0:T(16,128)(2,1)}', space=vmem, size = 0x2000, scoped, tag = 'scratch operand']
  #allocation3 [shape = 'bf16[2,16,128]{2,1,0:T(16,128)(2,1)}', space=vmem, size = 0x2000, scoped, tag = 'scratch operand']
  #allocation4 [shape = 's32[1]{0}', space=sflag, size = 0x4, scoped, tag = 'scratch operand']
  #allocation5 [shape = 's32[]', space=sflag, size = 0x4, offset = 0, fixed_abs, tag = 'sflag constant byte address 0x0 - dummy sync flag']
  %s0 = inlined_call_operand.vmem [shape: bf16[2,2,16,128], index: 0, kind: input, shape index: {}]
  %s1 = inlined_call_operand.vmem [shape: bf16[128,128], index: 1, kind: input, shape index: {}]
  %s2 = inlined_call_operand.vmem [shape: f32[1,128], index: 2, kind: input, shape index: {}]
  %s3 = inlined_call_operand.vmem [shape: bf16[3,128,128], index: 3, kind: input, shape index: {}]
  %s4 = inlined_call_operand.vmem [shape: f32[1,128], index: 4, kind: input, shape index: {}]
  %s5 = inlined_call_operand.vmem [shape: bf16[128,128], index: 5, kind: input, shape index: {}]
  %s6 = inlined_call_operand.vmem [shape: f32[1,128], index: 6, kind: input, shape index: {}]
  %s7 = inlined_call_operand.vmem [shape: bf16[128,128], index: 7, kind: input, shape index: {}]
  %s8 = inlined_call_operand.vmem [shape: f32[1,128], index: 8, kind: input, shape index: {}]
  %s9 = inlined_call_operand.vmem [shape: bf16[2,8,128], index: 9, kind: output, shape index: {}]
  %s10 = sld [smem:[#allocation0]]
  $region99: #{_lambda_.7} parent=0
    _
  %s12 = ssub.s32 1, %s10
  %s13 = scalar_select 0, %s12, %s10
  loop: start=0, step=1, limit=4
  $region2: #{_lambda_.7} parent=0 // loop_pre_header
    _
  $region3: #{_lambda_.7} parent=0 // loop_header
    %s15 = sphi 0, %s19
    %p16 = scmp.ge.s32.totalorder %s15, 4
    %s22 = sphi 0, %s34
    %s23 = sphi 0, %s30
    %s24 = sphi 0, %s22
    %s25 = sphi 0, %s23
    %s26 = sphi 0, %s24
    %s27 = sphi 0, %s25
    %s35 = sphi 0, %s35
    %s37 = sphi 0, %s35
    %s38 = sphi 0, %s37
    %s52 = sphi 0, %s38
    %s56 = sphi 0, %s56
    %s58 = sphi 0, %s56
    %s59 = sphi 0, %s58
    %s73 = sphi 0, %s59
    %s77 = sphi 0, %s77
    %s79 = sphi 0, %s77
    %s80 = sphi 0, %s79
    %s94 = sphi 0, %s80
    %s98 = sphi 0, %s98
    %s100 = sphi 0, %s98
    %s101 = sphi 0, %s100
    %s115 = sphi 0, %s101
    %s119 = sphi 0, %s119
    %s121 = sphi 0, %s119
    %s122 = sphi 0, %s121
    %s136 = sphi 0, %s122
    %s140 = sphi 0, %s140
    %s142 = sphi 0, %s140
    %s143 = sphi 0, %s142
    %s157 = sphi 0, %s143
    %s161 = sphi 0, %s161
    %s163 = sphi 0, %s161
    %s164 = sphi 0, %s163
    %s178 = sphi 0, %s164
    %s182 = sphi 0, %s182
    %s184 = sphi 0, %s182
    %s185 = sphi 0, %s184
    %s199 = sphi 0, %s185
    %s207 = sphi 0, %s209
    %s210 = sphi 0, %s207
    %s211 = sphi 0, %s210
    %s227 = sphi 0, %s211
  $region4: #{_lambda_.7} parent=0 // loop_header_branch
    %18 = sbr.rel (%p16) target = $region8
  $region5: #{_lambda_.7} parent=0 // loop_body
    %s20 = ssub.s32 %s15, 1
    %s21 = ssub.s32 %s15, 2
    %s28 = sadd.s32 1, %s23
    %p29 = scmp.ge.s32.totalorder %s28, 1
    %s30 = scalar_select %p29, 0, %s28
    %s31 = sadd.s32 1, %s22
    %s32 = scalar_select %p29, %s31, %s22
    %p33 = scmp.ge.s32.totalorder %s32, 2
    %s34 = scalar_select %p33, 0, %s32
    %s36 = sadd.s32 %s35, 1
    %p39 = scmp.eq.s32.totalorder %s15, 1
    %p40 = scmp.ne.s32.totalorder %s35, %s37
    %p41 = scmp.eq.s32.totalorder %s15, 0
    %p42 = por %p40, %p41
    %p43 = scmp.ne.s32.totalorder %s35, %s37
    %p44 = scmp.eq.s32.totalorder %s20, 1
    %p45 = por %p43, %p44
    %p46 = scmp.ne.s32.totalorder %s37, %s38
    %p47 = scmp.eq.s32.totalorder %s20, 0
    %p48 = por %p46, %p47
    %p49 = scmp.ne.s32.totalorder %s37, %s38
    %p50 = scmp.eq.s32.totalorder %s21, 1
    %p51 = por %p49, %p50
    %p53 = scmp.ne.s32.totalorder %s38, %s52
    %p54 = scmp.eq.s32.totalorder %s21, 0
    %p55 = por %p53, %p54
    %s57 = sadd.s32 %s56, 1
    %p60 = scmp.eq.s32.totalorder %s15, 1
    %p61 = scmp.ne.s32.totalorder %s56, %s58
    %p62 = scmp.eq.s32.totalorder %s15, 0
    %p63 = por %p61, %p62
    %p64 = scmp.ne.s32.totalorder %s56, %s58
    %p65 = scmp.eq.s32.totalorder %s20, 1
    %p66 = por %p64, %p65
    %p67 = scmp.ne.s32.totalorder %s58, %s59
    %p68 = scmp.eq.s32.totalorder %s20, 0
    %p69 = por %p67, %p68
    %p70 = scmp.ne.s32.totalorder %s58, %s59
    %p71 = scmp.eq.s32.totalorder %s21, 1
    %p72 = por %p70, %p71
    %p74 = scmp.ne.s32.totalorder %s59, %s73
    %p75 = scmp.eq.s32.totalorder %s21, 0
    %p76 = por %p74, %p75
    %s78 = sadd.s32 %s77, 1
    %p81 = scmp.eq.s32.totalorder %s15, 1
    %p82 = scmp.ne.s32.totalorder %s77, %s79
    %p83 = scmp.eq.s32.totalorder %s15, 0
    %p84 = por %p82, %p83
    %p85 = scmp.ne.s32.totalorder %s77, %s79
    %p86 = scmp.eq.s32.totalorder %s20, 1
    %p87 = por %p85, %p86
    %p88 = scmp.ne.s32.totalorder %s79, %s80
    %p89 = scmp.eq.s32.totalorder %s20, 0
    %p90 = por %p88, %p89
    %p91 = scmp.ne.s32.totalorder %s79, %s80
    %p92 = scmp.eq.s32.totalorder %s21, 1
    %p93 = por %p91, %p92
    %p95 = scmp.ne.s32.totalorder %s80, %s94
    %p96 = scmp.eq.s32.totalorder %s21, 0
    %p97 = por %p95, %p96
    %s99 = sadd.s32 %s98, 1
    %p102 = scmp.eq.s32.totalorder %s15, 1
    %p103 = scmp.ne.s32.totalorder %s98, %s100
    %p104 = scmp.eq.s32.totalorder %s15, 0
    %p105 = por %p103, %p104
    %p106 = scmp.ne.s32.totalorder %s98, %s100
    %p107 = scmp.eq.s32.totalorder %s20, 1
    %p108 = por %p106, %p107
    %p109 = scmp.ne.s32.totalorder %s100, %s101
    %p110 = scmp.eq.s32.totalorder %s20, 0
    %p111 = por %p109, %p110
    %p112 = scmp.ne.s32.totalorder %s100, %s101
    %p113 = scmp.eq.s32.totalorder %s21, 1
    %p114 = por %p112, %p113
    %p116 = scmp.ne.s32.totalorder %s101, %s115
    %p117 = scmp.eq.s32.totalorder %s21, 0
    %p118 = por %p116, %p117
    %s120 = sadd.s32 %s119, 1
    %p123 = scmp.eq.s32.totalorder %s15, 1
    %p124 = scmp.ne.s32.totalorder %s119, %s121
    %p125 = scmp.eq.s32.totalorder %s15, 0
    %p126 = por %p124, %p125
    %p127 = scmp.ne.s32.totalorder %s119, %s121
    %p128 = scmp.eq.s32.totalorder %s20, 1
    %p129 = por %p127, %p128
    %p130 = scmp.ne.s32.totalorder %s121, %s122
    %p131 = scmp.eq.s32.totalorder %s20, 0
    %p132 = por %p130, %p131
    %p133 = scmp.ne.s32.totalorder %s121, %s122
    %p134 = scmp.eq.s32.totalorder %s21, 1
    %p135 = por %p133, %p134
    %p137 = scmp.ne.s32.totalorder %s122, %s136
    %p138 = scmp.eq.s32.totalorder %s21, 0
    %p139 = por %p137, %p138
    %s141 = sadd.s32 %s140, 1
    %p144 = scmp.eq.s32.totalorder %s15, 1
    %p145 = scmp.ne.s32.totalorder %s140, %s142
    %p146 = scmp.eq.s32.totalorder %s15, 0
    %p147 = por %p145, %p146
    %p148 = scmp.ne.s32.totalorder %s140, %s142
    %p149 = scmp.eq.s32.totalorder %s20, 1
    %p150 = por %p148, %p149
    %p151 = scmp.ne.s32.totalorder %s142, %s143
    %p152 = scmp.eq.s32.totalorder %s20, 0
    %p153 = por %p151, %p152
    %p154 = scmp.ne.s32.totalorder %s142, %s143
    %p155 = scmp.eq.s32.totalorder %s21, 1
    %p156 = por %p154, %p155
    %p158 = scmp.ne.s32.totalorder %s143, %s157
    %p159 = scmp.eq.s32.totalorder %s21, 0
    %p160 = por %p158, %p159
    %s162 = sadd.s32 %s161, 1
    %p165 = scmp.eq.s32.totalorder %s15, 1
    %p166 = scmp.ne.s32.totalorder %s161, %s163
    %p167 = scmp.eq.s32.totalorder %s15, 0
    %p168 = por %p166, %p167
    %p169 = scmp.ne.s32.totalorder %s161, %s163
    %p170 = scmp.eq.s32.totalorder %s20, 1
    %p171 = por %p169, %p170
    %p172 = scmp.ne.s32.totalorder %s163, %s164
    %p173 = scmp.eq.s32.totalorder %s20, 0
    %p174 = por %p172, %p173
    %p175 = scmp.ne.s32.totalorder %s163, %s164
    %p176 = scmp.eq.s32.totalorder %s21, 1
    %p177 = por %p175, %p176
    %p179 = scmp.ne.s32.totalorder %s164, %s178
    %p180 = scmp.eq.s32.totalorder %s21, 0
    %p181 = por %p179, %p180
    %s183 = sadd.s32 %s182, 1
    %p186 = scmp.eq.s32.totalorder %s15, 1
    %p187 = scmp.ne.s32.totalorder %s182, %s184
    %p188 = scmp.eq.s32.totalorder %s15, 0
    %p189 = por %p187, %p188
    %p190 = scmp.ne.s32.totalorder %s182, %s184
    %p191 = scmp.eq.s32.totalorder %s20, 1
    %p192 = por %p190, %p191
    %p193 = scmp.ne.s32.totalorder %s184, %s185
    %p194 = scmp.eq.s32.totalorder %s20, 0
    %p195 = por %p193, %p194
    %p196 = scmp.ne.s32.totalorder %s184, %s185
    %p197 = scmp.eq.s32.totalorder %s21, 1
    %p198 = por %p196, %p197
    %p200 = scmp.ne.s32.totalorder %s185, %s199
    %p201 = scmp.eq.s32.totalorder %s21, 0
    %p202 = por %p200, %p201
    %s203 = ssub.s32 %s22, %s34
    %s204 = ssub.s32 %s23, %s30
    %s205 = sor.u32 %s203, %s204
    %p206 = scmp.eq.s32.totalorder %s205, 0
    %s208 = sadd.s32 %s207, 1
    %s209 = scalar_select %p206, %s207, %s208
    %p212 = pneg %p206
    %p213 = scmp.eq.s32.totalorder %s15, 1
    %p214 = por %p212, %p213
    %p215 = scmp.ne.s32.totalorder %s207, %s210
    %p216 = scmp.eq.s32.totalorder %s15, 0
    %p217 = por %p215, %p216
    %p218 = scmp.ne.s32.totalorder %s207, %s210
    %p219 = scmp.eq.s32.totalorder %s20, 1
    %p220 = por %p218, %p219
    %p221 = scmp.ne.s32.totalorder %s210, %s211
    %p222 = scmp.eq.s32.totalorder %s20, 0
    %p223 = por %p221, %p222
    %p224 = scmp.ne.s32.totalorder %s210, %s211
    %p225 = scmp.eq.s32.totalorder %s21, 1
    %p226 = por %p224, %p225
    %p228 = scmp.ne.s32.totalorder %s211, %s227
    %p229 = scmp.eq.s32.totalorder %s21, 0
    %p230 = por %p228, %p229
    %p231 = scmp.le.s32.totalorder 1, %s15
    %p232 = scmp.lt.s32.totalorder %s15, 3
    %p233 = pnand %p231, %p232
    %p234 = pneg %p233
    // Predicated region
    $region9: #{_lambda_.7} parent=5 // pred_check
      _
    $region10: #{_lambda_.7} parent=5 // pred_check_branch
      %236 = sbr.rel (%p233) target = $region12
    $region11: #{_lambda_.7} parent=5 // pred_region
      %s237 = ssub.s32 %s15, 1
      // Predicated region
      $region13: #{_lambda_.7} parent=11 // pred_check
        %p238 = pneg %p48
      $region14: #{_lambda_.7} parent=11 // pred_check_branch
        %240 = sbr.rel (%p238) target = $region16
      $region15: #{_lambda_.7} parent=11 // pred_region
        _
      $region16: #{_lambda_.7} parent=11 // pred_fallthru
        _
      // Predicated region
      $region17: #{_lambda_.7} parent=11 // pred_check
        %p241 = pneg %p69
      $region18: #{_lambda_.7} parent=11 // pred_check_branch
        %243 = sbr.rel (%p241) target = $region20
      $region19: #{_lambda_.7} parent=11 // pred_region
        _
      $region20: #{_lambda_.7} parent=11 // pred_fallthru
        _
      // Predicated region
      $region21: #{_lambda_.7} parent=11 // pred_check
        %p244 = pneg %p90
      $region22: #{_lambda_.7} parent=11 // pred_check_branch
        %246 = sbr.rel (%p244) target = $region24
      $region23: #{_lambda_.7} parent=11 // pred_region
        _
      $region24: #{_lambda_.7} parent=11 // pred_fallthru
        _
      // Predicated region
      $region25: #{_lambda_.7} parent=11 // pred_check
        %p247 = pneg %p111
      $region26: #{_lambda_.7} parent=11 // pred_check_branch
        %249 = sbr.rel (%p247) target = $region28
      $region27: #{_lambda_.7} parent=11 // pred_region
        _
      $region28: #{_lambda_.7} parent=11 // pred_fallthru
        _
      // Predicated region
      $region29: #{_lambda_.7} parent=11 // pred_check
        %p250 = pneg %p132
      $region30: #{_lambda_.7} parent=11 // pred_check_branch
        %252 = sbr.rel (%p250) target = $region32
      $region31: #{_lambda_.7} parent=11 // pred_region
        _
      $region32: #{_lambda_.7} parent=11 // pred_fallthru
        _
      // Predicated region
      $region33: #{_lambda_.7} parent=11 // pred_check
        %p253 = pneg %p153
      $region34: #{_lambda_.7} parent=11 // pred_check_branch
        %255 = sbr.rel (%p253) target = $region36
      $region35: #{_lambda_.7} parent=11 // pred_region
        _
      $region36: #{_lambda_.7} parent=11 // pred_fallthru
        _
      // Predicated region
      $region37: #{_lambda_.7} parent=11 // pred_check
        %p256 = pneg %p174
      $region38: #{_lambda_.7} parent=11 // pred_check_branch
        %258 = sbr.rel (%p256) target = $region40
      $region39: #{_lambda_.7} parent=11 // pred_region
        _
      $region40: #{_lambda_.7} parent=11 // pred_fallthru
        _
      // Predicated region
      $region41: #{_lambda_.7} parent=11 // pred_check
        %p259 = pneg %p195
      $region42: #{_lambda_.7} parent=11 // pred_check_branch
        %261 = sbr.rel (%p259) target = $region44
      $region43: #{_lambda_.7} parent=11 // pred_region
        _
      $region44: #{_lambda_.7} parent=11 // pred_fallthru
        _
    $region12: #{_lambda_.7} parent=5 // pred_fallthru
      _
    %p262 = scmp.lt.s32.totalorder %s15, 2
    // Predicated region
    $region45: #{_lambda_.7} parent=5 // pred_check
      %p263 = pneg %p262
    $region46: #{_lambda_.7} parent=5 // pred_check_branch
      %265 = sbr.rel (%p263) target = $region48
    $region47: #{_lambda_.7} parent=5 // pred_region
      _
    $region48: #{_lambda_.7} parent=5 // pred_fallthru
      _
    %p266 = scmp.le.s32.totalorder 1, %s15
    %p267 = scmp.lt.s32.totalorder %s15, 3
    %p268 = pnand %p266, %p267
    %p269 = pneg %p268
    // Predicated region
    $region49: #{_lambda_.7} parent=5 // pred_check
      _
    $region50: #{_lambda_.7} parent=5 // pred_check_branch
      %271 = sbr.rel (%p268) target = $region52
    $region51: #{_lambda_.7} parent=5 // pred_region
      %s272 = ssub.s32 %s15, 1
      %p273 = pneg %p48
      %p274 = pneg %p45
      %p275 = pneg %p69
      %p276 = pneg %p66
      %p277 = pneg %p90
      %p278 = pneg %p87
      %p279 = pneg %p111
      %p280 = pneg %p108
      %p281 = pneg %p132
      %p282 = pneg %p129
      %p283 = pneg %p153
      %p284 = pneg %p150
      %p285 = pneg %p174
      %p286 = pneg %p171
      %p287 = pneg %p195
      %p288 = pneg %p192
      %p289 = pneg %p223
      %p290 = pneg %p220
      %p291 = scmp.lt.s32.totalorder %s24, 1
      %s292 = scalar_select %p291, %s24, 1
      %p293 = scmp.lt.s32.totalorder %s25, 0
      %s294 = scalar_select %p293, %s25, 0
      %s295 = sadd.s32 %s294, %s292
      %s296 = smul.addr %s295, 4
      %s297 = scalar_lea.vmem %s9, %s296
      %p298 = scmp.lt.s32.totalorder %s24, 1
      %s299 = scalar_select %p298, %s24, 1
      %p300 = scmp.lt.s32.totalorder %s25, 0
      %s301 = scalar_select %p300, %s25, 0
      %s302 = sadd.s32 %s301, %s299
      %s303 = smul.addr %s302, 4
      %s304 = scalar_lea.vmem %s9, %s303
      %s306 = smul.u32 %s25, 8
      %s307 = sshra.s32 %s306, 3
      %s308 = sand.u32 %s306, 7
      %s309 = smul.u32 %s24, 4
      %s310 = sadd.s32 %s307, %s309
      %s311 = smul.addr %s310, 4
      %s312 = scalar_lea.vmem %s0, %s311
      %p314 = scmp.lt.u32.totalorder 16, 8
      %p315 = pneg %p314
      // Predicated region
      $region53: #{_lambda_.7} parent=51 // pred_check
        _
      $region54: #{_lambda_.7} parent=51 // pred_check_branch
        %317 = sbr.rel (%p314) target = $region56
      $region55: #{_lambda_.7} parent=51 // pred_region
        %s332 = sand.u32 16, 7
        %p333 = scmp.eq.s32.totalorder %s332, 0
        // Predicated region
        $region68: #{_lambda_.7} parent=55 // pred_check
          %p334 = pneg %p333
        $region69: #{_lambda_.7} parent=55 // pred_check_branch
          %336 = sbr.rel (%p334) target = $region71
        $region70: #{_lambda_.7} parent=55 // pred_region
          loop: start=0, step=1, limit=1
          $region72: #{_lambda_.7} parent=70 // loop_pre_header
            _
          $region73: #{_lambda_.7} parent=70 // loop_header
            %s338 = sphi 0, %s342
            %p339 = scmp.ge.s32.totalorder %s338, 1
            %s343 = sphi %s312, %s312
            %s344 = sphi [#allocation2], [#allocation2]
          $region74: #{_lambda_.7} parent=70 // loop_header_branch
            %341 = sbr.rel (%p339) target = $region78
          $region75: #{_lambda_.7} parent=70 // loop_body
            %v345 = vld [vmem:[%s343] sm:$0xff]
            %346 = vst [vmem:[%s344] sm:$0xff] %v345
            %v347 = vld [vmem:[%s343 + $0x8] sm:$0xff]
            %348 = vst [vmem:[%s344 + $0x8] sm:$0xff] %v347
          $region76: #{_lambda_.7} parent=70 // loop_footer
            %s342 = sadd.s32 1, %s338
          $region77: #{_lambda_.7} parent=70 // loop_footer_branch
            %337 = sbr.rel target = $region73
          $region78: #{_lambda_.7} parent=70 // loop_exit
            _
        $region71: #{_lambda_.7} parent=55 // pred_fallthru
          _
        %p349 = pneg %p333
        // Predicated region
        $region79: #{_lambda_.7} parent=55 // pred_check
          _
        $region80: #{_lambda_.7} parent=55 // pred_check_branch
          %351 = sbr.rel (%p333) target = $region82
        $region81: #{_lambda_.7} parent=55 // pred_region
          %s352 = sand.u32 16, 7
        $region82: #{_lambda_.7} parent=55 // pred_fallthru
          _
      $region56: #{_lambda_.7} parent=51 // pred_fallthru
        _
      // Predicated region
      $region57: #{_lambda_.7} parent=51 // pred_check
        %p318 = pneg %p314
      $region58: #{_lambda_.7} parent=51 // pred_check_branch
        %320 = sbr.rel (%p318) target = $region60
      $region59: #{_lambda_.7} parent=51 // pred_region
        %s321 = sshllo.u32 0, 16
        loop: start=0, step=1, limit=1
        $region61: #{_lambda_.7} parent=59 // loop_pre_header
          _
        $region62: #{_lambda_.7} parent=59 // loop_header
          %s323 = sphi 0, %s327
          %p324 = scmp.ge.s32.totalorder %s323, 1
          %s328 = sphi %s312, %s312
          %s329 = sphi [#allocation2], [#allocation2]
        $region63: #{_lambda_.7} parent=59 // loop_header_branch
          %326 = sbr.rel (%p324) target = $region67
        $region64: #{_lambda_.7} parent=59 // loop_body
          %v330 = vld [vmem:[%s328] sm:%s321]
          %331 = vst [vmem:[%s329] sm:%s321] %v330
        $region65: #{_lambda_.7} parent=59 // loop_footer
          %s327 = sadd.s32 1, %s323
        $region66: #{_lambda_.7} parent=59 // loop_footer_branch
          %322 = sbr.rel target = $region62
        $region67: #{_lambda_.7} parent=59 // loop_exit
          _
      $region60: #{_lambda_.7} parent=51 // pred_fallthru
        _
      // Predicated region
      $region83: #{_lambda_.7} parent=51 // pred_check
        _
      $region84: #{_lambda_.7} parent=51 // pred_check_branch
        %355 = sbr.rel (0) target = $region86
      $region85: #{_lambda_.7} parent=51 // pred_region
        %356 = vsyncadd [#allocation4], 256
      $region86: #{_lambda_.7} parent=51 // pred_fallthru
        _
      %s357 = smul.u32 4, 2
      %s358 = smul.u32 %s357, 2
      %s359 = smul.u32 %s358, 1
      %s360 = sshll.u32 %s359, 4
      %361 = dma.done [#allocation4], %s360
      %v362 = vlaneseq
      %v363 = vshrl.u32 %v362, 7
      %v364 = vadd.s32 %v363, 8
      %v365 = vstv %s306
      %v366 = vadd.s32 %v363, %v365
      %v367 = vadd.s32 %v364, %v365
      %v368 = vmul.u32 %v366, 2
      %v369 = vmul.u32 %v367, 2
      %vm370 = vcmp.ge.s32.totalorder %v368, 1
      %vm371 = vcmp.ge.s32.totalorder %v369, 1
      %vm372 = vcmp.lt.s32.totalorder %v368, 17
      %vm373 = vcmp.lt.s32.totalorder %v369, 17
      %vm374 = vmand %vm370, %vm372
      %vm375 = vmand %vm371, %vm373
      %v376 = vld [vmem:[#allocation2] sm:$0xff]
      %v377 = vld [vmem:[%s1] sm:$0xf]
      %v378 = vld [vmem:[%s1 + $0x4] sm:$0xf]
      %v379 = vld [vmem:[%s1 + $0x8] sm:$0xf]
      %v380 = vld [vmem:[%s1 + $0xc] sm:$0xf]
      %v381 = vld [vmem:[%s1 + $0x10] sm:$0xf]
      %v382 = vld [vmem:[%s1 + $0x14] sm:$0xf]
      %v383 = vld [vmem:[%s1 + $0x18] sm:$0xf]
      %v384 = vld [vmem:[%s1 + $0x1c] sm:$0xf]
      %v385 = vld [vmem:[%s1 + $0x20] sm:$0xf]
      %v386 = vld [vmem:[%s1 + $0x24] sm:$0xf]
      %v387 = vld [vmem:[%s1 + $0x28] sm:$0xf]
      %v388 = vld [vmem:[%s1 + $0x2c] sm:$0xf]
      %v389 = vld [vmem:[%s1 + $0x30] sm:$0xf]
      %v390 = vld [vmem:[%s1 + $0x34] sm:$0xf]
      %v391 = vld [vmem:[%s1 + $0x38] sm:$0xf]
      %v392 = vld [vmem:[%s1 + $0x3c] sm:$0xf]
      %v393 = vld [vmem:[%s2] sm:$0x1]
      %v395 = vlaneseq
      %v396 = vshrl.u32 %v395, 7
      %v397 = vsub.s32 0, %v396
      %v398 = vrot.slane %v393, %v397
      %v416 = vunpack.c.l.b16 %v377
      %v417 = vunpack.c.l.b16 %v378
      %v418 = vunpack.c.l.b16 %v379
      %v419 = vunpack.c.l.b16 %v380
      %v420 = vunpack.c.l.b16 %v381
      %v421 = vunpack.c.l.b16 %v382
      %v422 = vunpack.c.l.b16 %v383
      %v423 = vunpack.c.l.b16 %v384
      %v424 = vunpack.c.l.b16 %v385
      %v425 = vunpack.c.l.b16 %v386
      %v426 = vunpack.c.l.b16 %v387
      %v427 = vunpack.c.l.b16 %v388
      %v428 = vunpack.c.l.b16 %v389
      %v429 = vunpack.c.l.b16 %v390
      %v430 = vunpack.c.l.b16 %v391
      %v431 = vunpack.c.l.b16 %v392
      %v432 = vpack.c.b16 %v417, %v416
      %v433 = vpack.c.b16 %v419, %v418
      %v434 = vpack.c.b16 %v421, %v420
      %v435 = vpack.c.b16 %v423, %v422
      %v436 = vpack.c.b16 %v425, %v424
      %v437 = vpack.c.b16 %v427, %v426
      %v438 = vpack.c.b16 %v429, %v428
      %v439 = vpack.c.b16 %v431, %v430
      %448 = vmatprep.subr.bf16.mxu0 0
      %449 = vmatpush1.bf16.msra.mxu0 %v432
      %450 = vmatprep.subr.bf16.mxu0 0
      %451 = vmatpush1.bf16.msra.mxu0 %v433
      %452 = vmatprep.subr.bf16.mxu0 0
      %453 = vmatpush1.bf16.msra.mxu0 %v434
      %454 = vmatprep.subr.bf16.mxu0 0
      %455 = vmatpush1.bf16.msra.mxu0 %v435
      %456 = vmatprep.subr.bf16.mxu0 0
      %457 = vmatpush1.bf16.msra.mxu0 %v436
      %458 = vmatprep.subr.bf16.mxu0 0
      %459 = vmatpush1.bf16.msra.mxu0 %v437
      %460 = vmatprep.subr.bf16.mxu0 0
      %461 = vmatpush1.bf16.msra.mxu0 %v438
      %462 = vmatprep.subr.bf16.mxu0 0
      %463 = vmatpush1.bf16.msra.mxu0 %v439
      %464 = vmatprep.subr.bf16.mxu0 0
      %465 = vmatpush1.bf16.msra.mxu0 0
      %466 = vmatprep.subr.bf16.mxu0 0
      %467 = vmatpush1.bf16.msra.mxu0 0
      %468 = vmatprep.subr.bf16.mxu0 0
      %469 = vmatpush1.bf16.msra.mxu0 0
      %470 = vmatprep.subr.bf16.mxu0 0
      %471 = vmatpush1.bf16.msra.mxu0 0
      %472 = vmatprep.subr.bf16.mxu0 0
      %473 = vmatpush1.bf16.msra.mxu0 0
      %474 = vmatprep.subr.bf16.mxu0 0
      %475 = vmatpush1.bf16.msra.mxu0 0
      %476 = vmatprep.subr.bf16.mxu0 0
      %477 = vmatpush1.bf16.msra.mxu0 0
      %478 = vmatprep.subr.bf16.mxu0 0
      %479 = vmatpush1.bf16.msra.mxu0 0
      %480 = vmatprep.mubr.bf16.mxu0 0
      %481 = vmatmul.mubr.bf16.gmra.mrb[0].mxu0 %v376
      %v482 = vpop.f32.mrb[0].mxu0
      %v483 = vadd.f32 %v398, %v482
      %v484 = vpop.f32.mrb[0].mxu0
      %v485 = vpop.f32.mrb[0].mxu0
      %v486 = vadd.f32 %v398, %v485
      %v487 = vpop.f32.mrb[0].mxu0
      %488 = vdwg.mxu0
      %v489 = vmax.f32 %v483, 0.0
      %v490 = vmax.f32 %v486, 0.0
      %v491 = vsel %vm374, 1, 0
      %v492 = vsel %vm375, 1, 0
      %vm493 = vcmp.eq.s32.totalorder %v491, 1
      %vm494 = vcmp.eq.s32.totalorder %v492, 1
      %v495 = vsel %vm493, %v489, 0.0
      %v496 = vsel %vm494, %v490, 0.0
      %v497 = vpack.c.bf16 %v496, %v495
      %498 = vst [vmem:[#allocation3] sm:$0xff] %v497
      %v499 = vadd.s32 %v368, 1
      %v500 = vadd.s32 %v369, 1
      %vm501 = vcmp.ge.s32.totalorder %v499, 1
      %vm502 = vcmp.ge.s32.totalorder %v500, 1
      %vm503 = vcmp.lt.s32.totalorder %v499, 17
      %vm504 = vcmp.lt.s32.totalorder %v500, 17
      %vm505 = vmand %vm501, %vm503
      %vm506 = vmand %vm502, %vm504
      %s507 = scalar_lea.vmem [#allocation2], 8
      %v508 = vld [vmem:[%s507] sm:$0xff]
      %v509 = vld [vmem:[%s1] sm:$0xf]
      %v510 = vld [vmem:[%s1 + $0x4] sm:$0xf]
      %v511 = vld [vmem:[%s1 + $0x8] sm:$0xf]
      %v512 = vld [vmem:[%s1 + $0xc] sm:$0xf]
      %v513 = vld [vmem:[%s1 + $0x10] sm:$0xf]
      %v514 = vld [vmem:[%s1 + $0x14] sm:$0xf]
      %v515 = vld [vmem:[%s1 + $0x18] sm:$0xf]
      %v516 = vld [vmem:[%s1 + $0x1c] sm:$0xf]
      %v517 = vld [vmem:[%s1 + $0x20] sm:$0xf]
      %v518 = vld [vmem:[%s1 + $0x24] sm:$0xf]
      %v519 = vld [vmem:[%s1 + $0x28] sm:$0xf]
      %v520 = vld [vmem:[%s1 + $0x2c] sm:$0xf]
      %v521 = vld [vmem:[%s1 + $0x30] sm:$0xf]
      %v522 = vld [vmem:[%s1 + $0x34] sm:$0xf]
      %v523 = vld [vmem:[%s1 + $0x38] sm:$0xf]
      %v524 = vld [vmem:[%s1 + $0x3c] sm:$0xf]
      %v525 = vld [vmem:[%s2] sm:$0x1]
      %v527 = vlaneseq
      %v528 = vshrl.u32 %v527, 7
      %v529 = vsub.s32 0, %v528
      %v530 = vrot.slane %v525, %v529
      %v548 = vunpack.c.l.b16 %v509
      %v549 = vunpack.c.l.b16 %v510
      %v550 = vunpack.c.l.b16 %v511
      %v551 = vunpack.c.l.b16 %v512
      %v552 = vunpack.c.l.b16 %v513
      %v553 = vunpack.c.l.b16 %v514
      %v554 = vunpack.c.l.b16 %v515
      %v555 = vunpack.c.l.b16 %v516
      %v556 = vunpack.c.l.b16 %v517
      %v557 = vunpack.c.l.b16 %v518
      %v558 = vunpack.c.l.b16 %v519
      %v559 = vunpack.c.l.b16 %v520
      %v560 = vunpack.c.l.b16 %v521
      %v561 = vunpack.c.l.b16 %v522
      %v562 = vunpack.c.l.b16 %v523
      %v563 = vunpack.c.l.b16 %v524
      %v564 = vpack.c.b16 %v549, %v548
      %v565 = vpack.c.b16 %v551, %v550
      %v566 = vpack.c.b16 %v553, %v552
      %v567 = vpack.c.b16 %v555, %v554
      %v568 = vpack.c.b16 %v557, %v556
      %v569 = vpack.c.b16 %v559, %v558
      %v570 = vpack.c.b16 %v561, %v560
      %v571 = vpack.c.b16 %v563, %v562
      %580 = vmatprep.subr.bf16.mxu0 0
      %581 = vmatpush1.bf16.msra.mxu0 %v564
      %582 = vmatprep.subr.bf16.mxu0 0
      %583 = vmatpush1.bf16.msra.mxu0 %v565
      %584 = vmatprep.subr.bf16.mxu0 0
      %585 = vmatpush1.bf16.msra.mxu0 %v566
      %586 = vmatprep.subr.bf16.mxu0 0
      %587 = vmatpush1.bf16.msra.mxu0 %v567
      %588 = vmatprep.subr.bf16.mxu0 0
      %589 = vmatpush1.bf16.msra.mxu0 %v568
      %590 = vmatprep.subr.bf16.mxu0 0
      %591 = vmatpush1.bf16.msra.mxu0 %v569
      %592 = vmatprep.subr.bf16.mxu0 0
      %593 = vmatpush1.bf16.msra.mxu0 %v570
      %594 = vmatprep.subr.bf16.mxu0 0
      %595 = vmatpush1.bf16.msra.mxu0 %v571
      %596 = vmatprep.subr.bf16.mxu0 0
      %597 = vmatpush1.bf16.msra.mxu0 0
      %598 = vmatprep.subr.bf16.mxu0 0
      %599 = vmatpush1.bf16.msra.mxu0 0
      %600 = vmatprep.subr.bf16.mxu0 0
      %601 = vmatpush1.bf16.msra.mxu0 0
      %602 = vmatprep.subr.bf16.mxu0 0
      %603 = vmatpush1.bf16.msra.mxu0 0
      %604 = vmatprep.subr.bf16.mxu0 0
      %605 = vmatpush1.bf16.msra.mxu0 0
      %606 = vmatprep.subr.bf16.mxu0 0
      %607 = vmatpush1.bf16.msra.mxu0 0
      %608 = vmatprep.subr.bf16.mxu0 0
      %609 = vmatpush1.bf16.msra.mxu0 0
      %610 = vmatprep.subr.bf16.mxu0 0
      %611 = vmatpush1.bf16.msra.mxu0 0
      %612 = vmatprep.mubr.bf16.mxu0 0
      %613 = vmatmul.mubr.bf16.gmra.mrb[0].mxu0 %v508
      %v614 = vpop.f32.mrb[0].mxu0
      %v615 = vadd.f32 %v530, %v614
      %v616 = vpop.f32.mrb[0].mxu0
      %v617 = vpop.f32.mrb[0].mxu0
      %v618 = vadd.f32 %v530, %v617
      %v619 = vpop.f32.mrb[0].mxu0
      %620 = vdwg.mxu0
      %v621 = vmax.f32 %v615, 0.0
      %v622 = vmax.f32 %v618, 0.0
      %v623 = vsel %vm505, 1, 0
      %v624 = vsel %vm506, 1, 0
      %vm625 = vcmp.eq.s32.totalorder %v623, 1
      %vm626 = vcmp.eq.s32.totalorder %v624, 1
      %v627 = vsel %vm625, %v621, 0.0
      %v628 = vsel %vm626, %v622, 0.0
      %v629 = vpack.c.bf16 %v628, %v627
      %s630 = scalar_lea.vmem [#allocation3], 8
      %631 = vst [vmem:[%s630] sm:$0xff] %v629
      %v632 = vld [vmem:[#allocation3] sm:$0xf]
      %v633 = vld [vmem:[%s3] sm:$0xf]
      %v634 = vld [vmem:[%s3 + $0x4] sm:$0xf]
      %v635 = vld [vmem:[%s3 + $0x8] sm:$0xf]
      %v636 = vld [vmem:[%s3 + $0xc] sm:$0xf]
      %v637 = vld [vmem:[%s3 + $0x10] sm:$0xf]
      %v638 = vld [vmem:[%s3 + $0x14] sm:$0xf]
      %v639 = vld [vmem:[%s3 + $0x18] sm:$0xf]
      %v640 = vld [vmem:[%s3 + $0x1c] sm:$0xf]
      %v641 = vld [vmem:[%s3 + $0x20] sm:$0xf]
      %v642 = vld [vmem:[%s3 + $0x24] sm:$0xf]
      %v643 = vld [vmem:[%s3 + $0x28] sm:$0xf]
      %v644 = vld [vmem:[%s3 + $0x2c] sm:$0xf]
      %v645 = vld [vmem:[%s3 + $0x30] sm:$0xf]
      %v646 = vld [vmem:[%s3 + $0x34] sm:$0xf]
      %v647 = vld [vmem:[%s3 + $0x38] sm:$0xf]
      %v648 = vld [vmem:[%s3 + $0x3c] sm:$0xf]
      %v649 = vld [vmem:[%s630] sm:$0xf]
      %s650 = scalar_lea.vmem %s3, 64
      %v651 = vld [vmem:[%s650] sm:$0xf]
      %v652 = vld [vmem:[%s650 + $0x4] sm:$0xf]
      %v653 = vld [vmem:[%s650 + $0x8] sm:$0xf]
      %v654 = vld [vmem:[%s650 + $0xc] sm:$0xf]
      %v655 = vld [vmem:[%s650 + $0x10] sm:$0xf]
      %v656 = vld [vmem:[%s650 + $0x14] sm:$0xf]
      %v657 = vld [vmem:[%s650 + $0x18] sm:$0xf]
      %v658 = vld [vmem:[%s650 + $0x1c] sm:$0xf]
      %v659 = vld [vmem:[%s650 + $0x20] sm:$0xf]
      %v660 = vld [vmem:[%s650 + $0x24] sm:$0xf]
      %v661 = vld [vmem:[%s650 + $0x28] sm:$0xf]
      %v662 = vld [vmem:[%s650 + $0x2c] sm:$0xf]
      %v663 = vld [vmem:[%s650 + $0x30] sm:$0xf]
      %v664 = vld [vmem:[%s650 + $0x34] sm:$0xf]
      %v665 = vld [vmem:[%s650 + $0x38] sm:$0xf]
      %v666 = vld [vmem:[%s650 + $0x3c] sm:$0xf]
      %v683 = vunpack.c.l.b16 %v651
      %v684 = vunpack.c.l.b16 %v652
      %v685 = vunpack.c.l.b16 %v653
      %v686 = vunpack.c.l.b16 %v654
      %v687 = vunpack.c.l.b16 %v655
      %v688 = vunpack.c.l.b16 %v656
      %v689 = vunpack.c.l.b16 %v657
      %v690 = vunpack.c.l.b16 %v658
      %v691 = vunpack.c.l.b16 %v659
      %v692 = vunpack.c.l.b16 %v660
      %v693 = vunpack.c.l.b16 %v661
      %v694 = vunpack.c.l.b16 %v662
      %v695 = vunpack.c.l.b16 %v663
      %v696 = vunpack.c.l.b16 %v664
      %v697 = vunpack.c.l.b16 %v665
      %v698 = vunpack.c.l.b16 %v666
      %v699 = vpack.c.b16 %v684, %v683
      %v700 = vpack.c.b16 %v686, %v685
      %v701 = vpack.c.b16 %v688, %v687
      %v702 = vpack.c.b16 %v690, %v689
      %v703 = vpack.c.b16 %v692, %v691
      %v704 = vpack.c.b16 %v694, %v693
      %v705 = vpack.c.b16 %v696, %v695
      %v706 = vpack.c.b16 %v698, %v697
      %715 = vmatprep.subr.bf16.mxu0 0
      %716 = vmatpush1.bf16.msra.mxu0 %v699
      %717 = vmatprep.subr.bf16.mxu0 0
      %718 = vmatpush1.bf16.msra.mxu0 %v700
      %719 = vmatprep.subr.bf16.mxu0 0
      %720 = vmatpush1.bf16.msra.mxu0 %v701
      %721 = vmatprep.subr.bf16.mxu0 0
      %722 = vmatpush1.bf16.msra.mxu0 %v702
      %723 = vmatprep.subr.bf16.mxu0 0
      %724 = vmatpush1.bf16.msra.mxu0 %v703
      %725 = vmatprep.subr.bf16.mxu0 0
      %726 = vmatpush1.bf16.msra.mxu0 %v704
      %727 = vmatprep.subr.bf16.mxu0 0
      %728 = vmatpush1.bf16.msra.mxu0 %v705
      %729 = vmatprep.subr.bf16.mxu0 0
      %730 = vmatpush1.bf16.msra.mxu0 %v706
      %731 = vmatprep.subr.bf16.mxu0 0
      %732 = vmatpush1.bf16.msra.mxu0 0
      %733 = vmatprep.subr.bf16.mxu0 0
      %734 = vmatpush1.bf16.msra.mxu0 0
      %735 = vmatprep.subr.bf16.mxu0 0
      %736 = vmatpush1.bf16.msra.mxu0 0
      %737 = vmatprep.subr.bf16.mxu0 0
      %738 = vmatpush1.bf16.msra.mxu0 0
      %739 = vmatprep.subr.bf16.mxu0 0
      %740 = vmatpush1.bf16.msra.mxu0 0
      %741 = vmatprep.subr.bf16.mxu0 0
      %742 = vmatpush1.bf16.msra.mxu0 0
      %743 = vmatprep.subr.bf16.mxu0 0
      %744 = vmatpush1.bf16.msra.mxu0 0
      %745 = vmatprep.subr.bf16.mxu0 0
      %746 = vmatpush1.bf16.msra.mxu0 0
      %747 = vmatprep.mubr.bf16.mxu0 0
      %748 = vmatmul.mubr.bf16.gmra.mrb[0].mxu0 %v649
      %v749 = vpop.f32.mrb[0].mxu0
      %v750 = vadd.f32 0.0, %v749
      %v751 = vpop.f32.mrb[0].mxu0
      %v752 = vpop.f32.mrb[0].mxu0
      %v753 = vpop.f32.mrb[0].mxu0
      %754 = vdwg.mxu0
      %v771 = vunpack.c.l.b16 %v633
      %v772 = vunpack.c.l.b16 %v634
      %v773 = vunpack.c.l.b16 %v635
      %v774 = vunpack.c.l.b16 %v636
      %v775 = vunpack.c.l.b16 %v637
      %v776 = vunpack.c.l.b16 %v638
      %v777 = vunpack.c.l.b16 %v639
      %v778 = vunpack.c.l.b16 %v640
      %v779 = vunpack.c.l.b16 %v641
      %v780 = vunpack.c.l.b16 %v642
      %v781 = vunpack.c.l.b16 %v643
      %v782 = vunpack.c.l.b16 %v644
      %v783 = vunpack.c.l.b16 %v645
      %v784 = vunpack.c.l.b16 %v646
      %v785 = vunpack.c.l.b16 %v647
      %v786 = vunpack.c.l.b16 %v648
      %v787 = vpack.c.b16 %v772, %v771
      %v788 = vpack.c.b16 %v774, %v773
      %v789 = vpack.c.b16 %v776, %v775
      %v790 = vpack.c.b16 %v778, %v777
      %v791 = vpack.c.b16 %v780, %v779
      %v792 = vpack.c.b16 %v782, %v781
      %v793 = vpack.c.b16 %v784, %v783
      %v794 = vpack.c.b16 %v786, %v785
      %803 = vmatprep.subr.bf16.mxu0 0
      %804 = vmatpush1.bf16.msra.mxu0 %v787
      %805 = vmatprep.subr.bf16.mxu0 0
      %806 = vmatpush1.bf16.msra.mxu0 %v788
      %807 = vmatprep.subr.bf16.mxu0 0
      %808 = vmatpush1.bf16.msra.mxu0 %v789
      %809 = vmatprep.subr.bf16.mxu0 0
      %810 = vmatpush1.bf16.msra.mxu0 %v790
      %811 = vmatprep.subr.bf16.mxu0 0
      %812 = vmatpush1.bf16.msra.mxu0 %v791
      %813 = vmatprep.subr.bf16.mxu0 0
      %814 = vmatpush1.bf16.msra.mxu0 %v792
      %815 = vmatprep.subr.bf16.mxu0 0
      %816 = vmatpush1.bf16.msra.mxu0 %v793
      %817 = vmatprep.subr.bf16.mxu0 0
      %818 = vmatpush1.bf16.msra.mxu0 %v794
      %819 = vmatprep.subr.bf16.mxu0 0
      %820 = vmatpush1.bf16.msra.mxu0 0
      %821 = vmatprep.subr.bf16.mxu0 0
      %822 = vmatpush1.bf16.msra.mxu0 0
      %823 = vmatprep.subr.bf16.mxu0 0
      %824 = vmatpush1.bf16.msra.mxu0 0
      %825 = vmatprep.subr.bf16.mxu0 0
      %826 = vmatpush1.bf16.msra.mxu0 0
      %827 = vmatprep.subr.bf16.mxu0 0
      %828 = vmatpush1.bf16.msra.mxu0 0
      %829 = vmatprep.subr.bf16.mxu0 0
      %830 = vmatpush1.bf16.msra.mxu0 0
      %831 = vmatprep.subr.bf16.mxu0 0
      %832 = vmatpush1.bf16.msra.mxu0 0
      %833 = vmatprep.subr.bf16.mxu0 0
      %834 = vmatpush1.bf16.msra.mxu0 0
      %835 = vmatprep.mubr.bf16.mxu0 0
      %836 = vmatmul.mubr.bf16.gmra.mrb[0].mxu0 %v632
      %v837 = vpop.f32.mrb[0].mxu0
      %v838 = vadd.f32 %v750, %v837
      %v839 = vpop.f32.mrb[0].mxu0
      %v840 = vpop.f32.mrb[0].mxu0
      %v841 = vpop.f32.mrb[0].mxu0
      %842 = vdwg.mxu0
      %v843 = vld [vmem:[#allocation3] sm:$0x1f]
      %s844 = scalar_lea.vmem %s3, 128
      %v845 = vld [vmem:[%s844] sm:$0xf]
      %v846 = vld [vmem:[%s844 + $0x4] sm:$0xf]
      %v847 = vld [vmem:[%s844 + $0x8] sm:$0xf]
      %v848 = vld [vmem:[%s844 + $0xc] sm:$0xf]
      %v849 = vld [vmem:[%s844 + $0x10] sm:$0xf]
      %v850 = vld [vmem:[%s844 + $0x14] sm:$0xf]
      %v851 = vld [vmem:[%s844 + $0x18] sm:$0xf]
      %v852 = vld [vmem:[%s844 + $0x1c] sm:$0xf]
      %v853 = vld [vmem:[%s844 + $0x20] sm:$0xf]
      %v854 = vld [vmem:[%s844 + $0x24] sm:$0xf]
      %v855 = vld [vmem:[%s844 + $0x28] sm:$0xf]
      %v856 = vld [vmem:[%s844 + $0x2c] sm:$0xf]
      %v857 = vld [vmem:[%s844 + $0x30] sm:$0xf]
      %v858 = vld [vmem:[%s844 + $0x34] sm:$0xf]
      %v859 = vld [vmem:[%s844 + $0x38] sm:$0xf]
      %v860 = vld [vmem:[%s844 + $0x3c] sm:$0xf]
      %v862 = vshrl.u32 %v843, 16
      %v864 = vshll.u32 %v843, 16
      %v866 = vrot.slane %v864, 1
      %v867 = vor.u32 %v862, %v866
      %v885 = vunpack.c.l.b16 %v845
      %v886 = vunpack.c.l.b16 %v846
      %v887 = vunpack.c.l.b16 %v847
      %v888 = vunpack.c.l.b16 %v848
      %v889 = vunpack.c.l.b16 %v849
      %v890 = vunpack.c.l.b16 %v850
      %v891 = vunpack.c.l.b16 %v851
      %v892 = vunpack.c.l.b16 %v852
      %v893 = vunpack.c.l.b16 %v853
      %v894 = vunpack.c.l.b16 %v854
      %v895 = vunpack.c.l.b16 %v855
      %v896 = vunpack.c.l.b16 %v856
      %v897 = vunpack.c.l.b16 %v857
      %v898 = vunpack.c.l.b16 %v858
      %v899 = vunpack.c.l.b16 %v859
      %v900 = vunpack.c.l.b16 %v860
      %v901 = vpack.c.b16 %v886, %v885
      %v902 = vpack.c.b16 %v888, %v887
      %v903 = vpack.c.b16 %v890, %v889
      %v904 = vpack.c.b16 %v892, %v891
      %v905 = vpack.c.b16 %v894, %v893
      %v906 = vpack.c.b16 %v896, %v895
      %v907 = vpack.c.b16 %v898, %v897
      %v908 = vpack.c.b16 %v900, %v899
      %917 = vmatprep.subr.bf16.mxu0 0
      %918 = vmatpush1.bf16.msra.mxu0 %v901
      %919 = vmatprep.subr.bf16.mxu0 0
      %920 = vmatpush1.bf16.msra.mxu0 %v902
      %921 = vmatprep.subr.bf16.mxu0 0
      %922 = vmatpush1.bf16.msra.mxu0 %v903
      %923 = vmatprep.subr.bf16.mxu0 0
      %924 = vmatpush1.bf16.msra.mxu0 %v904
      %925 = vmatprep.subr.bf16.mxu0 0
      %926 = vmatpush1.bf16.msra.mxu0 %v905
      %927 = vmatprep.subr.bf16.mxu0 0
      %928 = vmatpush1.bf16.msra.mxu0 %v906
      %929 = vmatprep.subr.bf16.mxu0 0
      %930 = vmatpush1.bf16.msra.mxu0 %v907
      %931 = vmatprep.subr.bf16.mxu0 0
      %932 = vmatpush1.bf16.msra.mxu0 %v908
      %933 = vmatprep.subr.bf16.mxu0 0
      %934 = vmatpush1.bf16.msra.mxu0 0
      %935 = vmatprep.subr.bf16.mxu0 0
      %936 = vmatpush1.bf16.msra.mxu0 0
      %937 = vmatprep.subr.bf16.mxu0 0
      %938 = vmatpush1.bf16.msra.mxu0 0
      %939 = vmatprep.subr.bf16.mxu0 0
      %940 = vmatpush1.bf16.msra.mxu0 0
      %941 = vmatprep.subr.bf16.mxu0 0
      %942 = vmatpush1.bf16.msra.mxu0 0
      %943 = vmatprep.subr.bf16.mxu0 0
      %944 = vmatpush1.bf16.msra.mxu0 0
      %945 = vmatprep.subr.bf16.mxu0 0
      %946 = vmatpush1.bf16.msra.mxu0 0
      %947 = vmatprep.subr.bf16.mxu0 0
      %948 = vmatpush1.bf16.msra.mxu0 0
      %949 = vmatprep.mubr.bf16.mxu0 0
      %950 = vmatmul.mubr.bf16.gmra.mrb[0].mxu0 %v867
      %v951 = vpop.f32.mrb[0].mxu0
      %v952 = vadd.f32 0.0, %v951
      %v953 = vpop.f32.mrb[0].mxu0
      %v954 = vpop.f32.mrb[0].mxu0
      %v955 = vpop.f32.mrb[0].mxu0
      %956 = vdwg.mxu0
      %v957 = vadd.f32 %v838, %v952
      %v958 = vld [vmem:[%s4] sm:$0x1]
      %v960 = vlaneseq
      %v961 = vshrl.u32 %v960, 7
      %v962 = vsub.s32 0, %v961
      %v963 = vrot.slane %v958, %v962
      %v965 = vadd.f32 %v957, %v963
      %v966 = vmax.f32 %v965, 0.0
      %v967 = vpack.c.bf16 %v966, %v966
      %v968 = vld [vmem:[%s5] sm:$0xf]
      %v969 = vld [vmem:[%s5 + $0x4] sm:$0xf]
      %v970 = vld [vmem:[%s5 + $0x8] sm:$0xf]
      %v971 = vld [vmem:[%s5 + $0xc] sm:$0xf]
      %v972 = vld [vmem:[%s5 + $0x10] sm:$0xf]
      %v973 = vld [vmem:[%s5 + $0x14] sm:$0xf]
      %v974 = vld [vmem:[%s5 + $0x18] sm:$0xf]
      %v975 = vld [vmem:[%s5 + $0x1c] sm:$0xf]
      %v976 = vld [vmem:[%s5 + $0x20] sm:$0xf]
      %v977 = vld [vmem:[%s5 + $0x24] sm:$0xf]
      %v978 = vld [vmem:[%s5 + $0x28] sm:$0xf]
      %v979 = vld [vmem:[%s5 + $0x2c] sm:$0xf]
      %v980 = vld [vmem:[%s5 + $0x30] sm:$0xf]
      %v981 = vld [vmem:[%s5 + $0x34] sm:$0xf]
      %v982 = vld [vmem:[%s5 + $0x38] sm:$0xf]
      %v983 = vld [vmem:[%s5 + $0x3c] sm:$0xf]
      %v984 = vld [vmem:[%s6] sm:$0x1]
      %v986 = vlaneseq
      %v987 = vshrl.u32 %v986, 7
      %v988 = vsub.s32 0, %v987
      %v989 = vrot.slane %v984, %v988
      %v1007 = vunpack.c.l.b16 %v968
      %v1008 = vunpack.c.l.b16 %v969
      %v1009 = vunpack.c.l.b16 %v970
      %v1010 = vunpack.c.l.b16 %v971
      %v1011 = vunpack.c.l.b16 %v972
      %v1012 = vunpack.c.l.b16 %v973
      %v1013 = vunpack.c.l.b16 %v974
      %v1014 = vunpack.c.l.b16 %v975
      %v1015 = vunpack.c.l.b16 %v976
      %v1016 = vunpack.c.l.b16 %v977
      %v1017 = vunpack.c.l.b16 %v978
      %v1018 = vunpack.c.l.b16 %v979
      %v1019 = vunpack.c.l.b16 %v980
      %v1020 = vunpack.c.l.b16 %v981
      %v1021 = vunpack.c.l.b16 %v982
      %v1022 = vunpack.c.l.b16 %v983
      %v1023 = vpack.c.b16 %v1008, %v1007
      %v1024 = vpack.c.b16 %v1010, %v1009
      %v1025 = vpack.c.b16 %v1012, %v1011
      %v1026 = vpack.c.b16 %v1014, %v1013
      %v1027 = vpack.c.b16 %v1016, %v1015
      %v1028 = vpack.c.b16 %v1018, %v1017
      %v1029 = vpack.c.b16 %v1020, %v1019
      %v1030 = vpack.c.b16 %v1022, %v1021
      %1039 = vmatprep.subr.bf16.mxu0 0
      %1040 = vmatpush1.bf16.msra.mxu0 %v1023
      %1041 = vmatprep.subr.bf16.mxu0 0
      %1042 = vmatpush1.bf16.msra.mxu0 %v1024
      %1043 = vmatprep.subr.bf16.mxu0 0
      %1044 = vmatpush1.bf16.msra.mxu0 %v1025
      %1045 = vmatprep.subr.bf16.mxu0 0
      %1046 = vmatpush1.bf16.msra.mxu0 %v1026
      %1047 = vmatprep.subr.bf16.mxu0 0
      %1048 = vmatpush1.bf16.msra.mxu0 %v1027
      %1049 = vmatprep.subr.bf16.mxu0 0
      %1050 = vmatpush1.bf16.msra.mxu0 %v1028
      %1051 = vmatprep.subr.bf16.mxu0 0
      %1052 = vmatpush1.bf16.msra.mxu0 %v1029
      %1053 = vmatprep.subr.bf16.mxu0 0
      %1054 = vmatpush1.bf16.msra.mxu0 %v1030
      %1055 = vmatprep.subr.bf16.mxu0 0
      %1056 = vmatpush1.bf16.msra.mxu0 0
      %1057 = vmatprep.subr.bf16.mxu0 0
      %1058 = vmatpush1.bf16.msra.mxu0 0
      %1059 = vmatprep.subr.bf16.mxu0 0
      %1060 = vmatpush1.bf16.msra.mxu0 0
      %1061 = vmatprep.subr.bf16.mxu0 0
      %1062 = vmatpush1.bf16.msra.mxu0 0
      %1063 = vmatprep.subr.bf16.mxu0 0
      %1064 = vmatpush1.bf16.msra.mxu0 0
      %1065 = vmatprep.subr.bf16.mxu0 0
      %1066 = vmatpush1.bf16.msra.mxu0 0
      %1067 = vmatprep.subr.bf16.mxu0 0
      %1068 = vmatpush1.bf16.msra.mxu0 0
      %1069 = vmatprep.subr.bf16.mxu0 0
      %1070 = vmatpush1.bf16.msra.mxu0 0
      %1071 = vmatprep.mubr.bf16.mxu0 0
      %1072 = vmatmul.mubr.bf16.gmra.mrb[0].mxu0 %v967
      %v1073 = vpop.f32.mrb[0].mxu0
      %v1074 = vadd.f32 %v989, %v1073
      %v1075 = vpop.f32.mrb[0].mxu0
      %v1076 = vpop.f32.mrb[0].mxu0
      %v1077 = vpop.f32.mrb[0].mxu0
      %1078 = vdwg.mxu0
      %v1079 = vld [vmem:[%s507] sm:$0xf]
      %v1080 = vld [vmem:[%s7] sm:$0xf]
      %v1081 = vld [vmem:[%s7 + $0x4] sm:$0xf]
      %v1082 = vld [vmem:[%s7 + $0x8] sm:$0xf]
      %v1083 = vld [vmem:[%s7 + $0xc] sm:$0xf]
      %v1084 = vld [vmem:[%s7 + $0x10] sm:$0xf]
      %v1085 = vld [vmem:[%s7 + $0x14] sm:$0xf]
      %v1086 = vld [vmem:[%s7 + $0x18] sm:$0xf]
      %v1087 = vld [vmem:[%s7 + $0x1c] sm:$0xf]
      %v1088 = vld [vmem:[%s7 + $0x20] sm:$0xf]
      %v1089 = vld [vmem:[%s7 + $0x24] sm:$0xf]
      %v1090 = vld [vmem:[%s7 + $0x28] sm:$0xf]
      %v1091 = vld [vmem:[%s7 + $0x2c] sm:$0xf]
      %v1092 = vld [vmem:[%s7 + $0x30] sm:$0xf]
      %v1093 = vld [vmem:[%s7 + $0x34] sm:$0xf]
      %v1094 = vld [vmem:[%s7 + $0x38] sm:$0xf]
      %v1095 = vld [vmem:[%s7 + $0x3c] sm:$0xf]
      %v1096 = vld [vmem:[%s8] sm:$0x1]
      %v1098 = vlaneseq
      %v1099 = vshrl.u32 %v1098, 7
      %v1100 = vsub.s32 0, %v1099
      %v1101 = vrot.slane %v1096, %v1100
      %v1119 = vunpack.c.l.b16 %v1080
      %v1120 = vunpack.c.l.b16 %v1081
      %v1121 = vunpack.c.l.b16 %v1082
      %v1122 = vunpack.c.l.b16 %v1083
      %v1123 = vunpack.c.l.b16 %v1084
      %v1124 = vunpack.c.l.b16 %v1085
      %v1125 = vunpack.c.l.b16 %v1086
      %v1126 = vunpack.c.l.b16 %v1087
      %v1127 = vunpack.c.l.b16 %v1088
      %v1128 = vunpack.c.l.b16 %v1089
      %v1129 = vunpack.c.l.b16 %v1090
      %v1130 = vunpack.c.l.b16 %v1091
      %v1131 = vunpack.c.l.b16 %v1092
      %v1132 = vunpack.c.l.b16 %v1093
      %v1133 = vunpack.c.l.b16 %v1094
      %v1134 = vunpack.c.l.b16 %v1095
      %v1135 = vpack.c.b16 %v1120, %v1119
      %v1136 = vpack.c.b16 %v1122, %v1121
      %v1137 = vpack.c.b16 %v1124, %v1123
      %v1138 = vpack.c.b16 %v1126, %v1125
      %v1139 = vpack.c.b16 %v1128, %v1127
      %v1140 = vpack.c.b16 %v1130, %v1129
      %v1141 = vpack.c.b16 %v1132, %v1131
      %v1142 = vpack.c.b16 %v1134, %v1133
      %1151 = vmatprep.subr.bf16.mxu0 0
      %1152 = vmatpush1.bf16.msra.mxu0 %v1135
      %1153 = vmatprep.subr.bf16.mxu0 0
      %1154 = vmatpush1.bf16.msra.mxu0 %v1136
      %1155 = vmatprep.subr.bf16.mxu0 0
      %1156 = vmatpush1.bf16.msra.mxu0 %v1137
      %1157 = vmatprep.subr.bf16.mxu0 0
      %1158 = vmatpush1.bf16.msra.mxu0 %v1138
      %1159 = vmatprep.subr.bf16.mxu0 0
      %1160 = vmatpush1.bf16.msra.mxu0 %v1139
      %1161 = vmatprep.subr.bf16.mxu0 0
      %1162 = vmatpush1.bf16.msra.mxu0 %v1140
      %1163 = vmatprep.subr.bf16.mxu0 0
      %1164 = vmatpush1.bf16.msra.mxu0 %v1141
      %1165 = vmatprep.subr.bf16.mxu0 0
      %1166 = vmatpush1.bf16.msra.mxu0 %v1142
      %1167 = vmatprep.subr.bf16.mxu0 0
      %1168 = vmatpush1.bf16.msra.mxu0 0
      %1169 = vmatprep.subr.bf16.mxu0 0
      %1170 = vmatpush1.bf16.msra.mxu0 0
      %1171 = vmatprep.subr.bf16.mxu0 0
      %1172 = vmatpush1.bf16.msra.mxu0 0
      %1173 = vmatprep.subr.bf16.mxu0 0
      %1174 = vmatpush1.bf16.msra.mxu0 0
      %1175 = vmatprep.subr.bf16.mxu0 0
      %1176 = vmatpush1.bf16.msra.mxu0 0
      %1177 = vmatprep.subr.bf16.mxu0 0
      %1178 = vmatpush1.bf16.msra.mxu0 0
      %1179 = vmatprep.subr.bf16.mxu0 0
      %1180 = vmatpush1.bf16.msra.mxu0 0
      %1181 = vmatprep.subr.bf16.mxu0 0
      %1182 = vmatpush1.bf16.msra.mxu0 0
      %1183 = vmatprep.mubr.bf16.mxu0 0
      %1184 = vmatmul.mubr.bf16.gmra.mrb[0].mxu0 %v1079
      %v1185 = vpop.f32.mrb[0].mxu0
      %v1186 = vadd.f32 %v1101, %v1185
      %v1187 = vpop.f32.mrb[0].mxu0
      %v1188 = vpop.f32.mrb[0].mxu0
      %v1189 = vpop.f32.mrb[0].mxu0
      %1190 = vdwg.mxu0
      %v1191 = vadd.f32 %v1074, %v1186
      %v1192 = vmax.f32 %v1191, 0.0
      %v1193 = vpack.c.bf16 %v1192, %v1192
      %1194 = vst [vmem:[%s304] sm:$0xf] %v1193
      %p1195 = scmp.lt.s32.totalorder %s24, 1
      %s1196 = scalar_select %p1195, %s24, 1
      %p1197 = scmp.lt.s32.totalorder %s25, 0
      %s1198 = scalar_select %p1197, %s25, 0
      %s1199 = sadd.s32 %s1198, %s1196
      %s1200 = smul.addr %s1199, 4
      %s1201 = scalar_lea.vmem %s9, %s1200
      // Predicated region
      $region87: #{_lambda_.7} parent=51 // pred_check
        %p1202 = pneg %p220
      $region88: #{_lambda_.7} parent=51 // pred_check_branch
        %1204 = sbr.rel (%p1202) target = $region90
      $region89: #{_lambda_.7} parent=51 // pred_region
        _
      $region90: #{_lambda_.7} parent=51 // pred_fallthru
        _
    $region52: #{_lambda_.7} parent=5 // pred_fallthru
      _
    %p1205 = scmp.le.s32.totalorder 2, %s15
    // Predicated region
    $region91: #{_lambda_.7} parent=5 // pred_check
      %p1206 = pneg %p1205
    $region92: #{_lambda_.7} parent=5 // pred_check_branch
      %1208 = sbr.rel (%p1206) target = $region94
    $region93: #{_lambda_.7} parent=5 // pred_region
      %s1209 = ssub.s32 %s15, 2
      // Predicated region
      $region95: #{_lambda_.7} parent=93 // pred_check
        %p1210 = pneg %p226
      $region96: #{_lambda_.7} parent=93 // pred_check_branch
        %1212 = sbr.rel (%p1210) target = $region98
      $region97: #{_lambda_.7} parent=93 // pred_region
        %p1213 = scmp.lt.s32.totalorder %s26, 1
        %s1214 = scalar_select %p1213, %s26, 1
        %p1215 = scmp.lt.s32.totalorder %s27, 0
        %s1216 = scalar_select %p1215, %s27, 0
        %s1217 = sadd.s32 %s1216, %s1214
        %s1218 = smul.addr %s1217, 4
        %s1219 = scalar_lea.vmem %s9, %s1218
      $region98: #{_lambda_.7} parent=93 // pred_fallthru
        _
    $region94: #{_lambda_.7} parent=5 // pred_fallthru
      _
  $region6: #{_lambda_.7} parent=0 // loop_footer
    %s19 = sadd.s32 1, %s15
  $region7: #{_lambda_.7} parent=0 // loop_footer_branch
    %14 = sbr.rel target = $region3
  $region8: #{_lambda_.7} parent=0 // loop_exit
    _
  %1220 = vsyncmov [#allocation4]
  %s1221 = vpop.sfrf %1220
  %p1222 = scmp.eq.s32.totalorder %s1221, 0
  %p1223 = pneg %p1222
  %1225 = shalt.err (%p1223)

</llo_original>
